<compile_context>
chip_gen: v7x
topology: tpu7x:2x2x1
jax: 0.10.0
libtpu: 0.0.40
codegen_flags: <defaults>
</compile_context>

<pallas_src>
import functools

import jax
import jax.numpy as jnp
from jax.experimental import pallas as pl
from jax.experimental.pallas import tpu as pltpu


_BN_EPS = 1e-5
_TAPS = tuple((dh, dw) for dh in (-1, 0, 1) for dw in (-1, 0, 1))


# ----------------------------------------------------------------------------
# The fused UNet kernel (one batch element per grid step).
# Activations are (C, M) values with M = H*W on the lane axis; coarser pyramid
# levels are embedded at stride 2 / 4 positions of the same M lanes.
# ----------------------------------------------------------------------------
def _unet_kernel(x_ref, w_ref, cmask_ref, umask_ref, out_ref, *, cfg):
    H, W = cfg["H"], cfg["W"]
    M = H * W
    offs = cfg["offs"]            # name -> (col, cout, k); static Python ints

    def weights(name):
        col, cout, k = offs[name]
        w = w_ref[0:cout, col:col + k]                    # (Cout, K) stacked-tap
        b = w_ref[0:cout, col + k:col + k + 1]            # (Cout, 1) bias
        return w, b

    def conv3x3(x, name, masks, stride):
        """3x3 conv (zero padding) + ReLU on the stride-`stride` embedded grid.

        x: (Cin, M); masks: (9, M) 0/1 out-of-bounds masks for this level.
        Rolls (XLU) + mask multiplies (VPU) build a (9*Cin, M) operand; one
        deep MXU dot against the (Cout, 9*Cin) packed weight does the conv.
        """
        w, b = weights(name)
        taps = []
        for idx, (dh, dw) in enumerate(_TAPS):
            off = (dh * W + dw) * stride                  # static int
            if off == 0:
                xt = x                                    # center tap, mask==1
            else:
                xt = pltpu.roll(x, shift=(-off) % M, axis=1)
                xt = xt * masks[idx:idx + 1, :]           # zero-pad boundary
            taps.append(xt)
        xs = jnp.concatenate(taps, axis=0)                # (9*Cin, M)
        y = jnp.dot(w, xs, preferred_element_type=jnp.float32) + b
        return jnp.maximum(y, 0.0)

    def maxpool2x2(x, stride):
        """2x2/2 max pool: 3 lane rolls + elementwise max (result lives on the
        2*stride embedded grid; off-grid lanes are don't-care)."""
        r1 = pltpu.roll(x, shift=(-stride) % M, axis=1)
        r2 = pltpu.roll(x, shift=(-stride * W) % M, axis=1)
        r3 = pltpu.roll(x, shift=(-stride * (W + 1)) % M, axis=1)
        return jnp.maximum(jnp.maximum(x, r1), jnp.maximum(r2, r3))

    def upsample2x(x, um, out_stride):
        """Nearest 2x upsample from the 2*out_stride grid to the out_stride
        grid: 3 rolls + 4 parity-mask selects (um: (4, M) = [ee, oe, eo, oo])."""
        r_oe = pltpu.roll(x, shift=out_stride * W, axis=1)
        r_eo = pltpu.roll(x, shift=out_stride, axis=1)
        r_oo = pltpu.roll(x, shift=out_stride * (W + 1), axis=1)
        return (x * um[0:1, :] + r_oe * um[1:2, :]
                + r_eo * um[2:3, :] + r_oo * um[3:4, :])

    x = x_ref[0]                                          # (Cin_pad, M)
    m1, m2, m3 = cmask_ref[0], cmask_ref[1], cmask_ref[2]  # (9, M) per level
    u21, u32 = umask_ref[0], umask_ref[1]                 # (4, M) per upsample

    # ---- encoder ----
    x1 = conv3x3(x, "inc1", m1, 1)
    x1 = conv3x3(x1, "inc2", m1, 1)                        # (c1, M) level 1
    x2 = conv3x3(maxpool2x2(x1, 1), "d1c1", m2, 2)
    x2 = conv3x3(x2, "d1c2", m2, 2)                        # (c2, M) level 2
    x3 = conv3x3(maxpool2x2(x2, 2), "d2c1", m3, 4)
    x3 = conv3x3(x3, "d2c2", m3, 4)                        # (c3, M) level 3

    # ---- decoder (skip concat along channels; sublane-aligned pieces) ----
    y1 = conv3x3(jnp.concatenate([upsample2x(x3, u32, 2), x2], axis=0),
                 "u1c1", m2, 2)
    y1 = conv3x3(y1, "u1c2", m2, 2)                        # (c2, M) level 2
    y2 = conv3x3(jnp.concatenate([upsample2x(y1, u21, 1), x1], axis=0),
                 "u2c1", m1, 1)
    y2 = conv3x3(y2, "u2c2", m1, 1)                        # (c1, M) level 1

    # ---- fused head: 1x1 conv -> [Vx, Vy, Sigma]; one lane-dense store ----
    wo, bo = weights("outc")
    out = jnp.dot(wo, y2, preferred_element_type=jnp.float32) + bo   # (3, M)
    row = jax.lax.broadcasted_iota(jnp.int32, out.shape, 0)
    out_ref[0] = jnp.where(row == cfg["out_total"] - 1,
                           jnp.maximum(out, 0.0), out)    # clamp Sigma row only


# ----------------------------------------------------------------------------
# Constant construction (packed weights + O(M) roll masks)
# ----------------------------------------------------------------------------
def _conv3x3_wb(key, cout, cin):
    kw, kb = jax.random.split(key)
    fan_in = 9 * cin
    w = jax.random.normal(kw, (9, cout, cin), jnp.float32) * (2.0 / fan_in) ** 0.5
    b = jax.random.normal(kb, (cout,), jnp.float32) * 0.01
    # eval-mode BatchNorm with default stats (mean=0, var=1, gamma=1, beta=0)
    # is a pure 1/sqrt(1+eps) scale; fold it into the conv.
    s = 1.0 / jnp.sqrt(1.0 + _BN_EPS)
    # stacked-tap layout: column index = tap*cin + cin_channel
    w = jnp.transpose(w, (1, 0, 2)).reshape(cout, 9 * cin) * s
    return w, b * s


def _conv1x1_wb(key, cout, cin):
    kw, kb = jax.random.split(key)
    w = jax.random.normal(kw, (cout, cin), jnp.float32) * (2.0 / cin) ** 0.5
    b = jax.random.normal(kb, (cout,), jnp.float32) * 0.01
    return w, b


def _conv_specs(cin_pad, c1, c2, c3, out_total):
    raw = [
        ("inc1", cin_pad, c1, 9), ("inc2", c1, c1, 9),
        ("d1c1", c1, c2, 9),      ("d1c2", c2, c2, 9),
        ("d2c1", c2, c3, 9),      ("d2c2", c3, c3, 9),
        ("u1c1", c3 + c2, c2, 9), ("u1c2", c2, c2, 9),
        ("u2c1", c2 + c1, c1, 9), ("u2c2", c1, c1, 9),
        ("outc", c1, out_total, 1),
    ]
    offs, col = {}, 0
    for name, ci, co, taps in raw:
        k = taps * ci
        offs[name] = (col, co, k)
        col += -(-(k + 1) // 128) * 128          # 128-lane-aligned weight blocks
    return raw, offs, col


def _conv_masks(h, w, stride):
    """(9, M) 0/1 masks: tap source in-bounds on the stride-embedded level."""
    m = h * w
    p = jnp.arange(m)
    i, j = (p // w) // stride, (p % w) // stride
    hs, ws = h // stride, w // stride
    rows = []
    for dh, dw in _TAPS:
        ok = (i + dh >= 0) & (i + dh < hs) & (j + dw >= 0) & (j + dw < ws)
        rows.append(ok)
    return jnp.stack(rows).astype(jnp.float32)


def _up_masks(h, w, out_stride):
    """(4, M) parity masks [ee, oe, eo, oo] of the output-level coordinates."""
    m = h * w
    p = jnp.arange(m)
    i = ((p // w) // out_stride) % 2
    j = ((p % w) // out_stride) % 2
    sel = [(0, 0), (1, 0), (0, 1), (1, 1)]
    return jnp.stack([(i == a) & (j == b) for a, b in sel]).astype(jnp.float32)


def init_params(key, in_channels=2, h=16, w=16, c1=8, c2=16, c3=32, out_total=3):
    assert h % 4 == 0 and w % 4 == 0, "two pooling levels need H, W % 4 == 0"
    assert (h * w) % 128 == 0, "flat spatial axis (lanes) must be 128-multiple"
    cin_pad = -(-in_channels // 8) * 8           # pad input channels to 8 sublanes
    raw, offs, total_cols = _conv_specs(cin_pad, c1, c2, c3, out_total)
    rows = max(8, max(co for _, _, co, _ in raw))

    w_pack = jnp.zeros((rows, total_cols), jnp.float32)
    keys = jax.random.split(key, len(raw))
    for kk, (name, ci, co, taps) in zip(keys, raw):
        col, _, k = offs[name]
        wmat, b = (_conv3x3_wb(kk, co, ci) if taps == 9 else _conv1x1_wb(kk, co, ci))
        w_pack = w_pack.at[:co, col:col + k].set(wmat)
        w_pack = w_pack.at[:co, col + k].set(b)

    params = {
        "w_pack": w_pack,                                          # (32, ~2.5K)
        "cmasks": jnp.stack([_conv_masks(h, w, 1),
                             _conv_masks(h, w, 2),
                             _conv_masks(h, w, 4)]),               # (3, 9, M)
        "umasks": jnp.stack([_up_masks(h, w, 1),
                             _up_masks(h, w, 2)]),                 # (2, 4, M)
    }
    cfg = {"H": h, "W": w, "c_in": in_channels, "c_in_pad": cin_pad,
           "out_total": out_total, "offs": offs}
    return params, cfg


# ----------------------------------------------------------------------------
# Forward pass (wrapper does only reshape / channel pad / output slicing)
# ----------------------------------------------------------------------------
def unet2d_vectorv_forward(x_nchw, params, cfg, stochastic=True):
    """UNet2D_vectorV.forward: returns (V, delta_V, Sigma) in PyTorch layout."""
    n, cin, h, w = x_nchw.shape
    assert (h, w, cin) == (cfg["H"], cfg["W"], cfg["c_in"])
    m = h * w
    cin_pad, out_total = cfg["c_in_pad"], cfg["out_total"]

    x_flat = x_nchw.reshape(n, cin, m)           # NCHW is already channel-major
    if cin_pad > cin:                            # zero-pad channels to 8 sublanes
        x_flat = jnp.concatenate(
            [x_flat, jnp.zeros((n, cin_pad - cin, m), x_flat.dtype)], axis=1)

    def inv(shape):                              # grid-invariant constant spec
        nd = len(shape)
        return pl.BlockSpec(shape, lambda i, _n=nd: (0,) * _n)

    kernel = functools.partial(_unet_kernel, cfg=cfg)
    out = pl.pallas_call(
        kernel,
        out_shape=jax.ShapeDtypeStruct((n, out_total, m), jnp.float32),
        grid=(n,),
        in_specs=[pl.BlockSpec((1, cin_pad, m), lambda i: (i, 0, 0)),
                  inv(params["w_pack"].shape),
                  inv(params["cmasks"].shape),
                  inv(params["umasks"].shape)],
        out_specs=pl.BlockSpec((1, out_total, m), lambda i: (i, 0, 0)),
        compiler_params=pltpu.CompilerParams(
            dimension_semantics=("parallel",)),
    )(x_flat, params["w_pack"], params["cmasks"], params["umasks"])

    V = out[:, :2].reshape(n, 2, h, w)                   # already NCHW
    Sigma = out[:, out_total - 1].reshape(n, h, w) if stochastic else 0.0
    # TODO(synk): the non-joint (adv_diff) split-decoder path would produce a
    # real delta_out[:, :2]; the joint-decoder path returns delta_out = None.
    delta_V = None
    return V, delta_V, Sigma


# ----------------------------------------------------------------------------
# Main
# ----------------------------------------------------------------------------
if __name__ == "__main__":
    key = jax.random.PRNGKey(0)
    k_param, k_input = jax.random.split(key)

    N, C_IN, H, W = 2, 2, 16, 16
    params, cfg = init_params(k_param, in_channels=C_IN, h=H, w=W)
    x = jax.random.normal(k_input, (N, C_IN, H, W), jnp.float32)   # NCHW

    fwd = jax.jit(lambda xx, pp: unet2d_vectorv_forward(xx, pp, cfg,
                                                        stochastic=True))
    V, delta_V, Sigma = fwd(x, params)
    jax.block_until_ready(V)
    jax.block_until_ready(Sigma)

    assert V.shape == (N, 2, H, W)
    assert Sigma.shape == (N, H, W)
    assert delta_V is None
    assert bool(jnp.all(jnp.isfinite(V)))
    assert bool(jnp.all(Sigma >= 0.0))

    print("KERNEL_OK")
</pallas_src>

<mosaic_0001>
module attributes {stable_mosaic.version = 11 : i64} {
  func.func @_unet_kernel(%arg0: i32, %arg1: memref<1x8x256xf32, #tpu.memory_space<vmem>>, %arg2: memref<32x2560xf32, #tpu.memory_space<vmem>>, %arg3: memref<3x9x256xf32, #tpu.memory_space<vmem>>, %arg4: memref<2x4x256xf32, #tpu.memory_space<vmem>>, %arg5: memref<1x3x256xf32, #tpu.memory_space<vmem>>) attributes {dimension_semantics = [#tpu.dimension_semantics<parallel>], iteration_bounds = array<i64: 2>, scalar_prefetch = 0 : i64, scratch_operands = 0 : i64, tpu.core_type = #tpu.core_type<tc>, window_params = [{transform_indices = @transform_0, window_bounds = array<i64: 1, 8, 256>}, {pipeline_mode = #tpu.pipeline_mode<synchronous>, transform_indices = @transform_1, window_bounds = array<i64: 32, 2560>}, {pipeline_mode = #tpu.pipeline_mode<synchronous>, transform_indices = @transform_2, window_bounds = array<i64: 3, 9, 256>}, {pipeline_mode = #tpu.pipeline_mode<synchronous>, transform_indices = @transform_3, window_bounds = array<i64: 2, 4, 256>}, {transform_indices = @transform_4, window_bounds = array<i64: 1, 3, 256>}]} {
    %c0 = arith.constant 0 : index
    %c0_0 = arith.constant 0 : index
    %c0_1 = arith.constant 0 : index
    %0 = vector.load %arg1[%c0, %c0_0, %c0_1] : memref<1x8x256xf32, #tpu.memory_space<vmem>>, vector<1x8x256xf32>
    %1 = vector.shape_cast %0 : vector<1x8x256xf32> to vector<8x256xf32>
    %c0_2 = arith.constant 0 : index
    %c0_3 = arith.constant 0 : index
    %c0_4 = arith.constant 0 : index
    %2 = vector.load %arg3[%c0_2, %c0_3, %c0_4] : memref<3x9x256xf32, #tpu.memory_space<vmem>>, vector<1x9x256xf32>
    %3 = vector.shape_cast %2 : vector<1x9x256xf32> to vector<9x256xf32>
    %c1 = arith.constant 1 : index
    %c0_5 = arith.constant 0 : index
    %c0_6 = arith.constant 0 : index
    %4 = vector.load %arg3[%c1, %c0_5, %c0_6] : memref<3x9x256xf32, #tpu.memory_space<vmem>>, vector<1x9x256xf32>
    %5 = vector.shape_cast %4 : vector<1x9x256xf32> to vector<9x256xf32>
    %c2 = arith.constant 2 : index
    %c0_7 = arith.constant 0 : index
    %c0_8 = arith.constant 0 : index
    %6 = vector.load %arg3[%c2, %c0_7, %c0_8] : memref<3x9x256xf32, #tpu.memory_space<vmem>>, vector<1x9x256xf32>
    %7 = vector.shape_cast %6 : vector<1x9x256xf32> to vector<9x256xf32>
    %c0_9 = arith.constant 0 : index
    %c0_10 = arith.constant 0 : index
    %c0_11 = arith.constant 0 : index
    %8 = vector.load %arg4[%c0_9, %c0_10, %c0_11] : memref<2x4x256xf32, #tpu.memory_space<vmem>>, vector<1x4x256xf32>
    %9 = vector.shape_cast %8 : vector<1x4x256xf32> to vector<4x256xf32>
    %c1_12 = arith.constant 1 : index
    %c0_13 = arith.constant 0 : index
    %c0_14 = arith.constant 0 : index
    %10 = vector.load %arg4[%c1_12, %c0_13, %c0_14] : memref<2x4x256xf32, #tpu.memory_space<vmem>>, vector<1x4x256xf32>
    %11 = vector.shape_cast %10 : vector<1x4x256xf32> to vector<4x256xf32>
    %c0_15 = arith.constant 0 : index
    %c0_16 = arith.constant 0 : index
    %12 = vector.load %arg2[%c0_15, %c0_16] : memref<32x2560xf32, #tpu.memory_space<vmem>>, vector<8x72xf32>
    %c0_17 = arith.constant 0 : index
    %c72 = arith.constant 72 : index
    %13 = vector.load %arg2[%c0_17, %c72] : memref<32x2560xf32, #tpu.memory_space<vmem>>, vector<8x1xf32>
    %c17_i32 = arith.constant 17 : i32
    %14 = tpu.dynamic_rotate %1 by %c17_i32 dim 1 : vector<8x256xf32>, i32 -> vector<8x256xf32>
    %15 = vector.extract_strided_slice %3 {offsets = [0, 0], sizes = [1, 256], strides = [1, 1]} : vector<9x256xf32> to vector<1x256xf32>
    %16 = vector.broadcast %15 : vector<1x256xf32> to vector<8x256xf32>
    %17 = arith.mulf %14, %16 : vector<8x256xf32>
    %c16_i32 = arith.constant 16 : i32
    %18 = tpu.dynamic_rotate %1 by %c16_i32 dim 1 : vector<8x256xf32>, i32 -> vector<8x256xf32>
    %19 = vector.extract_strided_slice %3 {offsets = [1, 0], sizes = [1, 256], strides = [1, 1]} : vector<9x256xf32> to vector<1x256xf32>
    %20 = vector.broadcast %19 : vector<1x256xf32> to vector<8x256xf32>
    %21 = arith.mulf %18, %20 : vector<8x256xf32>
    %c15_i32 = arith.constant 15 : i32
    %22 = tpu.dynamic_rotate %1 by %c15_i32 dim 1 : vector<8x256xf32>, i32 -> vector<8x256xf32>
    %23 = vector.extract_strided_slice %3 {offsets = [2, 0], sizes = [1, 256], strides = [1, 1]} : vector<9x256xf32> to vector<1x256xf32>
    %24 = vector.broadcast %23 : vector<1x256xf32> to vector<8x256xf32>
    %25 = arith.mulf %22, %24 : vector<8x256xf32>
    %c1_i32 = arith.constant 1 : i32
    %26 = tpu.dynamic_rotate %1 by %c1_i32 dim 1 : vector<8x256xf32>, i32 -> vector<8x256xf32>
    %27 = vector.extract_strided_slice %3 {offsets = [3, 0], sizes = [1, 256], strides = [1, 1]} : vector<9x256xf32> to vector<1x256xf32>
    %28 = vector.broadcast %27 : vector<1x256xf32> to vector<8x256xf32>
    %29 = arith.mulf %26, %28 : vector<8x256xf32>
    %c255_i32 = arith.constant 255 : i32
    %30 = tpu.dynamic_rotate %1 by %c255_i32 dim 1 : vector<8x256xf32>, i32 -> vector<8x256xf32>
    %31 = vector.extract_strided_slice %3 {offsets = [5, 0], sizes = [1, 256], strides = [1, 1]} : vector<9x256xf32> to vector<1x256xf32>
    %32 = vector.broadcast %31 : vector<1x256xf32> to vector<8x256xf32>
    %33 = arith.mulf %30, %32 : vector<8x256xf32>
    %c241_i32 = arith.constant 241 : i32
    %34 = tpu.dynamic_rotate %1 by %c241_i32 dim 1 : vector<8x256xf32>, i32 -> vector<8x256xf32>
    %35 = vector.extract_strided_slice %3 {offsets = [6, 0], sizes = [1, 256], strides = [1, 1]} : vector<9x256xf32> to vector<1x256xf32>
    %36 = vector.broadcast %35 : vector<1x256xf32> to vector<8x256xf32>
    %37 = arith.mulf %34, %36 : vector<8x256xf32>
    %c240_i32 = arith.constant 240 : i32
    %38 = tpu.dynamic_rotate %1 by %c240_i32 dim 1 : vector<8x256xf32>, i32 -> vector<8x256xf32>
    %39 = vector.extract_strided_slice %3 {offsets = [7, 0], sizes = [1, 256], strides = [1, 1]} : vector<9x256xf32> to vector<1x256xf32>
    %40 = vector.broadcast %39 : vector<1x256xf32> to vector<8x256xf32>
    %41 = arith.mulf %38, %40 : vector<8x256xf32>
    %c239_i32 = arith.constant 239 : i32
    %42 = tpu.dynamic_rotate %1 by %c239_i32 dim 1 : vector<8x256xf32>, i32 -> vector<8x256xf32>
    %43 = vector.extract_strided_slice %3 {offsets = [8, 0], sizes = [1, 256], strides = [1, 1]} : vector<9x256xf32> to vector<1x256xf32>
    %44 = vector.broadcast %43 : vector<1x256xf32> to vector<8x256xf32>
    %45 = arith.mulf %42, %44 : vector<8x256xf32>
    %46 = tpu.concatenate %17, %21, %25, %29, %1, %33, %37, %41, %45 in 0 : vector<8x256xf32>, vector<8x256xf32>, vector<8x256xf32>, vector<8x256xf32>, vector<8x256xf32>, vector<8x256xf32>, vector<8x256xf32>, vector<8x256xf32>, vector<8x256xf32> -> vector<72x256xf32>
    %cst = arith.constant dense<0.000000e+00> : vector<8x256xf32>
    %47 = tpu.matmul %12, %46, %cst {dimension_numbers = #tpu.dot_dimension_numbers<[1], [0], [0], [1], [0, 0, 1, 1], [], []>} : vector<8x72xf32>, vector<72x256xf32>, vector<8x256xf32> -> vector<8x256xf32>
    %48 = vector.broadcast %13 : vector<8x1xf32> to vector<8x256xf32>
    %49 = arith.addf %47, %48 : vector<8x256xf32>
    %cst_18 = arith.constant 0.000000e+00 : f32
    %50 = vector.broadcast %cst_18 : f32 to vector<8x256xf32>
    %51 = arith.maximumf %49, %50 : vector<8x256xf32>
    %c0_19 = arith.constant 0 : index
    %c128 = arith.constant 128 : index
    %52 = vector.load %arg2[%c0_19, %c128] : memref<32x2560xf32, #tpu.memory_space<vmem>>, vector<8x72xf32>
    %c0_20 = arith.constant 0 : index
    %c200 = arith.constant 200 : index
    %53 = vector.load %arg2[%c0_20, %c200] : memref<32x2560xf32, #tpu.memory_space<vmem>>, vector<8x1xf32>
    %c17_i32_21 = arith.constant 17 : i32
    %54 = tpu.dynamic_rotate %51 by %c17_i32_21 dim 1 : vector<8x256xf32>, i32 -> vector<8x256xf32>
    %55 = vector.extract_strided_slice %3 {offsets = [0, 0], sizes = [1, 256], strides = [1, 1]} : vector<9x256xf32> to vector<1x256xf32>
    %56 = vector.broadcast %55 : vector<1x256xf32> to vector<8x256xf32>
    %57 = arith.mulf %54, %56 : vector<8x256xf32>
    %c16_i32_22 = arith.constant 16 : i32
    %58 = tpu.dynamic_rotate %51 by %c16_i32_22 dim 1 : vector<8x256xf32>, i32 -> vector<8x256xf32>
    %59 = vector.extract_strided_slice %3 {offsets = [1, 0], sizes = [1, 256], strides = [1, 1]} : vector<9x256xf32> to vector<1x256xf32>
    %60 = vector.broadcast %59 : vector<1x256xf32> to vector<8x256xf32>
    %61 = arith.mulf %58, %60 : vector<8x256xf32>
    %c15_i32_23 = arith.constant 15 : i32
    %62 = tpu.dynamic_rotate %51 by %c15_i32_23 dim 1 : vector<8x256xf32>, i32 -> vector<8x256xf32>
    %63 = vector.extract_strided_slice %3 {offsets = [2, 0], sizes = [1, 256], strides = [1, 1]} : vector<9x256xf32> to vector<1x256xf32>
    %64 = vector.broadcast %63 : vector<1x256xf32> to vector<8x256xf32>
    %65 = arith.mulf %62, %64 : vector<8x256xf32>
    %c1_i32_24 = arith.constant 1 : i32
    %66 = tpu.dynamic_rotate %51 by %c1_i32_24 dim 1 : vector<8x256xf32>, i32 -> vector<8x256xf32>
    %67 = vector.extract_strided_slice %3 {offsets = [3, 0], sizes = [1, 256], strides = [1, 1]} : vector<9x256xf32> to vector<1x256xf32>
    %68 = vector.broadcast %67 : vector<1x256xf32> to vector<8x256xf32>
    %69 = arith.mulf %66, %68 : vector<8x256xf32>
    %c255_i32_25 = arith.constant 255 : i32
    %70 = tpu.dynamic_rotate %51 by %c255_i32_25 dim 1 : vector<8x256xf32>, i32 -> vector<8x256xf32>
    %71 = vector.extract_strided_slice %3 {offsets = [5, 0], sizes = [1, 256], strides = [1, 1]} : vector<9x256xf32> to vector<1x256xf32>
    %72 = vector.broadcast %71 : vector<1x256xf32> to vector<8x256xf32>
    %73 = arith.mulf %70, %72 : vector<8x256xf32>
    %c241_i32_26 = arith.constant 241 : i32
    %74 = tpu.dynamic_rotate %51 by %c241_i32_26 dim 1 : vector<8x256xf32>, i32 -> vector<8x256xf32>
    %75 = vector.extract_strided_slice %3 {offsets = [6, 0], sizes = [1, 256], strides = [1, 1]} : vector<9x256xf32> to vector<1x256xf32>
    %76 = vector.broadcast %75 : vector<1x256xf32> to vector<8x256xf32>
    %77 = arith.mulf %74, %76 : vector<8x256xf32>
    %c240_i32_27 = arith.constant 240 : i32
    %78 = tpu.dynamic_rotate %51 by %c240_i32_27 dim 1 : vector<8x256xf32>, i32 -> vector<8x256xf32>
    %79 = vector.extract_strided_slice %3 {offsets = [7, 0], sizes = [1, 256], strides = [1, 1]} : vector<9x256xf32> to vector<1x256xf32>
    %80 = vector.broadcast %79 : vector<1x256xf32> to vector<8x256xf32>
    %81 = arith.mulf %78, %80 : vector<8x256xf32>
    %c239_i32_28 = arith.constant 239 : i32
    %82 = tpu.dynamic_rotate %51 by %c239_i32_28 dim 1 : vector<8x256xf32>, i32 -> vector<8x256xf32>
    %83 = vector.extract_strided_slice %3 {offsets = [8, 0], sizes = [1, 256], strides = [1, 1]} : vector<9x256xf32> to vector<1x256xf32>
    %84 = vector.broadcast %83 : vector<1x256xf32> to vector<8x256xf32>
    %85 = arith.mulf %82, %84 : vector<8x256xf32>
    %86 = tpu.concatenate %57, %61, %65, %69, %51, %73, %77, %81, %85 in 0 : vector<8x256xf32>, vector<8x256xf32>, vector<8x256xf32>, vector<8x256xf32>, vector<8x256xf32>, vector<8x256xf32>, vector<8x256xf32>, vector<8x256xf32>, vector<8x256xf32> -> vector<72x256xf32>
    %cst_29 = arith.constant dense<0.000000e+00> : vector<8x256xf32>
    %87 = tpu.matmul %52, %86, %cst_29 {dimension_numbers = #tpu.dot_dimension_numbers<[1], [0], [0], [1], [0, 0, 1, 1], [], []>} : vector<8x72xf32>, vector<72x256xf32>, vector<8x256xf32> -> vector<8x256xf32>
    %88 = vector.broadcast %53 : vector<8x1xf32> to vector<8x256xf32>
    %89 = arith.addf %87, %88 : vector<8x256xf32>
    %cst_30 = arith.constant 0.000000e+00 : f32
    %90 = vector.broadcast %cst_30 : f32 to vector<8x256xf32>
    %91 = arith.maximumf %89, %90 : vector<8x256xf32>
    %c255_i32_31 = arith.constant 255 : i32
    %92 = tpu.dynamic_rotate %91 by %c255_i32_31 dim 1 : vector<8x256xf32>, i32 -> vector<8x256xf32>
    %c240_i32_32 = arith.constant 240 : i32
    %93 = tpu.dynamic_rotate %91 by %c240_i32_32 dim 1 : vector<8x256xf32>, i32 -> vector<8x256xf32>
    %c239_i32_33 = arith.constant 239 : i32
    %94 = tpu.dynamic_rotate %91 by %c239_i32_33 dim 1 : vector<8x256xf32>, i32 -> vector<8x256xf32>
    %95 = arith.maximumf %91, %92 : vector<8x256xf32>
    %96 = arith.maximumf %93, %94 : vector<8x256xf32>
    %97 = arith.maximumf %95, %96 : vector<8x256xf32>
    %c0_34 = arith.constant 0 : index
    %c256 = arith.constant 256 : index
    %98 = vector.load %arg2[%c0_34, %c256] : memref<32x2560xf32, #tpu.memory_space<vmem>>, vector<16x72xf32>
    %c0_35 = arith.constant 0 : index
    %c328 = arith.constant 328 : index
    %99 = vector.load %arg2[%c0_35, %c328] : memref<32x2560xf32, #tpu.memory_space<vmem>>, vector<16x1xf32>
    %c34_i32 = arith.constant 34 : i32
    %100 = tpu.dynamic_rotate %97 by %c34_i32 dim 1 : vector<8x256xf32>, i32 -> vector<8x256xf32>
    %101 = vector.extract_strided_slice %5 {offsets = [0, 0], sizes = [1, 256], strides = [1, 1]} : vector<9x256xf32> to vector<1x256xf32>
    %102 = vector.broadcast %101 : vector<1x256xf32> to vector<8x256xf32>
    %103 = arith.mulf %100, %102 : vector<8x256xf32>
    %c32_i32 = arith.constant 32 : i32
    %104 = tpu.dynamic_rotate %97 by %c32_i32 dim 1 : vector<8x256xf32>, i32 -> vector<8x256xf32>
    %105 = vector.extract_strided_slice %5 {offsets = [1, 0], sizes = [1, 256], strides = [1, 1]} : vector<9x256xf32> to vector<1x256xf32>
    %106 = vector.broadcast %105 : vector<1x256xf32> to vector<8x256xf32>
    %107 = arith.mulf %104, %106 : vector<8x256xf32>
    %c30_i32 = arith.constant 30 : i32
    %108 = tpu.dynamic_rotate %97 by %c30_i32 dim 1 : vector<8x256xf32>, i32 -> vector<8x256xf32>
    %109 = vector.extract_strided_slice %5 {offsets = [2, 0], sizes = [1, 256], strides = [1, 1]} : vector<9x256xf32> to vector<1x256xf32>
    %110 = vector.broadcast %109 : vector<1x256xf32> to vector<8x256xf32>
    %111 = arith.mulf %108, %110 : vector<8x256xf32>
    %c2_i32 = arith.constant 2 : i32
    %112 = tpu.dynamic_rotate %97 by %c2_i32 dim 1 : vector<8x256xf32>, i32 -> vector<8x256xf32>
    %113 = vector.extract_strided_slice %5 {offsets = [3, 0], sizes = [1, 256], strides = [1, 1]} : vector<9x256xf32> to vector<1x256xf32>
    %114 = vector.broadcast %113 : vector<1x256xf32> to vector<8x256xf32>
    %115 = arith.mulf %112, %114 : vector<8x256xf32>
    %c254_i32 = arith.constant 254 : i32
    %116 = tpu.dynamic_rotate %97 by %c254_i32 dim 1 : vector<8x256xf32>, i32 -> vector<8x256xf32>
    %117 = vector.extract_strided_slice %5 {offsets = [5, 0], sizes = [1, 256], strides = [1, 1]} : vector<9x256xf32> to vector<1x256xf32>
    %118 = vector.broadcast %117 : vector<1x256xf32> to vector<8x256xf32>
    %119 = arith.mulf %116, %118 : vector<8x256xf32>
    %c226_i32 = arith.constant 226 : i32
    %120 = tpu.dynamic_rotate %97 by %c226_i32 dim 1 : vector<8x256xf32>, i32 -> vector<8x256xf32>
    %121 = vector.extract_strided_slice %5 {offsets = [6, 0], sizes = [1, 256], strides = [1, 1]} : vector<9x256xf32> to vector<1x256xf32>
    %122 = vector.broadcast %121 : vector<1x256xf32> to vector<8x256xf32>
    %123 = arith.mulf %120, %122 : vector<8x256xf32>
    %c224_i32 = arith.constant 224 : i32
    %124 = tpu.dynamic_rotate %97 by %c224_i32 dim 1 : vector<8x256xf32>, i32 -> vector<8x256xf32>
    %125 = vector.extract_strided_slice %5 {offsets = [7, 0], sizes = [1, 256], strides = [1, 1]} : vector<9x256xf32> to vector<1x256xf32>
    %126 = vector.broadcast %125 : vector<1x256xf32> to vector<8x256xf32>
    %127 = arith.mulf %124, %126 : vector<8x256xf32>
    %c222_i32 = arith.constant 222 : i32
    %128 = tpu.dynamic_rotate %97 by %c222_i32 dim 1 : vector<8x256xf32>, i32 -> vector<8x256xf32>
    %129 = vector.extract_strided_slice %5 {offsets = [8, 0], sizes = [1, 256], strides = [1, 1]} : vector<9x256xf32> to vector<1x256xf32>
    %130 = vector.broadcast %129 : vector<1x256xf32> to vector<8x256xf32>
    %131 = arith.mulf %128, %130 : vector<8x256xf32>
    %132 = tpu.concatenate %103, %107, %111, %115, %97, %119, %123, %127, %131 in 0 : vector<8x256xf32>, vector<8x256xf32>, vector<8x256xf32>, vector<8x256xf32>, vector<8x256xf32>, vector<8x256xf32>, vector<8x256xf32>, vector<8x256xf32>, vector<8x256xf32> -> vector<72x256xf32>
    %cst_36 = arith.constant dense<0.000000e+00> : vector<16x256xf32>
    %133 = tpu.matmul %98, %132, %cst_36 {dimension_numbers = #tpu.dot_dimension_numbers<[1], [0], [0], [1], [0, 0, 1, 1], [], []>} : vector<16x72xf32>, vector<72x256xf32>, vector<16x256xf32> -> vector<16x256xf32>
    %134 = vector.broadcast %99 : vector<16x1xf32> to vector<16x256xf32>
    %135 = arith.addf %133, %134 : vector<16x256xf32>
    %cst_37 = arith.constant 0.000000e+00 : f32
    %136 = vector.broadcast %cst_37 : f32 to vector<16x256xf32>
    %137 = arith.maximumf %135, %136 : vector<16x256xf32>
    %c0_38 = arith.constant 0 : index
    %c384 = arith.constant 384 : index
    %138 = vector.load %arg2[%c0_38, %c384] : memref<32x2560xf32, #tpu.memory_space<vmem>>, vector<16x144xf32>
    %c0_39 = arith.constant 0 : index
    %c528 = arith.constant 528 : index
    %139 = vector.load %arg2[%c0_39, %c528] : memref<32x2560xf32, #tpu.memory_space<vmem>>, vector<16x1xf32>
    %c34_i32_40 = arith.constant 34 : i32
    %140 = tpu.dynamic_rotate %137 by %c34_i32_40 dim 1 : vector<16x256xf32>, i32 -> vector<16x256xf32>
    %141 = vector.extract_strided_slice %5 {offsets = [0, 0], sizes = [1, 256], strides = [1, 1]} : vector<9x256xf32> to vector<1x256xf32>
    %142 = vector.broadcast %141 : vector<1x256xf32> to vector<16x256xf32>
    %143 = arith.mulf %140, %142 : vector<16x256xf32>
    %c32_i32_41 = arith.constant 32 : i32
    %144 = tpu.dynamic_rotate %137 by %c32_i32_41 dim 1 : vector<16x256xf32>, i32 -> vector<16x256xf32>
    %145 = vector.extract_strided_slice %5 {offsets = [1, 0], sizes = [1, 256], strides = [1, 1]} : vector<9x256xf32> to vector<1x256xf32>
    %146 = vector.broadcast %145 : vector<1x256xf32> to vector<16x256xf32>
    %147 = arith.mulf %144, %146 : vector<16x256xf32>
    %c30_i32_42 = arith.constant 30 : i32
    %148 = tpu.dynamic_rotate %137 by %c30_i32_42 dim 1 : vector<16x256xf32>, i32 -> vector<16x256xf32>
    %149 = vector.extract_strided_slice %5 {offsets = [2, 0], sizes = [1, 256], strides = [1, 1]} : vector<9x256xf32> to vector<1x256xf32>
    %150 = vector.broadcast %149 : vector<1x256xf32> to vector<16x256xf32>
    %151 = arith.mulf %148, %150 : vector<16x256xf32>
    %c2_i32_43 = arith.constant 2 : i32
    %152 = tpu.dynamic_rotate %137 by %c2_i32_43 dim 1 : vector<16x256xf32>, i32 -> vector<16x256xf32>
    %153 = vector.extract_strided_slice %5 {offsets = [3, 0], sizes = [1, 256], strides = [1, 1]} : vector<9x256xf32> to vector<1x256xf32>
    %154 = vector.broadcast %153 : vector<1x256xf32> to vector<16x256xf32>
    %155 = arith.mulf %152, %154 : vector<16x256xf32>
    %c254_i32_44 = arith.constant 254 : i32
    %156 = tpu.dynamic_rotate %137 by %c254_i32_44 dim 1 : vector<16x256xf32>, i32 -> vector<16x256xf32>
    %157 = vector.extract_strided_slice %5 {offsets = [5, 0], sizes = [1, 256], strides = [1, 1]} : vector<9x256xf32> to vector<1x256xf32>
    %158 = vector.broadcast %157 : vector<1x256xf32> to vector<16x256xf32>
    %159 = arith.mulf %156, %158 : vector<16x256xf32>
    %c226_i32_45 = arith.constant 226 : i32
    %160 = tpu.dynamic_rotate %137 by %c226_i32_45 dim 1 : vector<16x256xf32>, i32 -> vector<16x256xf32>
    %161 = vector.extract_strided_slice %5 {offsets = [6, 0], sizes = [1, 256], strides = [1, 1]} : vector<9x256xf32> to vector<1x256xf32>
    %162 = vector.broadcast %161 : vector<1x256xf32> to vector<16x256xf32>
    %163 = arith.mulf %160, %162 : vector<16x256xf32>
    %c224_i32_46 = arith.constant 224 : i32
    %164 = tpu.dynamic_rotate %137 by %c224_i32_46 dim 1 : vector<16x256xf32>, i32 -> vector<16x256xf32>
    %165 = vector.extract_strided_slice %5 {offsets = [7, 0], sizes = [1, 256], strides = [1, 1]} : vector<9x256xf32> to vector<1x256xf32>
    %166 = vector.broadcast %165 : vector<1x256xf32> to vector<16x256xf32>
    %167 = arith.mulf %164, %166 : vector<16x256xf32>
    %c222_i32_47 = arith.constant 222 : i32
    %168 = tpu.dynamic_rotate %137 by %c222_i32_47 dim 1 : vector<16x256xf32>, i32 -> vector<16x256xf32>
    %169 = vector.extract_strided_slice %5 {offsets = [8, 0], sizes = [1, 256], strides = [1, 1]} : vector<9x256xf32> to vector<1x256xf32>
    %170 = vector.broadcast %169 : vector<1x256xf32> to vector<16x256xf32>
    %171 = arith.mulf %168, %170 : vector<16x256xf32>
    %172 = tpu.concatenate %143, %147, %151, %155, %137, %159, %163, %167, %171 in 0 : vector<16x256xf32>, vector<16x256xf32>, vector<16x256xf32>, vector<16x256xf32>, vector<16x256xf32>, vector<16x256xf32>, vector<16x256xf32>, vector<16x256xf32>, vector<16x256xf32> -> vector<144x256xf32>
    %cst_48 = arith.constant dense<0.000000e+00> : vector<16x256xf32>
    %173 = tpu.matmul %138, %172, %cst_48 {dimension_numbers = #tpu.dot_dimension_numbers<[1], [0], [0], [1], [0, 0, 1, 1], [], []>} : vector<16x144xf32>, vector<144x256xf32>, vector<16x256xf32> -> vector<16x256xf32>
    %174 = vector.broadcast %139 : vector<16x1xf32> to vector<16x256xf32>
    %175 = arith.addf %173, %174 : vector<16x256xf32>
    %cst_49 = arith.constant 0.000000e+00 : f32
    %176 = vector.broadcast %cst_49 : f32 to vector<16x256xf32>
    %177 = arith.maximumf %175, %176 : vector<16x256xf32>
    %c254_i32_50 = arith.constant 254 : i32
    %178 = tpu.dynamic_rotate %177 by %c254_i32_50 dim 1 : vector<16x256xf32>, i32 -> vector<16x256xf32>
    %c224_i32_51 = arith.constant 224 : i32
    %179 = tpu.dynamic_rotate %177 by %c224_i32_51 dim 1 : vector<16x256xf32>, i32 -> vector<16x256xf32>
    %c222_i32_52 = arith.constant 222 : i32
    %180 = tpu.dynamic_rotate %177 by %c222_i32_52 dim 1 : vector<16x256xf32>, i32 -> vector<16x256xf32>
    %181 = arith.maximumf %177, %178 : vector<16x256xf32>
    %182 = arith.maximumf %179, %180 : vector<16x256xf32>
    %183 = arith.maximumf %181, %182 : vector<16x256xf32>
    %c0_53 = arith.constant 0 : index
    %c640 = arith.constant 640 : index
    %184 = vector.load %arg2[%c0_53, %c640] : memref<32x2560xf32, #tpu.memory_space<vmem>>, vector<32x144xf32>
    %c0_54 = arith.constant 0 : index
    %c784 = arith.constant 784 : index
    %185 = vector.load %arg2[%c0_54, %c784] : memref<32x2560xf32, #tpu.memory_space<vmem>>, vector<32x1xf32>
    %c68_i32 = arith.constant 68 : i32
    %186 = tpu.dynamic_rotate %183 by %c68_i32 dim 1 : vector<16x256xf32>, i32 -> vector<16x256xf32>
    %187 = vector.extract_strided_slice %7 {offsets = [0, 0], sizes = [1, 256], strides = [1, 1]} : vector<9x256xf32> to vector<1x256xf32>
    %188 = vector.broadcast %187 : vector<1x256xf32> to vector<16x256xf32>
    %189 = arith.mulf %186, %188 : vector<16x256xf32>
    %c64_i32 = arith.constant 64 : i32
    %190 = tpu.dynamic_rotate %183 by %c64_i32 dim 1 : vector<16x256xf32>, i32 -> vector<16x256xf32>
    %191 = vector.extract_strided_slice %7 {offsets = [1, 0], sizes = [1, 256], strides = [1, 1]} : vector<9x256xf32> to vector<1x256xf32>
    %192 = vector.broadcast %191 : vector<1x256xf32> to vector<16x256xf32>
    %193 = arith.mulf %190, %192 : vector<16x256xf32>
    %c60_i32 = arith.constant 60 : i32
    %194 = tpu.dynamic_rotate %183 by %c60_i32 dim 1 : vector<16x256xf32>, i32 -> vector<16x256xf32>
    %195 = vector.extract_strided_slice %7 {offsets = [2, 0], sizes = [1, 256], strides = [1, 1]} : vector<9x256xf32> to vector<1x256xf32>
    %196 = vector.broadcast %195 : vector<1x256xf32> to vector<16x256xf32>
    %197 = arith.mulf %194, %196 : vector<16x256xf32>
    %c4_i32 = arith.constant 4 : i32
    %198 = tpu.dynamic_rotate %183 by %c4_i32 dim 1 : vector<16x256xf32>, i32 -> vector<16x256xf32>
    %199 = vector.extract_strided_slice %7 {offsets = [3, 0], sizes = [1, 256], strides = [1, 1]} : vector<9x256xf32> to vector<1x256xf32>
    %200 = vector.broadcast %199 : vector<1x256xf32> to vector<16x256xf32>
    %201 = arith.mulf %198, %200 : vector<16x256xf32>
    %c252_i32 = arith.constant 252 : i32
    %202 = tpu.dynamic_rotate %183 by %c252_i32 dim 1 : vector<16x256xf32>, i32 -> vector<16x256xf32>
    %203 = vector.extract_strided_slice %7 {offsets = [5, 0], sizes = [1, 256], strides = [1, 1]} : vector<9x256xf32> to vector<1x256xf32>
    %204 = vector.broadcast %203 : vector<1x256xf32> to vector<16x256xf32>
    %205 = arith.mulf %202, %204 : vector<16x256xf32>
    %c196_i32 = arith.constant 196 : i32
    %206 = tpu.dynamic_rotate %183 by %c196_i32 dim 1 : vector<16x256xf32>, i32 -> vector<16x256xf32>
    %207 = vector.extract_strided_slice %7 {offsets = [6, 0], sizes = [1, 256], strides = [1, 1]} : vector<9x256xf32> to vector<1x256xf32>
    %208 = vector.broadcast %207 : vector<1x256xf32> to vector<16x256xf32>
    %209 = arith.mulf %206, %208 : vector<16x256xf32>
    %c192_i32 = arith.constant 192 : i32
    %210 = tpu.dynamic_rotate %183 by %c192_i32 dim 1 : vector<16x256xf32>, i32 -> vector<16x256xf32>
    %211 = vector.extract_strided_slice %7 {offsets = [7, 0], sizes = [1, 256], strides = [1, 1]} : vector<9x256xf32> to vector<1x256xf32>
    %212 = vector.broadcast %211 : vector<1x256xf32> to vector<16x256xf32>
    %213 = arith.mulf %210, %212 : vector<16x256xf32>
    %c188_i32 = arith.constant 188 : i32
    %214 = tpu.dynamic_rotate %183 by %c188_i32 dim 1 : vector<16x256xf32>, i32 -> vector<16x256xf32>
    %215 = vector.extract_strided_slice %7 {offsets = [8, 0], sizes = [1, 256], strides = [1, 1]} : vector<9x256xf32> to vector<1x256xf32>
    %216 = vector.broadcast %215 : vector<1x256xf32> to vector<16x256xf32>
    %217 = arith.mulf %214, %216 : vector<16x256xf32>
    %218 = tpu.concatenate %189, %193, %197, %201, %183, %205, %209, %213, %217 in 0 : vector<16x256xf32>, vector<16x256xf32>, vector<16x256xf32>, vector<16x256xf32>, vector<16x256xf32>, vector<16x256xf32>, vector<16x256xf32>, vector<16x256xf32>, vector<16x256xf32> -> vector<144x256xf32>
    %cst_55 = arith.constant dense<0.000000e+00> : vector<32x256xf32>
    %219 = tpu.matmul %184, %218, %cst_55 {dimension_numbers = #tpu.dot_dimension_numbers<[1], [0], [0], [1], [0, 0, 1, 1], [], []>} : vector<32x144xf32>, vector<144x256xf32>, vector<32x256xf32> -> vector<32x256xf32>
    %220 = vector.broadcast %185 : vector<32x1xf32> to vector<32x256xf32>
    %221 = arith.addf %219, %220 : vector<32x256xf32>
    %cst_56 = arith.constant 0.000000e+00 : f32
    %222 = vector.broadcast %cst_56 : f32 to vector<32x256xf32>
    %223 = arith.maximumf %221, %222 : vector<32x256xf32>
    %c0_57 = arith.constant 0 : index
    %c896 = arith.constant 896 : index
    %224 = vector.load %arg2[%c0_57, %c896] : memref<32x2560xf32, #tpu.memory_space<vmem>>, vector<32x288xf32>
    %c0_58 = arith.constant 0 : index
    %c1184 = arith.constant 1184 : index
    %225 = vector.load %arg2[%c0_58, %c1184] : memref<32x2560xf32, #tpu.memory_space<vmem>>, vector<32x1xf32>
    %c68_i32_59 = arith.constant 68 : i32
    %226 = tpu.dynamic_rotate %223 by %c68_i32_59 dim 1 : vector<32x256xf32>, i32 -> vector<32x256xf32>
    %227 = vector.extract_strided_slice %7 {offsets = [0, 0], sizes = [1, 256], strides = [1, 1]} : vector<9x256xf32> to vector<1x256xf32>
    %228 = vector.broadcast %227 : vector<1x256xf32> to vector<32x256xf32>
    %229 = arith.mulf %226, %228 : vector<32x256xf32>
    %c64_i32_60 = arith.constant 64 : i32
    %230 = tpu.dynamic_rotate %223 by %c64_i32_60 dim 1 : vector<32x256xf32>, i32 -> vector<32x256xf32>
    %231 = vector.extract_strided_slice %7 {offsets = [1, 0], sizes = [1, 256], strides = [1, 1]} : vector<9x256xf32> to vector<1x256xf32>
    %232 = vector.broadcast %231 : vector<1x256xf32> to vector<32x256xf32>
    %233 = arith.mulf %230, %232 : vector<32x256xf32>
    %c60_i32_61 = arith.constant 60 : i32
    %234 = tpu.dynamic_rotate %223 by %c60_i32_61 dim 1 : vector<32x256xf32>, i32 -> vector<32x256xf32>
    %235 = vector.extract_strided_slice %7 {offsets = [2, 0], sizes = [1, 256], strides = [1, 1]} : vector<9x256xf32> to vector<1x256xf32>
    %236 = vector.broadcast %235 : vector<1x256xf32> to vector<32x256xf32>
    %237 = arith.mulf %234, %236 : vector<32x256xf32>
    %c4_i32_62 = arith.constant 4 : i32
    %238 = tpu.dynamic_rotate %223 by %c4_i32_62 dim 1 : vector<32x256xf32>, i32 -> vector<32x256xf32>
    %239 = vector.extract_strided_slice %7 {offsets = [3, 0], sizes = [1, 256], strides = [1, 1]} : vector<9x256xf32> to vector<1x256xf32>
    %240 = vector.broadcast %239 : vector<1x256xf32> to vector<32x256xf32>
    %241 = arith.mulf %238, %240 : vector<32x256xf32>
    %c252_i32_63 = arith.constant 252 : i32
    %242 = tpu.dynamic_rotate %223 by %c252_i32_63 dim 1 : vector<32x256xf32>, i32 -> vector<32x256xf32>
    %243 = vector.extract_strided_slice %7 {offsets = [5, 0], sizes = [1, 256], strides = [1, 1]} : vector<9x256xf32> to vector<1x256xf32>
    %244 = vector.broadcast %243 : vector<1x256xf32> to vector<32x256xf32>
    %245 = arith.mulf %242, %244 : vector<32x256xf32>
    %c196_i32_64 = arith.constant 196 : i32
    %246 = tpu.dynamic_rotate %223 by %c196_i32_64 dim 1 : vector<32x256xf32>, i32 -> vector<32x256xf32>
    %247 = vector.extract_strided_slice %7 {offsets = [6, 0], sizes = [1, 256], strides = [1, 1]} : vector<9x256xf32> to vector<1x256xf32>
    %248 = vector.broadcast %247 : vector<1x256xf32> to vector<32x256xf32>
    %249 = arith.mulf %246, %248 : vector<32x256xf32>
    %c192_i32_65 = arith.constant 192 : i32
    %250 = tpu.dynamic_rotate %223 by %c192_i32_65 dim 1 : vector<32x256xf32>, i32 -> vector<32x256xf32>
    %251 = vector.extract_strided_slice %7 {offsets = [7, 0], sizes = [1, 256], strides = [1, 1]} : vector<9x256xf32> to vector<1x256xf32>
    %252 = vector.broadcast %251 : vector<1x256xf32> to vector<32x256xf32>
    %253 = arith.mulf %250, %252 : vector<32x256xf32>
    %c188_i32_66 = arith.constant 188 : i32
    %254 = tpu.dynamic_rotate %223 by %c188_i32_66 dim 1 : vector<32x256xf32>, i32 -> vector<32x256xf32>
    %255 = vector.extract_strided_slice %7 {offsets = [8, 0], sizes = [1, 256], strides = [1, 1]} : vector<9x256xf32> to vector<1x256xf32>
    %256 = vector.broadcast %255 : vector<1x256xf32> to vector<32x256xf32>
    %257 = arith.mulf %254, %256 : vector<32x256xf32>
    %258 = tpu.concatenate %229, %233, %237, %241, %223, %245, %249, %253, %257 in 0 : vector<32x256xf32>, vector<32x256xf32>, vector<32x256xf32>, vector<32x256xf32>, vector<32x256xf32>, vector<32x256xf32>, vector<32x256xf32>, vector<32x256xf32>, vector<32x256xf32> -> vector<288x256xf32>
    %cst_67 = arith.constant dense<0.000000e+00> : vector<32x256xf32>
    %259 = tpu.matmul %224, %258, %cst_67 {dimension_numbers = #tpu.dot_dimension_numbers<[1], [0], [0], [1], [0, 0, 1, 1], [], []>} : vector<32x288xf32>, vector<288x256xf32>, vector<32x256xf32> -> vector<32x256xf32>
    %260 = vector.broadcast %225 : vector<32x1xf32> to vector<32x256xf32>
    %261 = arith.addf %259, %260 : vector<32x256xf32>
    %cst_68 = arith.constant 0.000000e+00 : f32
    %262 = vector.broadcast %cst_68 : f32 to vector<32x256xf32>
    %263 = arith.maximumf %261, %262 : vector<32x256xf32>
    %c32_i32_69 = arith.constant 32 : i32
    %264 = tpu.dynamic_rotate %263 by %c32_i32_69 dim 1 : vector<32x256xf32>, i32 -> vector<32x256xf32>
    %c2_i32_70 = arith.constant 2 : i32
    %265 = tpu.dynamic_rotate %263 by %c2_i32_70 dim 1 : vector<32x256xf32>, i32 -> vector<32x256xf32>
    %c34_i32_71 = arith.constant 34 : i32
    %266 = tpu.dynamic_rotate %263 by %c34_i32_71 dim 1 : vector<32x256xf32>, i32 -> vector<32x256xf32>
    %267 = vector.extract_strided_slice %11 {offsets = [0, 0], sizes = [1, 256], strides = [1, 1]} : vector<4x256xf32> to vector<1x256xf32>
    %268 = vector.broadcast %267 : vector<1x256xf32> to vector<32x256xf32>
    %269 = arith.mulf %263, %268 : vector<32x256xf32>
    %270 = vector.extract_strided_slice %11 {offsets = [1, 0], sizes = [1, 256], strides = [1, 1]} : vector<4x256xf32> to vector<1x256xf32>
    %271 = vector.broadcast %270 : vector<1x256xf32> to vector<32x256xf32>
    %272 = arith.mulf %264, %271 : vector<32x256xf32>
    %273 = arith.addf %269, %272 : vector<32x256xf32>
    %274 = vector.extract_strided_slice %11 {offsets = [2, 0], sizes = [1, 256], strides = [1, 1]} : vector<4x256xf32> to vector<1x256xf32>
    %275 = vector.broadcast %274 : vector<1x256xf32> to vector<32x256xf32>
    %276 = arith.mulf %265, %275 : vector<32x256xf32>
    %277 = arith.addf %273, %276 : vector<32x256xf32>
    %278 = vector.extract_strided_slice %11 {offsets = [3, 0], sizes = [1, 256], strides = [1, 1]} : vector<4x256xf32> to vector<1x256xf32>
    %279 = vector.broadcast %278 : vector<1x256xf32> to vector<32x256xf32>
    %280 = arith.mulf %266, %279 : vector<32x256xf32>
    %281 = arith.addf %277, %280 : vector<32x256xf32>
    %282 = tpu.concatenate %281, %177 in 0 : vector<32x256xf32>, vector<16x256xf32> -> vector<48x256xf32>
    %c0_72 = arith.constant 0 : index
    %c1280 = arith.constant 1280 : index
    %283 = vector.load %arg2[%c0_72, %c1280] : memref<32x2560xf32, #tpu.memory_space<vmem>>, vector<16x432xf32>
    %c0_73 = arith.constant 0 : index
    %c1712 = arith.constant 1712 : index
    %284 = vector.load %arg2[%c0_73, %c1712] : memref<32x2560xf32, #tpu.memory_space<vmem>>, vector<16x1xf32>
    %c34_i32_74 = arith.constant 34 : i32
    %285 = tpu.dynamic_rotate %282 by %c34_i32_74 dim 1 : vector<48x256xf32>, i32 -> vector<48x256xf32>
    %286 = vector.extract_strided_slice %5 {offsets = [0, 0], sizes = [1, 256], strides = [1, 1]} : vector<9x256xf32> to vector<1x256xf32>
    %287 = vector.broadcast %286 : vector<1x256xf32> to vector<48x256xf32>
    %288 = arith.mulf %285, %287 : vector<48x256xf32>
    %c32_i32_75 = arith.constant 32 : i32
    %289 = tpu.dynamic_rotate %282 by %c32_i32_75 dim 1 : vector<48x256xf32>, i32 -> vector<48x256xf32>
    %290 = vector.extract_strided_slice %5 {offsets = [1, 0], sizes = [1, 256], strides = [1, 1]} : vector<9x256xf32> to vector<1x256xf32>
    %291 = vector.broadcast %290 : vector<1x256xf32> to vector<48x256xf32>
    %292 = arith.mulf %289, %291 : vector<48x256xf32>
    %c30_i32_76 = arith.constant 30 : i32
    %293 = tpu.dynamic_rotate %282 by %c30_i32_76 dim 1 : vector<48x256xf32>, i32 -> vector<48x256xf32>
    %294 = vector.extract_strided_slice %5 {offsets = [2, 0], sizes = [1, 256], strides = [1, 1]} : vector<9x256xf32> to vector<1x256xf32>
    %295 = vector.broadcast %294 : vector<1x256xf32> to vector<48x256xf32>
    %296 = arith.mulf %293, %295 : vector<48x256xf32>
    %c2_i32_77 = arith.constant 2 : i32
    %297 = tpu.dynamic_rotate %282 by %c2_i32_77 dim 1 : vector<48x256xf32>, i32 -> vector<48x256xf32>
    %298 = vector.extract_strided_slice %5 {offsets = [3, 0], sizes = [1, 256], strides = [1, 1]} : vector<9x256xf32> to vector<1x256xf32>
    %299 = vector.broadcast %298 : vector<1x256xf32> to vector<48x256xf32>
    %300 = arith.mulf %297, %299 : vector<48x256xf32>
    %c254_i32_78 = arith.constant 254 : i32
    %301 = tpu.dynamic_rotate %282 by %c254_i32_78 dim 1 : vector<48x256xf32>, i32 -> vector<48x256xf32>
    %302 = vector.extract_strided_slice %5 {offsets = [5, 0], sizes = [1, 256], strides = [1, 1]} : vector<9x256xf32> to vector<1x256xf32>
    %303 = vector.broadcast %302 : vector<1x256xf32> to vector<48x256xf32>
    %304 = arith.mulf %301, %303 : vector<48x256xf32>
    %c226_i32_79 = arith.constant 226 : i32
    %305 = tpu.dynamic_rotate %282 by %c226_i32_79 dim 1 : vector<48x256xf32>, i32 -> vector<48x256xf32>
    %306 = vector.extract_strided_slice %5 {offsets = [6, 0], sizes = [1, 256], strides = [1, 1]} : vector<9x256xf32> to vector<1x256xf32>
    %307 = vector.broadcast %306 : vector<1x256xf32> to vector<48x256xf32>
    %308 = arith.mulf %305, %307 : vector<48x256xf32>
    %c224_i32_80 = arith.constant 224 : i32
    %309 = tpu.dynamic_rotate %282 by %c224_i32_80 dim 1 : vector<48x256xf32>, i32 -> vector<48x256xf32>
    %310 = vector.extract_strided_slice %5 {offsets = [7, 0], sizes = [1, 256], strides = [1, 1]} : vector<9x256xf32> to vector<1x256xf32>
    %311 = vector.broadcast %310 : vector<1x256xf32> to vector<48x256xf32>
    %312 = arith.mulf %309, %311 : vector<48x256xf32>
    %c222_i32_81 = arith.constant 222 : i32
    %313 = tpu.dynamic_rotate %282 by %c222_i32_81 dim 1 : vector<48x256xf32>, i32 -> vector<48x256xf32>
    %314 = vector.extract_strided_slice %5 {offsets = [8, 0], sizes = [1, 256], strides = [1, 1]} : vector<9x256xf32> to vector<1x256xf32>
    %315 = vector.broadcast %314 : vector<1x256xf32> to vector<48x256xf32>
    %316 = arith.mulf %313, %315 : vector<48x256xf32>
    %317 = tpu.concatenate %288, %292, %296, %300, %282, %304, %308, %312, %316 in 0 : vector<48x256xf32>, vector<48x256xf32>, vector<48x256xf32>, vector<48x256xf32>, vector<48x256xf32>, vector<48x256xf32>, vector<48x256xf32>, vector<48x256xf32>, vector<48x256xf32> -> vector<432x256xf32>
    %cst_82 = arith.constant dense<0.000000e+00> : vector<16x256xf32>
    %318 = tpu.matmul %283, %317, %cst_82 {dimension_numbers = #tpu.dot_dimension_numbers<[1], [0], [0], [1], [0, 0, 1, 1], [], []>} : vector<16x432xf32>, vector<432x256xf32>, vector<16x256xf32> -> vector<16x256xf32>
    %319 = vector.broadcast %284 : vector<16x1xf32> to vector<16x256xf32>
    %320 = arith.addf %318, %319 : vector<16x256xf32>
    %cst_83 = arith.constant 0.000000e+00 : f32
    %321 = vector.broadcast %cst_83 : f32 to vector<16x256xf32>
    %322 = arith.maximumf %320, %321 : vector<16x256xf32>
    %c0_84 = arith.constant 0 : index
    %c1792 = arith.constant 1792 : index
    %323 = vector.load %arg2[%c0_84, %c1792] : memref<32x2560xf32, #tpu.memory_space<vmem>>, vector<16x144xf32>
    %c0_85 = arith.constant 0 : index
    %c1936 = arith.constant 1936 : index
    %324 = vector.load %arg2[%c0_85, %c1936] : memref<32x2560xf32, #tpu.memory_space<vmem>>, vector<16x1xf32>
    %c34_i32_86 = arith.constant 34 : i32
    %325 = tpu.dynamic_rotate %322 by %c34_i32_86 dim 1 : vector<16x256xf32>, i32 -> vector<16x256xf32>
    %326 = vector.extract_strided_slice %5 {offsets = [0, 0], sizes = [1, 256], strides = [1, 1]} : vector<9x256xf32> to vector<1x256xf32>
    %327 = vector.broadcast %326 : vector<1x256xf32> to vector<16x256xf32>
    %328 = arith.mulf %325, %327 : vector<16x256xf32>
    %c32_i32_87 = arith.constant 32 : i32
    %329 = tpu.dynamic_rotate %322 by %c32_i32_87 dim 1 : vector<16x256xf32>, i32 -> vector<16x256xf32>
    %330 = vector.extract_strided_slice %5 {offsets = [1, 0], sizes = [1, 256], strides = [1, 1]} : vector<9x256xf32> to vector<1x256xf32>
    %331 = vector.broadcast %330 : vector<1x256xf32> to vector<16x256xf32>
    %332 = arith.mulf %329, %331 : vector<16x256xf32>
    %c30_i32_88 = arith.constant 30 : i32
    %333 = tpu.dynamic_rotate %322 by %c30_i32_88 dim 1 : vector<16x256xf32>, i32 -> vector<16x256xf32>
    %334 = vector.extract_strided_slice %5 {offsets = [2, 0], sizes = [1, 256], strides = [1, 1]} : vector<9x256xf32> to vector<1x256xf32>
    %335 = vector.broadcast %334 : vector<1x256xf32> to vector<16x256xf32>
    %336 = arith.mulf %333, %335 : vector<16x256xf32>
    %c2_i32_89 = arith.constant 2 : i32
    %337 = tpu.dynamic_rotate %322 by %c2_i32_89 dim 1 : vector<16x256xf32>, i32 -> vector<16x256xf32>
    %338 = vector.extract_strided_slice %5 {offsets = [3, 0], sizes = [1, 256], strides = [1, 1]} : vector<9x256xf32> to vector<1x256xf32>
    %339 = vector.broadcast %338 : vector<1x256xf32> to vector<16x256xf32>
    %340 = arith.mulf %337, %339 : vector<16x256xf32>
    %c254_i32_90 = arith.constant 254 : i32
    %341 = tpu.dynamic_rotate %322 by %c254_i32_90 dim 1 : vector<16x256xf32>, i32 -> vector<16x256xf32>
    %342 = vector.extract_strided_slice %5 {offsets = [5, 0], sizes = [1, 256], strides = [1, 1]} : vector<9x256xf32> to vector<1x256xf32>
    %343 = vector.broadcast %342 : vector<1x256xf32> to vector<16x256xf32>
    %344 = arith.mulf %341, %343 : vector<16x256xf32>
    %c226_i32_91 = arith.constant 226 : i32
    %345 = tpu.dynamic_rotate %322 by %c226_i32_91 dim 1 : vector<16x256xf32>, i32 -> vector<16x256xf32>
    %346 = vector.extract_strided_slice %5 {offsets = [6, 0], sizes = [1, 256], strides = [1, 1]} : vector<9x256xf32> to vector<1x256xf32>
    %347 = vector.broadcast %346 : vector<1x256xf32> to vector<16x256xf32>
    %348 = arith.mulf %345, %347 : vector<16x256xf32>
    %c224_i32_92 = arith.constant 224 : i32
    %349 = tpu.dynamic_rotate %322 by %c224_i32_92 dim 1 : vector<16x256xf32>, i32 -> vector<16x256xf32>
    %350 = vector.extract_strided_slice %5 {offsets = [7, 0], sizes = [1, 256], strides = [1, 1]} : vector<9x256xf32> to vector<1x256xf32>
    %351 = vector.broadcast %350 : vector<1x256xf32> to vector<16x256xf32>
    %352 = arith.mulf %349, %351 : vector<16x256xf32>
    %c222_i32_93 = arith.constant 222 : i32
    %353 = tpu.dynamic_rotate %322 by %c222_i32_93 dim 1 : vector<16x256xf32>, i32 -> vector<16x256xf32>
    %354 = vector.extract_strided_slice %5 {offsets = [8, 0], sizes = [1, 256], strides = [1, 1]} : vector<9x256xf32> to vector<1x256xf32>
    %355 = vector.broadcast %354 : vector<1x256xf32> to vector<16x256xf32>
    %356 = arith.mulf %353, %355 : vector<16x256xf32>
    %357 = tpu.concatenate %328, %332, %336, %340, %322, %344, %348, %352, %356 in 0 : vector<16x256xf32>, vector<16x256xf32>, vector<16x256xf32>, vector<16x256xf32>, vector<16x256xf32>, vector<16x256xf32>, vector<16x256xf32>, vector<16x256xf32>, vector<16x256xf32> -> vector<144x256xf32>
    %cst_94 = arith.constant dense<0.000000e+00> : vector<16x256xf32>
    %358 = tpu.matmul %323, %357, %cst_94 {dimension_numbers = #tpu.dot_dimension_numbers<[1], [0], [0], [1], [0, 0, 1, 1], [], []>} : vector<16x144xf32>, vector<144x256xf32>, vector<16x256xf32> -> vector<16x256xf32>
    %359 = vector.broadcast %324 : vector<16x1xf32> to vector<16x256xf32>
    %360 = arith.addf %358, %359 : vector<16x256xf32>
    %cst_95 = arith.constant 0.000000e+00 : f32
    %361 = vector.broadcast %cst_95 : f32 to vector<16x256xf32>
    %362 = arith.maximumf %360, %361 : vector<16x256xf32>
    %c16_i32_96 = arith.constant 16 : i32
    %363 = tpu.dynamic_rotate %362 by %c16_i32_96 dim 1 : vector<16x256xf32>, i32 -> vector<16x256xf32>
    %c1_i32_97 = arith.constant 1 : i32
    %364 = tpu.dynamic_rotate %362 by %c1_i32_97 dim 1 : vector<16x256xf32>, i32 -> vector<16x256xf32>
    %c17_i32_98 = arith.constant 17 : i32
    %365 = tpu.dynamic_rotate %362 by %c17_i32_98 dim 1 : vector<16x256xf32>, i32 -> vector<16x256xf32>
    %366 = vector.extract_strided_slice %9 {offsets = [0, 0], sizes = [1, 256], strides = [1, 1]} : vector<4x256xf32> to vector<1x256xf32>
    %367 = vector.broadcast %366 : vector<1x256xf32> to vector<16x256xf32>
    %368 = arith.mulf %362, %367 : vector<16x256xf32>
    %369 = vector.extract_strided_slice %9 {offsets = [1, 0], sizes = [1, 256], strides = [1, 1]} : vector<4x256xf32> to vector<1x256xf32>
    %370 = vector.broadcast %369 : vector<1x256xf32> to vector<16x256xf32>
    %371 = arith.mulf %363, %370 : vector<16x256xf32>
    %372 = arith.addf %368, %371 : vector<16x256xf32>
    %373 = vector.extract_strided_slice %9 {offsets = [2, 0], sizes = [1, 256], strides = [1, 1]} : vector<4x256xf32> to vector<1x256xf32>
    %374 = vector.broadcast %373 : vector<1x256xf32> to vector<16x256xf32>
    %375 = arith.mulf %364, %374 : vector<16x256xf32>
    %376 = arith.addf %372, %375 : vector<16x256xf32>
    %377 = vector.extract_strided_slice %9 {offsets = [3, 0], sizes = [1, 256], strides = [1, 1]} : vector<4x256xf32> to vector<1x256xf32>
    %378 = vector.broadcast %377 : vector<1x256xf32> to vector<16x256xf32>
    %379 = arith.mulf %365, %378 : vector<16x256xf32>
    %380 = arith.addf %376, %379 : vector<16x256xf32>
    %381 = tpu.concatenate %380, %91 in 0 : vector<16x256xf32>, vector<8x256xf32> -> vector<24x256xf32>
    %c0_99 = arith.constant 0 : index
    %c2048 = arith.constant 2048 : index
    %382 = vector.load %arg2[%c0_99, %c2048] : memref<32x2560xf32, #tpu.memory_space<vmem>>, vector<8x216xf32>
    %c0_100 = arith.constant 0 : index
    %c2264 = arith.constant 2264 : index
    %383 = vector.load %arg2[%c0_100, %c2264] : memref<32x2560xf32, #tpu.memory_space<vmem>>, vector<8x1xf32>
    %c17_i32_101 = arith.constant 17 : i32
    %384 = tpu.dynamic_rotate %381 by %c17_i32_101 dim 1 : vector<24x256xf32>, i32 -> vector<24x256xf32>
    %385 = vector.extract_strided_slice %3 {offsets = [0, 0], sizes = [1, 256], strides = [1, 1]} : vector<9x256xf32> to vector<1x256xf32>
    %386 = vector.broadcast %385 : vector<1x256xf32> to vector<24x256xf32>
    %387 = arith.mulf %384, %386 : vector<24x256xf32>
    %c16_i32_102 = arith.constant 16 : i32
    %388 = tpu.dynamic_rotate %381 by %c16_i32_102 dim 1 : vector<24x256xf32>, i32 -> vector<24x256xf32>
    %389 = vector.extract_strided_slice %3 {offsets = [1, 0], sizes = [1, 256], strides = [1, 1]} : vector<9x256xf32> to vector<1x256xf32>
    %390 = vector.broadcast %389 : vector<1x256xf32> to vector<24x256xf32>
    %391 = arith.mulf %388, %390 : vector<24x256xf32>
    %c15_i32_103 = arith.constant 15 : i32
    %392 = tpu.dynamic_rotate %381 by %c15_i32_103 dim 1 : vector<24x256xf32>, i32 -> vector<24x256xf32>
    %393 = vector.extract_strided_slice %3 {offsets = [2, 0], sizes = [1, 256], strides = [1, 1]} : vector<9x256xf32> to vector<1x256xf32>
    %394 = vector.broadcast %393 : vector<1x256xf32> to vector<24x256xf32>
    %395 = arith.mulf %392, %394 : vector<24x256xf32>
    %c1_i32_104 = arith.constant 1 : i32
    %396 = tpu.dynamic_rotate %381 by %c1_i32_104 dim 1 : vector<24x256xf32>, i32 -> vector<24x256xf32>
    %397 = vector.extract_strided_slice %3 {offsets = [3, 0], sizes = [1, 256], strides = [1, 1]} : vector<9x256xf32> to vector<1x256xf32>
    %398 = vector.broadcast %397 : vector<1x256xf32> to vector<24x256xf32>
    %399 = arith.mulf %396, %398 : vector<24x256xf32>
    %c255_i32_105 = arith.constant 255 : i32
    %400 = tpu.dynamic_rotate %381 by %c255_i32_105 dim 1 : vector<24x256xf32>, i32 -> vector<24x256xf32>
    %401 = vector.extract_strided_slice %3 {offsets = [5, 0], sizes = [1, 256], strides = [1, 1]} : vector<9x256xf32> to vector<1x256xf32>
    %402 = vector.broadcast %401 : vector<1x256xf32> to vector<24x256xf32>
    %403 = arith.mulf %400, %402 : vector<24x256xf32>
    %c241_i32_106 = arith.constant 241 : i32
    %404 = tpu.dynamic_rotate %381 by %c241_i32_106 dim 1 : vector<24x256xf32>, i32 -> vector<24x256xf32>
    %405 = vector.extract_strided_slice %3 {offsets = [6, 0], sizes = [1, 256], strides = [1, 1]} : vector<9x256xf32> to vector<1x256xf32>
    %406 = vector.broadcast %405 : vector<1x256xf32> to vector<24x256xf32>
    %407 = arith.mulf %404, %406 : vector<24x256xf32>
    %c240_i32_107 = arith.constant 240 : i32
    %408 = tpu.dynamic_rotate %381 by %c240_i32_107 dim 1 : vector<24x256xf32>, i32 -> vector<24x256xf32>
    %409 = vector.extract_strided_slice %3 {offsets = [7, 0], sizes = [1, 256], strides = [1, 1]} : vector<9x256xf32> to vector<1x256xf32>
    %410 = vector.broadcast %409 : vector<1x256xf32> to vector<24x256xf32>
    %411 = arith.mulf %408, %410 : vector<24x256xf32>
    %c239_i32_108 = arith.constant 239 : i32
    %412 = tpu.dynamic_rotate %381 by %c239_i32_108 dim 1 : vector<24x256xf32>, i32 -> vector<24x256xf32>
    %413 = vector.extract_strided_slice %3 {offsets = [8, 0], sizes = [1, 256], strides = [1, 1]} : vector<9x256xf32> to vector<1x256xf32>
    %414 = vector.broadcast %413 : vector<1x256xf32> to vector<24x256xf32>
    %415 = arith.mulf %412, %414 : vector<24x256xf32>
    %416 = tpu.concatenate %387, %391, %395, %399, %381, %403, %407, %411, %415 in 0 : vector<24x256xf32>, vector<24x256xf32>, vector<24x256xf32>, vector<24x256xf32>, vector<24x256xf32>, vector<24x256xf32>, vector<24x256xf32>, vector<24x256xf32>, vector<24x256xf32> -> vector<216x256xf32>
    %cst_109 = arith.constant dense<0.000000e+00> : vector<8x256xf32>
    %417 = tpu.matmul %382, %416, %cst_109 {dimension_numbers = #tpu.dot_dimension_numbers<[1], [0], [0], [1], [0, 0, 1, 1], [], []>} : vector<8x216xf32>, vector<216x256xf32>, vector<8x256xf32> -> vector<8x256xf32>
    %418 = vector.broadcast %383 : vector<8x1xf32> to vector<8x256xf32>
    %419 = arith.addf %417, %418 : vector<8x256xf32>
    %cst_110 = arith.constant 0.000000e+00 : f32
    %420 = vector.broadcast %cst_110 : f32 to vector<8x256xf32>
    %421 = arith.maximumf %419, %420 : vector<8x256xf32>
    %c0_111 = arith.constant 0 : index
    %c2304 = arith.constant 2304 : index
    %422 = vector.load %arg2[%c0_111, %c2304] : memref<32x2560xf32, #tpu.memory_space<vmem>>, vector<8x72xf32>
    %c0_112 = arith.constant 0 : index
    %c2376 = arith.constant 2376 : index
    %423 = vector.load %arg2[%c0_112, %c2376] : memref<32x2560xf32, #tpu.memory_space<vmem>>, vector<8x1xf32>
    %c17_i32_113 = arith.constant 17 : i32
    %424 = tpu.dynamic_rotate %421 by %c17_i32_113 dim 1 : vector<8x256xf32>, i32 -> vector<8x256xf32>
    %425 = vector.extract_strided_slice %3 {offsets = [0, 0], sizes = [1, 256], strides = [1, 1]} : vector<9x256xf32> to vector<1x256xf32>
    %426 = vector.broadcast %425 : vector<1x256xf32> to vector<8x256xf32>
    %427 = arith.mulf %424, %426 : vector<8x256xf32>
    %c16_i32_114 = arith.constant 16 : i32
    %428 = tpu.dynamic_rotate %421 by %c16_i32_114 dim 1 : vector<8x256xf32>, i32 -> vector<8x256xf32>
    %429 = vector.extract_strided_slice %3 {offsets = [1, 0], sizes = [1, 256], strides = [1, 1]} : vector<9x256xf32> to vector<1x256xf32>
    %430 = vector.broadcast %429 : vector<1x256xf32> to vector<8x256xf32>
    %431 = arith.mulf %428, %430 : vector<8x256xf32>
    %c15_i32_115 = arith.constant 15 : i32
    %432 = tpu.dynamic_rotate %421 by %c15_i32_115 dim 1 : vector<8x256xf32>, i32 -> vector<8x256xf32>
    %433 = vector.extract_strided_slice %3 {offsets = [2, 0], sizes = [1, 256], strides = [1, 1]} : vector<9x256xf32> to vector<1x256xf32>
    %434 = vector.broadcast %433 : vector<1x256xf32> to vector<8x256xf32>
    %435 = arith.mulf %432, %434 : vector<8x256xf32>
    %c1_i32_116 = arith.constant 1 : i32
    %436 = tpu.dynamic_rotate %421 by %c1_i32_116 dim 1 : vector<8x256xf32>, i32 -> vector<8x256xf32>
    %437 = vector.extract_strided_slice %3 {offsets = [3, 0], sizes = [1, 256], strides = [1, 1]} : vector<9x256xf32> to vector<1x256xf32>
    %438 = vector.broadcast %437 : vector<1x256xf32> to vector<8x256xf32>
    %439 = arith.mulf %436, %438 : vector<8x256xf32>
    %c255_i32_117 = arith.constant 255 : i32
    %440 = tpu.dynamic_rotate %421 by %c255_i32_117 dim 1 : vector<8x256xf32>, i32 -> vector<8x256xf32>
    %441 = vector.extract_strided_slice %3 {offsets = [5, 0], sizes = [1, 256], strides = [1, 1]} : vector<9x256xf32> to vector<1x256xf32>
    %442 = vector.broadcast %441 : vector<1x256xf32> to vector<8x256xf32>
    %443 = arith.mulf %440, %442 : vector<8x256xf32>
    %c241_i32_118 = arith.constant 241 : i32
    %444 = tpu.dynamic_rotate %421 by %c241_i32_118 dim 1 : vector<8x256xf32>, i32 -> vector<8x256xf32>
    %445 = vector.extract_strided_slice %3 {offsets = [6, 0], sizes = [1, 256], strides = [1, 1]} : vector<9x256xf32> to vector<1x256xf32>
    %446 = vector.broadcast %445 : vector<1x256xf32> to vector<8x256xf32>
    %447 = arith.mulf %444, %446 : vector<8x256xf32>
    %c240_i32_119 = arith.constant 240 : i32
    %448 = tpu.dynamic_rotate %421 by %c240_i32_119 dim 1 : vector<8x256xf32>, i32 -> vector<8x256xf32>
    %449 = vector.extract_strided_slice %3 {offsets = [7, 0], sizes = [1, 256], strides = [1, 1]} : vector<9x256xf32> to vector<1x256xf32>
    %450 = vector.broadcast %449 : vector<1x256xf32> to vector<8x256xf32>
    %451 = arith.mulf %448, %450 : vector<8x256xf32>
    %c239_i32_120 = arith.constant 239 : i32
    %452 = tpu.dynamic_rotate %421 by %c239_i32_120 dim 1 : vector<8x256xf32>, i32 -> vector<8x256xf32>
    %453 = vector.extract_strided_slice %3 {offsets = [8, 0], sizes = [1, 256], strides = [1, 1]} : vector<9x256xf32> to vector<1x256xf32>
    %454 = vector.broadcast %453 : vector<1x256xf32> to vector<8x256xf32>
    %455 = arith.mulf %452, %454 : vector<8x256xf32>
    %456 = tpu.concatenate %427, %431, %435, %439, %421, %443, %447, %451, %455 in 0 : vector<8x256xf32>, vector<8x256xf32>, vector<8x256xf32>, vector<8x256xf32>, vector<8x256xf32>, vector<8x256xf32>, vector<8x256xf32>, vector<8x256xf32>, vector<8x256xf32> -> vector<72x256xf32>
    %cst_121 = arith.constant dense<0.000000e+00> : vector<8x256xf32>
    %457 = tpu.matmul %422, %456, %cst_121 {dimension_numbers = #tpu.dot_dimension_numbers<[1], [0], [0], [1], [0, 0, 1, 1], [], []>} : vector<8x72xf32>, vector<72x256xf32>, vector<8x256xf32> -> vector<8x256xf32>
    %458 = vector.broadcast %423 : vector<8x1xf32> to vector<8x256xf32>
    %459 = arith.addf %457, %458 : vector<8x256xf32>
    %cst_122 = arith.constant 0.000000e+00 : f32
    %460 = vector.broadcast %cst_122 : f32 to vector<8x256xf32>
    %461 = arith.maximumf %459, %460 : vector<8x256xf32>
    %c0_123 = arith.constant 0 : index
    %c2432 = arith.constant 2432 : index
    %462 = vector.load %arg2[%c0_123, %c2432] : memref<32x2560xf32, #tpu.memory_space<vmem>>, vector<3x8xf32>
    %c0_124 = arith.constant 0 : index
    %c2440 = arith.constant 2440 : index
    %463 = vector.load %arg2[%c0_124, %c2440] : memref<32x2560xf32, #tpu.memory_space<vmem>>, vector<3x1xf32>
    %cst_125 = arith.constant dense<0.000000e+00> : vector<3x256xf32>
    %464 = tpu.matmul %462, %461, %cst_125 {dimension_numbers = #tpu.dot_dimension_numbers<[1], [0], [0], [1], [0, 0, 1, 1], [], []>} : vector<3x8xf32>, vector<8x256xf32>, vector<3x256xf32> -> vector<3x256xf32>
    %465 = vector.broadcast %463 : vector<3x1xf32> to vector<3x256xf32>
    %466 = arith.addf %464, %465 : vector<3x256xf32>
    %467 = tpu.iota {dimensions = array<i32: 0>} : vector<3x256xi32>
    %c2_i32_126 = arith.constant 2 : i32
    %468 = vector.broadcast %c2_i32_126 : i32 to vector<3x256xi32>
    %469 = arith.cmpi eq, %467, %468 : vector<3x256xi32>
    %cst_127 = arith.constant 0.000000e+00 : f32
    %470 = vector.broadcast %cst_127 : f32 to vector<3x256xf32>
    %471 = arith.maximumf %466, %470 : vector<3x256xf32>
    %472 = arith.select %469, %471, %466 : vector<3x256xi1>, vector<3x256xf32>
    %c0_128 = arith.constant 0 : index
    %c0_129 = arith.constant 0 : index
    %c0_130 = arith.constant 0 : index
    %473 = vector.load %arg5[%c0_128, %c0_129, %c0_130] : memref<1x3x256xf32, #tpu.memory_space<vmem>>, vector<1x3x256xf32>
    %474 = vector.shape_cast %473 : vector<1x3x256xf32> to vector<3x256xf32>
    %475 = vector.shape_cast %472 : vector<3x256xf32> to vector<1x3x256xf32>
    tpu.vector_store %arg5[%c0_128, %c0_129, %c0_130], %475 {strides = array<i32>} : memref<1x3x256xf32, #tpu.memory_space<vmem>>, vector<1x3x256xf32>,
    return
  }
  func.func @transform_0(%arg0: i32) -> (i32, i32, i32) {
    %c0_i32 = arith.constant 0 : i32
    %c0_i32_0 = arith.constant 0 : i32
    %c0_i32_1 = arith.constant 0 : i32
    return %arg0, %c0_i32, %c0_i32_0 : i32, i32, i32
  }
  func.func @transform_1(%arg0: i32) -> (i32, i32) {
    %c0_i32 = arith.constant 0 : i32
    %c0_i32_0 = arith.constant 0 : i32
    %c0_i32_1 = arith.constant 0 : i32
    return %c0_i32, %c0_i32_0 : i32, i32
  }
  func.func @transform_2(%arg0: i32) -> (i32, i32, i32) {
    %c0_i32 = arith.constant 0 : i32
    %c0_i32_0 = arith.constant 0 : i32
    %c0_i32_1 = arith.constant 0 : i32
    %c0_i32_2 = arith.constant 0 : i32
    return %c0_i32, %c0_i32_0, %c0_i32_1 : i32, i32, i32
  }
  func.func @transform_3(%arg0: i32) -> (i32, i32, i32) {
    %c0_i32 = arith.constant 0 : i32
    %c0_i32_0 = arith.constant 0 : i32
    %c0_i32_1 = arith.constant 0 : i32
    %c0_i32_2 = arith.constant 0 : i32
    return %c0_i32, %c0_i32_0, %c0_i32_1 : i32, i32, i32
  }
  func.func @transform_4(%arg0: i32) -> (i32, i32, i32) {
    %c0_i32 = arith.constant 0 : i32
    %c0_i32_0 = arith.constant 0 : i32
    %c0_i32_1 = arith.constant 0 : i32
    return %arg0, %c0_i32, %c0_i32_0 : i32, i32, i32
  }
}

</mosaic_0001>

<llo_original>
// kernel: squeeze.1
$region0: #{squeeze.1}
  %s0 = inlined_call_operand.vmem [shape: f32[2,256], index: 0, kind: input, shape index: {}]
  %s1 = inlined_call_operand.hbm [shape: f32[2,16,16], index: 1, kind: output, shape index: {}]
  $region1: #{squeeze.1} parent=0
    #allocation0 [shape = 'u8[16384]{0}', space=vmem, size = 0x4000, scoped, tag = 'operand span for operand 1']
    #allocation1 [shape = 's32[1]{0}', space=sflag, size = 0x4, scoped, tag = 'scoped memory for squeeze.1']
    #allocation2 [shape = 'u8[8192]{0}', space=vmem, size = 0x2000, scoped, tag = 'scoped mem for input reshape']
    %2 = vsyncpa [#allocation1], 0
    %s4 = sshllo.u32 0, 2
    %s5 = scalar_lea.vmem %s0, 2
    %v6 = vld [vmem:[%s5] sm:%s4]
    %s7 = scalar_lea.vmem [#allocation2], 8
    %8 = vst [vmem:[%s7] sm:%s4] %v6
    %v9 = vld [vmem:[%s0] sm:%s4]
    %10 = vst [vmem:[#allocation2] sm:%s4] %v9
    %v11 = vld [vmem:[#allocation2] sm:$0x3]
    %vm12 = vcmask 130048
    %13 = vst.msk [vmem:[#allocation0] ss:$16 sm:$0x3] %vm12, %v11
    %s14 = scalar_lea.vmem [#allocation2], 8
    %v15 = vld [vmem:[%s14] sm:$0x3]
    %vm16 = vcmask 130048
    %s17 = scalar_lea.vmem [#allocation0], 8
    %18 = vst.msk [vmem:[%s17] ss:$16 sm:$0x3] %vm16, %v15
    %v19 = vld.sshfl [vmem:[#allocation2] sm:$0xff pattern:$0x99999180]
    %20 = vrot.lane.b32.xlu0 %v19, 112
    %v21 = vpop.permute.xlu0 %20
    %vm22 = vcmask 130048
    %s23 = scalar_lea.vmem [#allocation0], 1
    %24 = vst.msk [vmem:[%s23] ss:$8 sm:$0xf] %vm22, %v21
    %v25 = vld.sshfl [vmem:[#allocation2] sm:$0xff pattern:$0x99999180]
    %26 = vrot.lane.b32.xlu0 %v25, 96
    %v27 = vpop.permute.xlu0 %26
    %vm28 = vcmask 130048
    %s29 = scalar_lea.vmem [#allocation0], 2
    %30 = vst.msk [vmem:[%s29] ss:$8 sm:$0xf] %vm28, %v27
    %v31 = vld.sshfl [vmem:[#allocation2] sm:$0xff pattern:$0x99999180]
    %32 = vrot.lane.b32.xlu0 %v31, 80
    %v33 = vpop.permute.xlu0 %32
    %vm34 = vcmask 130048
    %s35 = scalar_lea.vmem [#allocation0], 3
    %36 = vst.msk [vmem:[%s35] ss:$8 sm:$0xf] %vm34, %v33
    %v37 = vld.sshfl [vmem:[#allocation2] sm:$0xff pattern:$0x99999180]
    %38 = vrot.lane.b32.xlu0 %v37, 64
    %v39 = vpop.permute.xlu0 %38
    %vm40 = vcmask 130048
    %s41 = scalar_lea.vmem [#allocation0], 4
    %42 = vst.msk [vmem:[%s41] ss:$8 sm:$0xf] %vm40, %v39
    %v43 = vld.sshfl [vmem:[#allocation2] sm:$0xff pattern:$0x99999180]
    %44 = vrot.lane.b32.xlu0 %v43, 48
    %v45 = vpop.permute.xlu0 %44
    %vm46 = vcmask 130048
    %s47 = scalar_lea.vmem [#allocation0], 5
    %48 = vst.msk [vmem:[%s47] ss:$8 sm:$0xf] %vm46, %v45
    %v49 = vld.sshfl [vmem:[#allocation2] sm:$0xff pattern:$0x99999180]
    %50 = vrot.lane.b32.xlu0 %v49, 32
    %v51 = vpop.permute.xlu0 %50
    %vm52 = vcmask 130048
    %s53 = scalar_lea.vmem [#allocation0], 6
    %54 = vst.msk [vmem:[%s53] ss:$8 sm:$0xf] %vm52, %v51
    %v55 = vld.sshfl [vmem:[#allocation2] sm:$0xff pattern:$0x99999180]
    %56 = vrot.lane.b32.xlu0 %v55, 16
    %v57 = vpop.permute.xlu0 %56
    %vm58 = vcmask 130048
    %s59 = scalar_lea.vmem [#allocation0], 7
    %60 = vst.msk [vmem:[%s59] ss:$8 sm:$0xf] %vm58, %v57
    %s62 = ssub.s32 512, 512
    %63 = vsyncadd [#allocation1], %s62
    %s65 = sshll.u32 [#allocation0], 4
    %s66 = int_to_ptr.vmem [resolvable:$true] %s65
    %68 = dma.vmem_to_hbm [thread:$0]  %s66, 512, %s1, [#allocation1]
    %69 = dma.done [#allocation1], 512
    %70 = vsyncpa [#allocation1], 1

// kernel: _lambda_.1
$region0: #{_lambda_.1}
  #allocation0 [shape = 'u32[]', space=smem, size = 0x4, offset = 0x4, fixed_abs, tag = 'smem constant byte address 0x4 - core index']
  #allocation1 [shape = 'u32[144,128]{1,0:T(1,128)}', space=vmem, size = 0x12000, scoped, tag = 'internal scratch']
  %s0 = inlined_call_operand.vmem [shape: f32[2,8,256], index: 0, kind: input, shape index: {}]
  %s1 = inlined_call_operand.hbm [shape: f32[32,2560], index: 1, kind: input, shape index: {}]
  %s2 = inlined_call_operand.vmem [shape: f32[3,9,256], index: 2, kind: input, shape index: {}]
  %s3 = inlined_call_operand.vmem [shape: f32[2,4,256], index: 3, kind: input, shape index: {}]
  %s4 = inlined_call_operand.vmem [shape: f32[2,3,256], index: 4, kind: output, shape index: {}]
  %s5 = sld [smem:[#allocation0]]
  $region53: #{_lambda_.1} parent=0
    _
  %s7 = ssub.s32 1, %s5
  %s8 = scalar_select 0, %s7, %s5
  $region1: #{_lambda_.1} parent=0
    #allocation2 [shape = 'u8[327680]{0}', space=vmem, size = 0x50000, scoped, tag = 'input window, operand 1, single buffered']
    #allocation3 [shape = 's32[2]{0}', space=sflag, size = 0x8, scoped, tag = 'scoped memory for _lambda_.1']
    %9 = vsyncpa [#allocation3], 0
    loop: start=0, step=1, limit=4
    $region2: #{_lambda_.1} parent=1 // loop_pre_header
      _
    $region3: #{_lambda_.1} parent=1 // loop_header
      %s11 = sphi 0, %s15
      %p12 = scmp.ge.s32.totalorder %s11, 4
      %s21 = sphi 0, %s23
      %s24 = sphi 0, %s21
      %s25 = sphi 0, %s24
      %s41 = sphi 0, %s25
      %s45 = sphi 0, %s45
      %s47 = sphi 0, %s45
      %s48 = sphi 0, %s47
      %s62 = sphi 0, %s48
      %s66 = sphi 0, %s66
      %s68 = sphi 0, %s66
      %s69 = sphi 0, %s68
      %s83 = sphi 0, %s69
      %s87 = sphi 0, %s87
      %s89 = sphi 0, %s87
      %s90 = sphi 0, %s89
      %s104 = sphi 0, %s90
      %s110 = sphi 0, %s112
      %s113 = sphi 0, %s110
      %s114 = sphi 0, %s113
      %s130 = sphi 0, %s114
    $region4: #{_lambda_.1} parent=1 // loop_header_branch
      %14 = sbr.rel (%p12) target = $region8
    $region5: #{_lambda_.1} parent=1 // loop_body
      %s16 = ssub.s32 %s11, 1
      %s17 = ssub.s32 %s11, 2
      %s18 = sadd.s32 %s11, 1
      %s19 = ssub.s32 %s11, %s18
      %p20 = scmp.eq.s32.totalorder %s19, 0
      %s22 = sadd.s32 %s21, 1
      %s23 = scalar_select %p20, %s21, %s22
      %p26 = pneg %p20
      %p27 = scmp.eq.s32.totalorder %s11, 1
      %p28 = por %p26, %p27
      %p29 = scmp.ne.s32.totalorder %s21, %s24
      %p30 = scmp.eq.s32.totalorder %s11, 0
      %p31 = por %p29, %p30
      %p32 = scmp.ne.s32.totalorder %s21, %s24
      %p33 = scmp.eq.s32.totalorder %s16, 1
      %p34 = por %p32, %p33
      %p35 = scmp.ne.s32.totalorder %s24, %s25
      %p36 = scmp.eq.s32.totalorder %s16, 0
      %p37 = por %p35, %p36
      %p38 = scmp.ne.s32.totalorder %s24, %s25
      %p39 = scmp.eq.s32.totalorder %s17, 1
      %p40 = por %p38, %p39
      %p42 = scmp.ne.s32.totalorder %s25, %s41
      %p43 = scmp.eq.s32.totalorder %s17, 0
      %p44 = por %p42, %p43
      %s46 = sadd.s32 %s45, 1
      %p49 = scmp.eq.s32.totalorder %s11, 1
      %p50 = scmp.ne.s32.totalorder %s45, %s47
      %p51 = scmp.eq.s32.totalorder %s11, 0
      %p52 = por %p50, %p51
      %p53 = scmp.ne.s32.totalorder %s45, %s47
      %p54 = scmp.eq.s32.totalorder %s16, 1
      %p55 = por %p53, %p54
      %p56 = scmp.ne.s32.totalorder %s47, %s48
      %p57 = scmp.eq.s32.totalorder %s16, 0
      %p58 = por %p56, %p57
      %p59 = scmp.ne.s32.totalorder %s47, %s48
      %p60 = scmp.eq.s32.totalorder %s17, 1
      %p61 = por %p59, %p60
      %p63 = scmp.ne.s32.totalorder %s48, %s62
      %p64 = scmp.eq.s32.totalorder %s17, 0
      %p65 = por %p63, %p64
      %s67 = sadd.s32 %s66, 1
      %p70 = scmp.eq.s32.totalorder %s11, 1
      %p71 = scmp.ne.s32.totalorder %s66, %s68
      %p72 = scmp.eq.s32.totalorder %s11, 0
      %p73 = por %p71, %p72
      %p74 = scmp.ne.s32.totalorder %s66, %s68
      %p75 = scmp.eq.s32.totalorder %s16, 1
      %p76 = por %p74, %p75
      %p77 = scmp.ne.s32.totalorder %s68, %s69
      %p78 = scmp.eq.s32.totalorder %s16, 0
      %p79 = por %p77, %p78
      %p80 = scmp.ne.s32.totalorder %s68, %s69
      %p81 = scmp.eq.s32.totalorder %s17, 1
      %p82 = por %p80, %p81
      %p84 = scmp.ne.s32.totalorder %s69, %s83
      %p85 = scmp.eq.s32.totalorder %s17, 0
      %p86 = por %p84, %p85
      %s88 = sadd.s32 %s87, 1
      %p91 = scmp.eq.s32.totalorder %s11, 1
      %p92 = scmp.ne.s32.totalorder %s87, %s89
      %p93 = scmp.eq.s32.totalorder %s11, 0
      %p94 = por %p92, %p93
      %p95 = scmp.ne.s32.totalorder %s87, %s89
      %p96 = scmp.eq.s32.totalorder %s16, 1
      %p97 = por %p95, %p96
      %p98 = scmp.ne.s32.totalorder %s89, %s90
      %p99 = scmp.eq.s32.totalorder %s16, 0
      %p100 = por %p98, %p99
      %p101 = scmp.ne.s32.totalorder %s89, %s90
      %p102 = scmp.eq.s32.totalorder %s17, 1
      %p103 = por %p101, %p102
      %p105 = scmp.ne.s32.totalorder %s90, %s104
      %p106 = scmp.eq.s32.totalorder %s17, 0
      %p107 = por %p105, %p106
      %s108 = ssub.s32 %s11, %s18
      %p109 = scmp.eq.s32.totalorder %s108, 0
      %s111 = sadd.s32 %s110, 1
      %s112 = scalar_select %p109, %s110, %s111
      %p115 = pneg %p109
      %p116 = scmp.eq.s32.totalorder %s11, 1
      %p117 = por %p115, %p116
      %p118 = scmp.ne.s32.totalorder %s110, %s113
      %p119 = scmp.eq.s32.totalorder %s11, 0
      %p120 = por %p118, %p119
      %p121 = scmp.ne.s32.totalorder %s110, %s113
      %p122 = scmp.eq.s32.totalorder %s16, 1
      %p123 = por %p121, %p122
      %p124 = scmp.ne.s32.totalorder %s113, %s114
      %p125 = scmp.eq.s32.totalorder %s16, 0
      %p126 = por %p124, %p125
      %p127 = scmp.ne.s32.totalorder %s113, %s114
      %p128 = scmp.eq.s32.totalorder %s17, 1
      %p129 = por %p127, %p128
      %p131 = scmp.ne.s32.totalorder %s114, %s130
      %p132 = scmp.eq.s32.totalorder %s17, 0
      %p133 = por %p131, %p132
      %p134 = scmp.le.s32.totalorder 1, %s11
      %p135 = scmp.lt.s32.totalorder %s11, 3
      %p136 = pnand %p134, %p135
      %p137 = pneg %p136
      // Predicated region
      $region9: #{_lambda_.1} parent=5 // pred_check
        _
      $region10: #{_lambda_.1} parent=5 // pred_check_branch
        %139 = sbr.rel (%p136) target = $region12
      $region11: #{_lambda_.1} parent=5 // pred_region
        %s140 = ssub.s32 %s11, 1
        // Predicated region
        $region13: #{_lambda_.1} parent=11 // pred_check
          %p141 = pneg %p58
        $region14: #{_lambda_.1} parent=11 // pred_check_branch
          %143 = sbr.rel (%p141) target = $region16
        $region15: #{_lambda_.1} parent=11 // pred_region
          %s145 = ssub.s32 10240, 10240
          %146 = vsyncadd [#allocation3], %s145
          %s147 = sshll.u32 [#allocation2], 4
          %s148 = int_to_ptr.vmem [resolvable:$true] %s147
          %153 = dma.hbm_to_vmem [thread:$0]  %s1, 10240, %s148, [#allocation3], 2560, 2560, 160
        $region16: #{_lambda_.1} parent=11 // pred_fallthru
          _
        // Predicated region
        $region17: #{_lambda_.1} parent=11 // pred_check
          %p154 = pneg %p79
        $region18: #{_lambda_.1} parent=11 // pred_check_branch
          %156 = sbr.rel (%p154) target = $region20
        $region19: #{_lambda_.1} parent=11 // pred_region
          _
        $region20: #{_lambda_.1} parent=11 // pred_fallthru
          _
        // Predicated region
        $region21: #{_lambda_.1} parent=11 // pred_check
          %p157 = pneg %p100
        $region22: #{_lambda_.1} parent=11 // pred_check_branch
          %159 = sbr.rel (%p157) target = $region24
        $region23: #{_lambda_.1} parent=11 // pred_region
          _
        $region24: #{_lambda_.1} parent=11 // pred_fallthru
          _
      $region12: #{_lambda_.1} parent=5 // pred_fallthru
        _
      %p160 = scmp.lt.s32.totalorder %s11, 2
      // Predicated region
      $region25: #{_lambda_.1} parent=5 // pred_check
        %p161 = pneg %p160
      $region26: #{_lambda_.1} parent=5 // pred_check_branch
        %163 = sbr.rel (%p161) target = $region28
      $region27: #{_lambda_.1} parent=5 // pred_region
        // Predicated region
        $region29: #{_lambda_.1} parent=27 // pred_check
          %p164 = pneg %p31
        $region30: #{_lambda_.1} parent=27 // pred_check_branch
          %166 = sbr.rel (%p164) target = $region32
        $region31: #{_lambda_.1} parent=27 // pred_region
          %p167 = scmp.lt.s32.totalorder %s11, 1
          %s168 = scalar_select %p167, %s11, 1
          %s169 = smul.addr %s168, 2
          %s170 = smul.addr %s169, 8
          %s171 = scalar_lea.vmem %s0, %s170
        $region32: #{_lambda_.1} parent=27 // pred_fallthru
          _
      $region28: #{_lambda_.1} parent=5 // pred_fallthru
        _
      %p172 = scmp.le.s32.totalorder 1, %s11
      %p173 = scmp.lt.s32.totalorder %s11, 3
      %p174 = pnand %p172, %p173
      %p175 = pneg %p174
      // Predicated region
      $region33: #{_lambda_.1} parent=5 // pred_check
        _
      $region34: #{_lambda_.1} parent=5 // pred_check_branch
        %177 = sbr.rel (%p174) target = $region36
      $region35: #{_lambda_.1} parent=5 // pred_region
        %s178 = ssub.s32 %s11, 1
        // Predicated region
        $region37: #{_lambda_.1} parent=35 // pred_check
          %p179 = pneg %p58
        $region38: #{_lambda_.1} parent=35 // pred_check_branch
          %181 = sbr.rel (%p179) target = $region40
        $region39: #{_lambda_.1} parent=35 // pred_region
          %182 = dma.done [#allocation3], 10240
        $region40: #{_lambda_.1} parent=35 // pred_fallthru
          _
        %p183 = scmp.lt.s32.totalorder %s16, 1
        %s184 = scalar_select %p183, %s16, 1
        %s185 = smul.addr %s184, 2
        %s186 = smul.addr %s185, 8
        %s187 = scalar_lea.vmem %s0, %s186
        %p188 = pneg %p37
        %p189 = pneg %p34
        %p190 = pneg %p58
        %p191 = pneg %p55
        %p192 = pneg %p79
        %p193 = pneg %p76
        %p194 = pneg %p100
        %p195 = pneg %p97
        %p196 = pneg %p126
        %p197 = pneg %p123
        %p198 = scmp.lt.s32.totalorder %s16, 1
        %s199 = scalar_select %p198, %s16, 1
        %s200 = smul.addr %s199, 2
        %s201 = smul.addr %s200, 4
        %s202 = scalar_lea.vmem %s4, %s201
        %p203 = scmp.lt.s32.totalorder %s16, 1
        %s204 = scalar_select %p203, %s16, 1
        %s205 = smul.addr %s204, 2
        %s206 = smul.addr %s205, 8
        %s207 = scalar_lea.vmem %s0, %s206
        %p208 = scmp.lt.s32.totalorder %s16, 1
        %s209 = scalar_select %p208, %s16, 1
        %s210 = smul.addr %s209, 2
        %s211 = smul.addr %s210, 4
        %s212 = scalar_lea.vmem %s4, %s211
        %v213 = vld [vmem:[%s207] sm:$0xff]
        %v214 = vld [vmem:[%s207 + $0x8] sm:$0xff]
        %v215 = vld [vmem:[%s2] sm:$0xff]
        %v216 = vld [vmem:[%s2 + $0x8] sm:$0xff]
        %v217 = vld [vmem:[%s2 + $0x10] sm:$0x1]
        %v218 = vld [vmem:[%s2 + $0x18] sm:$0x1]
        %s219 = scalar_lea.vmem %s2, 32
        %v220 = vld [vmem:[%s219] sm:$0xff]
        %v221 = vld [vmem:[%s219 + $0x8] sm:$0xff]
        %v222 = vld [vmem:[%s219 + $0x10] sm:$0x1]
        %v223 = vld [vmem:[%s219 + $0x18] sm:$0x1]
        %s224 = scalar_lea.vmem %s2, 64
        %v225 = vld [vmem:[%s224] sm:$0xff]
        %v226 = vld [vmem:[%s224 + $0x8] sm:$0xff]
        %v227 = vld [vmem:[%s224 + $0x10] sm:$0x1]
        %v228 = vld [vmem:[%s224 + $0x18] sm:$0x1]
        %v229 = vld [vmem:[%s3] sm:$0xff]
        %s230 = scalar_lea.vmem %s3, 8
        %v231 = vld [vmem:[%s230] sm:$0xff]
        %v232 = vld [vmem:[#allocation2] sm:$0xff]
        %233 = vrot.lane.b32.xlu0 %v213, 17
        %v234 = vpop.permute.xlu0 %233
        %235 = vrot.lane.b32.xlu0 %v214, 17
        %v236 = vpop.permute.xlu0 %235
        %v237 = vlaneseq
        %v238 = vand.u32 %v237, 127
        %vm239 = vcmp.lt.s32.totalorder %v238, 17
        %v240 = vsel %vm239, %v234, %v236
        %v241 = vsel %vm239, %v236, %v234
        %v242 = vlaneseq
        %v243 = vshrl.u32 %v242, 7
        %v244 = vsub.s32 0, %v243
        %v245 = vrot.slane %v215, %v244
        %v246 = vlaneseq
        %v247 = vshrl.u32 %v246, 7
        %v248 = vsub.s32 0, %v247
        %v249 = vrot.slane %v216, %v248
        %v250 = vmul.f32 %v241, %v245
        %v251 = vmul.f32 %v240, %v249
        %252 = vrot.lane.b32.xlu0 %v213, 16
        %v253 = vpop.permute.xlu0 %252
        %254 = vrot.lane.b32.xlu0 %v214, 16
        %v255 = vpop.permute.xlu0 %254
        %vm256 = vcmp.lt.s32.totalorder %v238, 16
        %v257 = vsel %vm256, %v253, %v255
        %v258 = vsel %vm256, %v255, %v253
        %v259 = vlaneseq
        %v260 = vshrl.u32 %v259, 7
        %v261 = vsub.s32 1, %v260
        %v262 = vrot.slane %v215, %v261
        %v263 = vlaneseq
        %v264 = vshrl.u32 %v263, 7
        %v265 = vsub.s32 1, %v264
        %v266 = vrot.slane %v216, %v265
        %v267 = vmul.f32 %v258, %v262
        %v268 = vmul.f32 %v257, %v266
        %269 = vrot.lane.b32.xlu0 %v213, 15
        %v270 = vpop.permute.xlu0 %269
        %271 = vrot.lane.b32.xlu0 %v214, 15
        %v272 = vpop.permute.xlu0 %271
        %vm273 = vcmp.lt.s32.totalorder %v238, 15
        %v274 = vsel %vm273, %v270, %v272
        %v275 = vsel %vm273, %v272, %v270
        %v276 = vlaneseq
        %v277 = vshrl.u32 %v276, 7
        %v278 = vsub.s32 2, %v277
        %v279 = vrot.slane %v215, %v278
        %v280 = vlaneseq
        %v281 = vshrl.u32 %v280, 7
        %v282 = vsub.s32 2, %v281
        %v283 = vrot.slane %v216, %v282
        %v284 = vmul.f32 %v275, %v279
        %v285 = vmul.f32 %v274, %v283
        %286 = vrot.lane.b32.xlu0 %v213, 1
        %v287 = vpop.permute.xlu0 %286
        %288 = vrot.lane.b32.xlu0 %v214, 1
        %v289 = vpop.permute.xlu0 %288
        %vm290 = vcmp.lt.s32.totalorder %v238, 1
        %v291 = vsel %vm290, %v287, %v289
        %v292 = vsel %vm290, %v289, %v287
        %v293 = vlaneseq
        %v294 = vshrl.u32 %v293, 7
        %v295 = vsub.s32 3, %v294
        %v296 = vrot.slane %v215, %v295
        %v297 = vlaneseq
        %v298 = vshrl.u32 %v297, 7
        %v299 = vsub.s32 3, %v298
        %v300 = vrot.slane %v216, %v299
        %v301 = vmul.f32 %v292, %v296
        %v302 = vmul.f32 %v291, %v300
        %303 = vrot.lane.b32.xlu0 %v213, 127
        %v304 = vpop.permute.xlu0 %303
        %305 = vrot.lane.b32.xlu0 %v214, 127
        %v306 = vpop.permute.xlu0 %305
        %vm307 = vcmp.lt.s32.totalorder %v238, 127
        %v308 = vsel %vm307, %v304, %v306
        %v309 = vsel %vm307, %v306, %v304
        %v310 = vlaneseq
        %v311 = vshrl.u32 %v310, 7
        %v312 = vsub.s32 5, %v311
        %v313 = vrot.slane %v215, %v312
        %v314 = vlaneseq
        %v315 = vshrl.u32 %v314, 7
        %v316 = vsub.s32 5, %v315
        %v317 = vrot.slane %v216, %v316
        %v318 = vmul.f32 %v308, %v313
        %v319 = vmul.f32 %v309, %v317
        %320 = vrot.lane.b32.xlu0 %v213, 113
        %v321 = vpop.permute.xlu0 %320
        %322 = vrot.lane.b32.xlu0 %v214, 113
        %v323 = vpop.permute.xlu0 %322
        %vm324 = vcmp.lt.s32.totalorder %v238, 113
        %v325 = vsel %vm324, %v321, %v323
        %v326 = vsel %vm324, %v323, %v321
        %v327 = vlaneseq
        %v328 = vshrl.u32 %v327, 7
        %v329 = vsub.s32 6, %v328
        %v330 = vrot.slane %v215, %v329
        %v331 = vlaneseq
        %v332 = vshrl.u32 %v331, 7
        %v333 = vsub.s32 6, %v332
        %v334 = vrot.slane %v216, %v333
        %v335 = vmul.f32 %v325, %v330
        %v336 = vmul.f32 %v326, %v334
        %337 = vrot.lane.b32.xlu0 %v213, 112
        %v338 = vpop.permute.xlu0 %337
        %339 = vrot.lane.b32.xlu0 %v214, 112
        %v340 = vpop.permute.xlu0 %339
        %vm341 = vcmp.lt.s32.totalorder %v238, 112
        %v342 = vsel %vm341, %v338, %v340
        %v343 = vsel %vm341, %v340, %v338
        %v344 = vlaneseq
        %v345 = vshrl.u32 %v344, 7
        %v346 = vsub.s32 7, %v345
        %v347 = vrot.slane %v215, %v346
        %v348 = vlaneseq
        %v349 = vshrl.u32 %v348, 7
        %v350 = vsub.s32 7, %v349
        %v351 = vrot.slane %v216, %v350
        %v352 = vmul.f32 %v342, %v347
        %v353 = vmul.f32 %v343, %v351
        %354 = vrot.lane.b32.xlu0 %v213, 111
        %v355 = vpop.permute.xlu0 %354
        %356 = vrot.lane.b32.xlu0 %v214, 111
        %v357 = vpop.permute.xlu0 %356
        %vm358 = vcmp.lt.s32.totalorder %v238, 111
        %v359 = vsel %vm358, %v355, %v357
        %v360 = vsel %vm358, %v357, %v355
        %v361 = vlaneseq
        %v362 = vshrl.u32 %v361, 7
        %v363 = vsub.s32 0, %v362
        %v364 = vrot.slane %v217, %v363
        %v365 = vlaneseq
        %v366 = vshrl.u32 %v365, 7
        %v367 = vsub.s32 0, %v366
        %v368 = vrot.slane %v218, %v367
        %v369 = vmul.f32 %v359, %v364
        %v370 = vmul.f32 %v360, %v368
        %372 = vset.pattern.permute.xlu0 72
        %373 = vperm.xlu0 %372, %v232
        %v374 = vpop.permute.xlu0 %373
        %vm376 = vcmask 588800
        %v377 = vsel %vm376, %v232, 0
        %379 = vmatprep.subr.mxu0 %v251
        %380 = vmatpush1.msra.mxu0 %v250
        %381 = vmatprep.subr.mxu0 %v268
        %382 = vmatpush1.msra.mxu0 %v267
        %383 = vmatprep.subr.mxu0 %v285
        %384 = vmatpush1.msra.mxu0 %v284
        %385 = vmatprep.subr.mxu0 %v302
        %386 = vmatpush1.msra.mxu0 %v301
        %387 = vmatprep.subr.mxu0 %v214
        %388 = vmatpush1.msra.mxu0 %v213
        %389 = vmatprep.subr.mxu0 %v319
        %390 = vmatpush1.msra.mxu0 %v318
        %391 = vmatprep.subr.mxu0 %v336
        %392 = vmatpush1.msra.mxu0 %v335
        %393 = vmatprep.subr.mxu0 %v353
        %394 = vmatpush1.msra.mxu0 %v352
        %395 = vmatprep.subr.mxu0 %v370
        %396 = vmatpush1.msra.mxu0 %v369
        %397 = vmatprep.subr.mxu0 0.0
        %398 = vmatpush1.msra.mxu0 0.0
        %399 = vmatprep.subr.mxu0 0.0
        %400 = vmatpush1.msra.mxu0 0.0
        %401 = vmatprep.subr.mxu0 0.0
        %402 = vmatpush1.msra.mxu0 0.0
        %403 = vmatprep.subr.mxu0 0.0
        %404 = vmatpush1.msra.mxu0 0.0
        %405 = vmatprep.subr.mxu0 0.0
        %406 = vmatpush1.msra.mxu0 0.0
        %407 = vmatprep.subr.mxu0 0.0
        %408 = vmatpush1.msra.mxu0 0.0
        %409 = vmatprep.subr.mxu0 0.0
        %410 = vmatpush1.msra.mxu0 0.0
        %411 = vmatprep.subr.mxu0 0.0
        %412 = vmatpush1.msra.mxu0 0.0
        %413 = vmatprep.subr.mxu0 0.0
        %414 = vmatpush1.msra.mxu0 0.0
        %415 = vmatprep.subr.mxu0 0.0
        %416 = vmatpush1.msra.mxu0 0.0
        %417 = vmatprep.subr.mxu0 0.0
        %418 = vmatpush1.msra.mxu0 0.0
        %419 = vmatprep.subr.mxu0 0.0
        %420 = vmatpush1.msra.mxu0 0.0
        %421 = vmatprep.subr.mxu0 0.0
        %422 = vmatpush1.msra.mxu0 0.0
        %423 = vmatprep.subr.mxu0 0.0
        %424 = vmatpush1.msra.mxu0 0.0
        %425 = vmatprep.subr.mxu0 0.0
        %426 = vmatpush1.msra.mxu0 0.0
        %427 = vmatprep.subr.mxu0 0.0
        %428 = vmatpush1.msra.mxu0 0.0
        %429 = vmatprep.subr.mxu0 0.0
        %430 = vmatpush1.msra.mxu0 0.0
        %431 = vmatprep.subr.mxu0 0.0
        %432 = vmatpush1.msra.mxu0 0.0
        %433 = vmatprep.subr.mxu0 0.0
        %434 = vmatpush1.msra.mxu0 0.0
        %435 = vmatprep.subr.mxu0 0.0
        %436 = vmatpush1.msra.mxu0 0.0
        %437 = vmatprep.subr.mxu0 0.0
        %438 = vmatpush1.msra.mxu0 0.0
        %439 = vmatprep.subr.mxu0 0.0
        %440 = vmatpush1.msra.mxu0 0.0
        %441 = vmatprep.subr.mxu0 0.0
        %442 = vmatpush1.msra.mxu0 0.0
        %443 = vmatprep.mubr.f32.mxu0 0.0
        %444 = vmatmul.mubr.f32.gmra.mrb[0].mxu0 %v377
        %v445 = vpop.f32.mrb[0].mxu0
        %v446 = vadd.f32 %v374, %v445
        %v447 = vpop.f32.mrb[0].mxu0
        %v448 = vadd.f32 %v374, %v447
        %449 = vdwg.mxu0
        %v450 = vmax.f32 %v446, 0.0
        %v451 = vmax.f32 %v448, 0.0
        %v452 = vld [vmem:[#allocation2 + $0x8] sm:$0xff]
        %453 = vrot.lane.b32.xlu0 %v450, 17
        %v454 = vpop.permute.xlu0 %453
        %455 = vrot.lane.b32.xlu0 %v451, 17
        %v456 = vpop.permute.xlu0 %455
        %v457 = vsel %vm239, %v454, %v456
        %v458 = vsel %vm239, %v456, %v454
        %v459 = vmul.f32 %v458, %v245
        %v460 = vmul.f32 %v457, %v249
        %461 = vrot.lane.b32.xlu0 %v450, 16
        %v462 = vpop.permute.xlu0 %461
        %463 = vrot.lane.b32.xlu0 %v451, 16
        %v464 = vpop.permute.xlu0 %463
        %v465 = vsel %vm256, %v462, %v464
        %v466 = vsel %vm256, %v464, %v462
        %v467 = vmul.f32 %v466, %v262
        %v468 = vmul.f32 %v465, %v266
        %469 = vrot.lane.b32.xlu0 %v450, 15
        %v470 = vpop.permute.xlu0 %469
        %471 = vrot.lane.b32.xlu0 %v451, 15
        %v472 = vpop.permute.xlu0 %471
        %v473 = vsel %vm273, %v470, %v472
        %v474 = vsel %vm273, %v472, %v470
        %v475 = vmul.f32 %v474, %v279
        %v476 = vmul.f32 %v473, %v283
        %477 = vrot.lane.b32.xlu0 %v450, 1
        %v478 = vpop.permute.xlu0 %477
        %479 = vrot.lane.b32.xlu0 %v451, 1
        %v480 = vpop.permute.xlu0 %479
        %v481 = vsel %vm290, %v478, %v480
        %v482 = vsel %vm290, %v480, %v478
        %v483 = vmul.f32 %v482, %v296
        %v484 = vmul.f32 %v481, %v300
        %485 = vrot.lane.b32.xlu0 %v450, 127
        %v486 = vpop.permute.xlu0 %485
        %487 = vrot.lane.b32.xlu0 %v451, 127
        %v488 = vpop.permute.xlu0 %487
        %v489 = vsel %vm307, %v486, %v488
        %v490 = vsel %vm307, %v488, %v486
        %v491 = vmul.f32 %v489, %v313
        %v492 = vmul.f32 %v490, %v317
        %493 = vrot.lane.b32.xlu0 %v450, 113
        %v494 = vpop.permute.xlu0 %493
        %495 = vrot.lane.b32.xlu0 %v451, 113
        %v496 = vpop.permute.xlu0 %495
        %v497 = vsel %vm324, %v494, %v496
        %v498 = vsel %vm324, %v496, %v494
        %v499 = vmul.f32 %v497, %v330
        %v500 = vmul.f32 %v498, %v334
        %501 = vrot.lane.b32.xlu0 %v450, 112
        %v502 = vpop.permute.xlu0 %501
        %503 = vrot.lane.b32.xlu0 %v451, 112
        %v504 = vpop.permute.xlu0 %503
        %v505 = vsel %vm341, %v502, %v504
        %v506 = vsel %vm341, %v504, %v502
        %v507 = vmul.f32 %v505, %v347
        %v508 = vmul.f32 %v506, %v351
        %509 = vrot.lane.b32.xlu0 %v450, 111
        %v510 = vpop.permute.xlu0 %509
        %511 = vrot.lane.b32.xlu0 %v451, 111
        %v512 = vpop.permute.xlu0 %511
        %v513 = vsel %vm358, %v510, %v512
        %v514 = vsel %vm358, %v512, %v510
        %v515 = vmul.f32 %v513, %v364
        %v516 = vmul.f32 %v514, %v368
        %518 = vset.pattern.permute.xlu0 72
        %519 = vperm.xlu0 %518, %v452
        %v520 = vpop.permute.xlu0 %519
        %v522 = vsel %vm376, %v452, 0
        %524 = vmatprep.subr.mxu0 %v460
        %525 = vmatpush1.msra.mxu0 %v459
        %526 = vmatprep.subr.mxu0 %v468
        %527 = vmatpush1.msra.mxu0 %v467
        %528 = vmatprep.subr.mxu0 %v476
        %529 = vmatpush1.msra.mxu0 %v475
        %530 = vmatprep.subr.mxu0 %v484
        %531 = vmatpush1.msra.mxu0 %v483
        %532 = vmatprep.subr.mxu0 %v451
        %533 = vmatpush1.msra.mxu0 %v450
        %534 = vmatprep.subr.mxu0 %v492
        %535 = vmatpush1.msra.mxu0 %v491
        %536 = vmatprep.subr.mxu0 %v500
        %537 = vmatpush1.msra.mxu0 %v499
        %538 = vmatprep.subr.mxu0 %v508
        %539 = vmatpush1.msra.mxu0 %v507
        %540 = vmatprep.subr.mxu0 %v516
        %541 = vmatpush1.msra.mxu0 %v515
        %542 = vmatprep.subr.mxu0 0.0
        %543 = vmatpush1.msra.mxu0 0.0
        %544 = vmatprep.subr.mxu0 0.0
        %545 = vmatpush1.msra.mxu0 0.0
        %546 = vmatprep.subr.mxu0 0.0
        %547 = vmatpush1.msra.mxu0 0.0
        %548 = vmatprep.subr.mxu0 0.0
        %549 = vmatpush1.msra.mxu0 0.0
        %550 = vmatprep.subr.mxu0 0.0
        %551 = vmatpush1.msra.mxu0 0.0
        %552 = vmatprep.subr.mxu0 0.0
        %553 = vmatpush1.msra.mxu0 0.0
        %554 = vmatprep.subr.mxu0 0.0
        %555 = vmatpush1.msra.mxu0 0.0
        %556 = vmatprep.subr.mxu0 0.0
        %557 = vmatpush1.msra.mxu0 0.0
        %558 = vmatprep.subr.mxu0 0.0
        %559 = vmatpush1.msra.mxu0 0.0
        %560 = vmatprep.subr.mxu0 0.0
        %561 = vmatpush1.msra.mxu0 0.0
        %562 = vmatprep.subr.mxu0 0.0
        %563 = vmatpush1.msra.mxu0 0.0
        %564 = vmatprep.subr.mxu0 0.0
        %565 = vmatpush1.msra.mxu0 0.0
        %566 = vmatprep.subr.mxu0 0.0
        %567 = vmatpush1.msra.mxu0 0.0
        %568 = vmatprep.subr.mxu0 0.0
        %569 = vmatpush1.msra.mxu0 0.0
        %570 = vmatprep.subr.mxu0 0.0
        %571 = vmatpush1.msra.mxu0 0.0
        %572 = vmatprep.subr.mxu0 0.0
        %573 = vmatpush1.msra.mxu0 0.0
        %574 = vmatprep.subr.mxu0 0.0
        %575 = vmatpush1.msra.mxu0 0.0
        %576 = vmatprep.subr.mxu0 0.0
        %577 = vmatpush1.msra.mxu0 0.0
        %578 = vmatprep.subr.mxu0 0.0
        %579 = vmatpush1.msra.mxu0 0.0
        %580 = vmatprep.subr.mxu0 0.0
        %581 = vmatpush1.msra.mxu0 0.0
        %582 = vmatprep.subr.mxu0 0.0
        %583 = vmatpush1.msra.mxu0 0.0
        %584 = vmatprep.subr.mxu0 0.0
        %585 = vmatpush1.msra.mxu0 0.0
        %586 = vmatprep.subr.mxu0 0.0
        %587 = vmatpush1.msra.mxu0 0.0
        %588 = vmatprep.mubr.f32.mxu0 0.0
        %589 = vmatmul.mubr.f32.gmra.mrb[0].mxu0 %v522
        %v590 = vpop.f32.mrb[0].mxu0
        %v591 = vadd.f32 %v520, %v590
        %v592 = vpop.f32.mrb[0].mxu0
        %v593 = vadd.f32 %v520, %v592
        %594 = vdwg.mxu0
        %v595 = vmax.f32 %v591, 0.0
        %v596 = vmax.f32 %v593, 0.0
        %597 = vrot.lane.b32.xlu0 %v595, 127
        %v598 = vpop.permute.xlu0 %597
        %599 = vrot.lane.b32.xlu0 %v596, 127
        %v600 = vpop.permute.xlu0 %599
        %v601 = vsel %vm307, %v598, %v600
        %v602 = vsel %vm307, %v600, %v598
        %603 = vrot.lane.b32.xlu0 %v595, 112
        %v604 = vpop.permute.xlu0 %603
        %605 = vrot.lane.b32.xlu0 %v596, 112
        %v606 = vpop.permute.xlu0 %605
        %v607 = vsel %vm341, %v604, %v606
        %v608 = vsel %vm341, %v606, %v604
        %609 = vrot.lane.b32.xlu0 %v595, 111
        %v610 = vpop.permute.xlu0 %609
        %611 = vrot.lane.b32.xlu0 %v596, 111
        %v612 = vpop.permute.xlu0 %611
        %v613 = vsel %vm358, %v610, %v612
        %v614 = vsel %vm358, %v612, %v610
        %v615 = vmax.f32 %v595, %v601
        %v616 = vmax.f32 %v596, %v602
        %v617 = vmax.f32 %v607, %v613
        %v618 = vmax.f32 %v608, %v614
        %v619 = vmax.f32 %v615, %v617
        %v620 = vmax.f32 %v616, %v618
        %v621 = vld [vmem:[#allocation2 + $0x10] sm:$0xff]
        %v622 = vld [vmem:[#allocation2 + $0xb0] sm:$0xff]
        %623 = vrot.lane.b32.xlu0 %v619, 34
        %v624 = vpop.permute.xlu0 %623
        %625 = vrot.lane.b32.xlu0 %v620, 34
        %v626 = vpop.permute.xlu0 %625
        %vm627 = vcmp.lt.s32.totalorder %v238, 34
        %v628 = vsel %vm627, %v624, %v626
        %v629 = vsel %vm627, %v626, %v624
        %v630 = vlaneseq
        %v631 = vshrl.u32 %v630, 7
        %v632 = vsub.s32 0, %v631
        %v633 = vrot.slane %v220, %v632
        %v634 = vlaneseq
        %v635 = vshrl.u32 %v634, 7
        %v636 = vsub.s32 0, %v635
        %v637 = vrot.slane %v221, %v636
        %v638 = vmul.f32 %v629, %v633
        %v639 = vmul.f32 %v628, %v637
        %640 = vrot.lane.b32.xlu0 %v619, 32
        %v641 = vpop.permute.xlu0 %640
        %642 = vrot.lane.b32.xlu0 %v620, 32
        %v643 = vpop.permute.xlu0 %642
        %vm644 = vcmp.lt.s32.totalorder %v238, 32
        %v645 = vsel %vm644, %v641, %v643
        %v646 = vsel %vm644, %v643, %v641
        %v647 = vlaneseq
        %v648 = vshrl.u32 %v647, 7
        %v649 = vsub.s32 1, %v648
        %v650 = vrot.slane %v220, %v649
        %v651 = vlaneseq
        %v652 = vshrl.u32 %v651, 7
        %v653 = vsub.s32 1, %v652
        %v654 = vrot.slane %v221, %v653
        %v655 = vmul.f32 %v646, %v650
        %v656 = vmul.f32 %v645, %v654
        %657 = vrot.lane.b32.xlu0 %v619, 30
        %v658 = vpop.permute.xlu0 %657
        %659 = vrot.lane.b32.xlu0 %v620, 30
        %v660 = vpop.permute.xlu0 %659
        %vm661 = vcmp.lt.s32.totalorder %v238, 30
        %v662 = vsel %vm661, %v658, %v660
        %v663 = vsel %vm661, %v660, %v658
        %v664 = vlaneseq
        %v665 = vshrl.u32 %v664, 7
        %v666 = vsub.s32 2, %v665
        %v667 = vrot.slane %v220, %v666
        %v668 = vlaneseq
        %v669 = vshrl.u32 %v668, 7
        %v670 = vsub.s32 2, %v669
        %v671 = vrot.slane %v221, %v670
        %v672 = vmul.f32 %v663, %v667
        %v673 = vmul.f32 %v662, %v671
        %674 = vrot.lane.b32.xlu0 %v619, 2
        %v675 = vpop.permute.xlu0 %674
        %676 = vrot.lane.b32.xlu0 %v620, 2
        %v677 = vpop.permute.xlu0 %676
        %vm678 = vcmp.lt.s32.totalorder %v238, 2
        %v679 = vsel %vm678, %v675, %v677
        %v680 = vsel %vm678, %v677, %v675
        %v681 = vlaneseq
        %v682 = vshrl.u32 %v681, 7
        %v683 = vsub.s32 3, %v682
        %v684 = vrot.slane %v220, %v683
        %v685 = vlaneseq
        %v686 = vshrl.u32 %v685, 7
        %v687 = vsub.s32 3, %v686
        %v688 = vrot.slane %v221, %v687
        %v689 = vmul.f32 %v680, %v684
        %v690 = vmul.f32 %v679, %v688
        %691 = vrot.lane.b32.xlu0 %v619, 126
        %v692 = vpop.permute.xlu0 %691
        %693 = vrot.lane.b32.xlu0 %v620, 126
        %v694 = vpop.permute.xlu0 %693
        %vm695 = vcmp.lt.s32.totalorder %v238, 126
        %v696 = vsel %vm695, %v692, %v694
        %v697 = vsel %vm695, %v694, %v692
        %v698 = vlaneseq
        %v699 = vshrl.u32 %v698, 7
        %v700 = vsub.s32 5, %v699
        %v701 = vrot.slane %v220, %v700
        %v702 = vlaneseq
        %v703 = vshrl.u32 %v702, 7
        %v704 = vsub.s32 5, %v703
        %v705 = vrot.slane %v221, %v704
        %v706 = vmul.f32 %v696, %v701
        %v707 = vmul.f32 %v697, %v705
        %708 = vrot.lane.b32.xlu0 %v619, 98
        %v709 = vpop.permute.xlu0 %708
        %710 = vrot.lane.b32.xlu0 %v620, 98
        %v711 = vpop.permute.xlu0 %710
        %vm712 = vcmp.lt.s32.totalorder %v238, 98
        %v713 = vsel %vm712, %v709, %v711
        %v714 = vsel %vm712, %v711, %v709
        %v715 = vlaneseq
        %v716 = vshrl.u32 %v715, 7
        %v717 = vsub.s32 6, %v716
        %v718 = vrot.slane %v220, %v717
        %v719 = vlaneseq
        %v720 = vshrl.u32 %v719, 7
        %v721 = vsub.s32 6, %v720
        %v722 = vrot.slane %v221, %v721
        %v723 = vmul.f32 %v713, %v718
        %v724 = vmul.f32 %v714, %v722
        %725 = vrot.lane.b32.xlu0 %v619, 96
        %v726 = vpop.permute.xlu0 %725
        %727 = vrot.lane.b32.xlu0 %v620, 96
        %v728 = vpop.permute.xlu0 %727
        %vm729 = vcmp.lt.s32.totalorder %v238, 96
        %v730 = vsel %vm729, %v726, %v728
        %v731 = vsel %vm729, %v728, %v726
        %v732 = vlaneseq
        %v733 = vshrl.u32 %v732, 7
        %v734 = vsub.s32 7, %v733
        %v735 = vrot.slane %v220, %v734
        %v736 = vlaneseq
        %v737 = vshrl.u32 %v736, 7
        %v738 = vsub.s32 7, %v737
        %v739 = vrot.slane %v221, %v738
        %v740 = vmul.f32 %v730, %v735
        %v741 = vmul.f32 %v731, %v739
        %742 = vrot.lane.b32.xlu0 %v619, 94
        %v743 = vpop.permute.xlu0 %742
        %744 = vrot.lane.b32.xlu0 %v620, 94
        %v745 = vpop.permute.xlu0 %744
        %vm746 = vcmp.lt.s32.totalorder %v238, 94
        %v747 = vsel %vm746, %v743, %v745
        %v748 = vsel %vm746, %v745, %v743
        %v749 = vlaneseq
        %v750 = vshrl.u32 %v749, 7
        %v751 = vsub.s32 0, %v750
        %v752 = vrot.slane %v222, %v751
        %v753 = vlaneseq
        %v754 = vshrl.u32 %v753, 7
        %v755 = vsub.s32 0, %v754
        %v756 = vrot.slane %v223, %v755
        %v757 = vmul.f32 %v747, %v752
        %v758 = vmul.f32 %v748, %v756
        %760 = vset.pattern.permute.xlu0 72
        %761 = vperm.xlu0 %760, %v621
        %v762 = vpop.permute.xlu0 %761
        %765 = vset.pattern.permute.xlu0 72
        %766 = vperm.xlu0 %765, %v622
        %v767 = vpop.permute.xlu0 %766
        %v769 = vsel %vm376, %v621, 0
        %v771 = vsel %vm376, %v622, 0
        %773 = vmatprep.subr.mxu0 %v639
        %774 = vmatpush1.msra.mxu0 %v638
        %775 = vmatprep.subr.mxu0 %v656
        %776 = vmatpush1.msra.mxu0 %v655
        %777 = vmatprep.subr.mxu0 %v673
        %778 = vmatpush1.msra.mxu0 %v672
        %779 = vmatprep.subr.mxu0 %v690
        %780 = vmatpush1.msra.mxu0 %v689
        %781 = vmatprep.subr.mxu0 %v620
        %782 = vmatpush1.msra.mxu0 %v619
        %783 = vmatprep.subr.mxu0 %v707
        %784 = vmatpush1.msra.mxu0 %v706
        %785 = vmatprep.subr.mxu0 %v724
        %786 = vmatpush1.msra.mxu0 %v723
        %787 = vmatprep.subr.mxu0 %v741
        %788 = vmatpush1.msra.mxu0 %v740
        %789 = vmatprep.subr.mxu0 %v758
        %790 = vmatpush1.msra.mxu0 %v757
        %791 = vmatprep.subr.mxu0 0.0
        %792 = vmatpush1.msra.mxu0 0.0
        %793 = vmatprep.subr.mxu0 0.0
        %794 = vmatpush1.msra.mxu0 0.0
        %795 = vmatprep.subr.mxu0 0.0
        %796 = vmatpush1.msra.mxu0 0.0
        %797 = vmatprep.subr.mxu0 0.0
        %798 = vmatpush1.msra.mxu0 0.0
        %799 = vmatprep.subr.mxu0 0.0
        %800 = vmatpush1.msra.mxu0 0.0
        %801 = vmatprep.subr.mxu0 0.0
        %802 = vmatpush1.msra.mxu0 0.0
        %803 = vmatprep.subr.mxu0 0.0
        %804 = vmatpush1.msra.mxu0 0.0
        %805 = vmatprep.subr.mxu0 0.0
        %806 = vmatpush1.msra.mxu0 0.0
        %807 = vmatprep.subr.mxu0 0.0
        %808 = vmatpush1.msra.mxu0 0.0
        %809 = vmatprep.subr.mxu0 0.0
        %810 = vmatpush1.msra.mxu0 0.0
        %811 = vmatprep.subr.mxu0 0.0
        %812 = vmatpush1.msra.mxu0 0.0
        %813 = vmatprep.subr.mxu0 0.0
        %814 = vmatpush1.msra.mxu0 0.0
        %815 = vmatprep.subr.mxu0 0.0
        %816 = vmatpush1.msra.mxu0 0.0
        %817 = vmatprep.subr.mxu0 0.0
        %818 = vmatpush1.msra.mxu0 0.0
        %819 = vmatprep.subr.mxu0 0.0
        %820 = vmatpush1.msra.mxu0 0.0
        %821 = vmatprep.subr.mxu0 0.0
        %822 = vmatpush1.msra.mxu0 0.0
        %823 = vmatprep.subr.mxu0 0.0
        %824 = vmatpush1.msra.mxu0 0.0
        %825 = vmatprep.subr.mxu0 0.0
        %826 = vmatpush1.msra.mxu0 0.0
        %827 = vmatprep.subr.mxu0 0.0
        %828 = vmatpush1.msra.mxu0 0.0
        %829 = vmatprep.subr.mxu0 0.0
        %830 = vmatpush1.msra.mxu0 0.0
        %831 = vmatprep.subr.mxu0 0.0
        %832 = vmatpush1.msra.mxu0 0.0
        %833 = vmatprep.subr.mxu0 0.0
        %834 = vmatpush1.msra.mxu0 0.0
        %835 = vmatprep.subr.mxu0 0.0
        %836 = vmatpush1.msra.mxu0 0.0
        %837 = vmatprep.mubr.f32.mxu0 0.0
        %838 = vmatmul.mubr.f32.gmra.mrb[0].mxu0 %v769
        %v839 = vpop.f32.mrb[0].mxu0
        %v840 = vadd.f32 %v762, %v839
        %v841 = vpop.f32.mrb[0].mxu0
        %v842 = vadd.f32 %v762, %v841
        %843 = vmatprep.mubr.f32.mxu0 0.0
        %844 = vmatmul.mubr.f32.gmra.mrb[0].mxu0 %v771
        %v845 = vpop.f32.mrb[0].mxu0
        %v846 = vadd.f32 %v767, %v845
        %v847 = vpop.f32.mrb[0].mxu0
        %v848 = vadd.f32 %v767, %v847
        %849 = vdwg.mxu0
        %v850 = vmax.f32 %v840, 0.0
        %v851 = vmax.f32 %v842, 0.0
        %v852 = vmax.f32 %v846, 0.0
        %v853 = vmax.f32 %v848, 0.0
        %v854 = vld [vmem:[#allocation2 + $0x18] sm:$0xff]
        %v855 = vld [vmem:[#allocation2 + $0x20] sm:$0xff]
        %v856 = vld [vmem:[#allocation2 + $0xb8] sm:$0xff]
        %v857 = vld [vmem:[#allocation2 + $0xc0] sm:$0xff]
        %858 = vrot.lane.b32.xlu0 %v850, 34
        %v859 = vpop.permute.xlu0 %858
        %860 = vrot.lane.b32.xlu0 %v852, 34
        %v861 = vpop.permute.xlu0 %860
        %862 = vrot.lane.b32.xlu0 %v851, 34
        %v863 = vpop.permute.xlu0 %862
        %864 = vrot.lane.b32.xlu0 %v853, 34
        %v865 = vpop.permute.xlu0 %864
        %v866 = vsel %vm627, %v859, %v863
        %v867 = vsel %vm627, %v861, %v865
        %v868 = vsel %vm627, %v863, %v859
        %v869 = vsel %vm627, %v865, %v861
        %v870 = vmul.f32 %v868, %v633
        %v871 = vmul.f32 %v866, %v637
        %v872 = vmul.f32 %v869, %v633
        %v873 = vmul.f32 %v867, %v637
        %874 = vrot.lane.b32.xlu0 %v850, 32
        %v875 = vpop.permute.xlu0 %874
        %876 = vrot.lane.b32.xlu0 %v852, 32
        %v877 = vpop.permute.xlu0 %876
        %878 = vrot.lane.b32.xlu0 %v851, 32
        %v879 = vpop.permute.xlu0 %878
        %880 = vrot.lane.b32.xlu0 %v853, 32
        %v881 = vpop.permute.xlu0 %880
        %v882 = vsel %vm644, %v875, %v879
        %v883 = vsel %vm644, %v877, %v881
        %v884 = vsel %vm644, %v879, %v875
        %v885 = vsel %vm644, %v881, %v877
        %v886 = vmul.f32 %v884, %v650
        %v887 = vmul.f32 %v882, %v654
        %v888 = vmul.f32 %v885, %v650
        %v889 = vmul.f32 %v883, %v654
        %890 = vrot.lane.b32.xlu0 %v850, 30
        %v891 = vpop.permute.xlu0 %890
        %892 = vrot.lane.b32.xlu0 %v852, 30
        %v893 = vpop.permute.xlu0 %892
        %894 = vrot.lane.b32.xlu0 %v851, 30
        %v895 = vpop.permute.xlu0 %894
        %896 = vrot.lane.b32.xlu0 %v853, 30
        %v897 = vpop.permute.xlu0 %896
        %v898 = vsel %vm661, %v891, %v895
        %v899 = vsel %vm661, %v893, %v897
        %v900 = vsel %vm661, %v895, %v891
        %v901 = vsel %vm661, %v897, %v893
        %v902 = vmul.f32 %v900, %v667
        %v903 = vmul.f32 %v898, %v671
        %v904 = vmul.f32 %v901, %v667
        %v905 = vmul.f32 %v899, %v671
        %906 = vrot.lane.b32.xlu0 %v850, 2
        %v907 = vpop.permute.xlu0 %906
        %908 = vrot.lane.b32.xlu0 %v852, 2
        %v909 = vpop.permute.xlu0 %908
        %910 = vrot.lane.b32.xlu0 %v851, 2
        %v911 = vpop.permute.xlu0 %910
        %912 = vrot.lane.b32.xlu0 %v853, 2
        %v913 = vpop.permute.xlu0 %912
        %v914 = vsel %vm678, %v907, %v911
        %v915 = vsel %vm678, %v909, %v913
        %v916 = vsel %vm678, %v911, %v907
        %v917 = vsel %vm678, %v913, %v909
        %v918 = vmul.f32 %v916, %v684
        %v919 = vmul.f32 %v914, %v688
        %v920 = vmul.f32 %v917, %v684
        %v921 = vmul.f32 %v915, %v688
        %922 = vrot.lane.b32.xlu0 %v850, 126
        %v923 = vpop.permute.xlu0 %922
        %924 = vrot.lane.b32.xlu0 %v852, 126
        %v925 = vpop.permute.xlu0 %924
        %926 = vrot.lane.b32.xlu0 %v851, 126
        %v927 = vpop.permute.xlu0 %926
        %928 = vrot.lane.b32.xlu0 %v853, 126
        %v929 = vpop.permute.xlu0 %928
        %v930 = vsel %vm695, %v923, %v927
        %v931 = vsel %vm695, %v925, %v929
        %v932 = vsel %vm695, %v927, %v923
        %v933 = vsel %vm695, %v929, %v925
        %v934 = vmul.f32 %v930, %v701
        %v935 = vmul.f32 %v932, %v705
        %v936 = vmul.f32 %v931, %v701
        %v937 = vmul.f32 %v933, %v705
        %938 = vrot.lane.b32.xlu0 %v850, 98
        %v939 = vpop.permute.xlu0 %938
        %940 = vrot.lane.b32.xlu0 %v852, 98
        %v941 = vpop.permute.xlu0 %940
        %942 = vrot.lane.b32.xlu0 %v851, 98
        %v943 = vpop.permute.xlu0 %942
        %944 = vrot.lane.b32.xlu0 %v853, 98
        %v945 = vpop.permute.xlu0 %944
        %v946 = vsel %vm712, %v939, %v943
        %v947 = vsel %vm712, %v941, %v945
        %v948 = vsel %vm712, %v943, %v939
        %v949 = vsel %vm712, %v945, %v941
        %v950 = vmul.f32 %v946, %v718
        %v951 = vmul.f32 %v948, %v722
        %v952 = vmul.f32 %v947, %v718
        %v953 = vmul.f32 %v949, %v722
        %954 = vrot.lane.b32.xlu0 %v850, 96
        %v955 = vpop.permute.xlu0 %954
        %956 = vrot.lane.b32.xlu0 %v852, 96
        %v957 = vpop.permute.xlu0 %956
        %958 = vrot.lane.b32.xlu0 %v851, 96
        %v959 = vpop.permute.xlu0 %958
        %960 = vrot.lane.b32.xlu0 %v853, 96
        %v961 = vpop.permute.xlu0 %960
        %v962 = vsel %vm729, %v955, %v959
        %v963 = vsel %vm729, %v957, %v961
        %v964 = vsel %vm729, %v959, %v955
        %v965 = vsel %vm729, %v961, %v957
        %v966 = vmul.f32 %v962, %v735
        %v967 = vmul.f32 %v964, %v739
        %v968 = vmul.f32 %v963, %v735
        %v969 = vmul.f32 %v965, %v739
        %970 = vrot.lane.b32.xlu0 %v850, 94
        %v971 = vpop.permute.xlu0 %970
        %972 = vrot.lane.b32.xlu0 %v852, 94
        %v973 = vpop.permute.xlu0 %972
        %974 = vrot.lane.b32.xlu0 %v851, 94
        %v975 = vpop.permute.xlu0 %974
        %976 = vrot.lane.b32.xlu0 %v853, 94
        %v977 = vpop.permute.xlu0 %976
        %v978 = vsel %vm746, %v971, %v975
        %v979 = vsel %vm746, %v973, %v977
        %v980 = vsel %vm746, %v975, %v971
        %v981 = vsel %vm746, %v977, %v973
        %v982 = vmul.f32 %v978, %v752
        %v983 = vmul.f32 %v980, %v756
        %v984 = vmul.f32 %v979, %v752
        %v985 = vmul.f32 %v981, %v756
        %987 = vset.pattern.permute.xlu0 16
        %988 = vperm.xlu0 %987, %v855
        %v989 = vpop.permute.xlu0 %988
        %992 = vset.pattern.permute.xlu0 16
        %993 = vperm.xlu0 %992, %v857
        %v994 = vpop.permute.xlu0 %993
        %vm996 = vcmask 130048
        %v997 = vsel %vm996, %v855, 0
        %v999 = vsel %vm996, %v857, 0
        %1001 = vmatprep.subr.mxu0 %v871
        %1002 = vmatpush1.msra.mxu0 %v870
        %1003 = vmatprep.subr.mxu0 %v873
        %1004 = vmatpush1.msra.mxu0 %v872
        %1005 = vmatprep.subr.mxu0 %v887
        %1006 = vmatpush1.msra.mxu0 %v886
        %1007 = vmatprep.subr.mxu0 %v889
        %1008 = vmatpush1.msra.mxu0 %v888
        %1009 = vmatprep.subr.mxu0 %v903
        %1010 = vmatpush1.msra.mxu0 %v902
        %1011 = vmatprep.subr.mxu0 %v905
        %1012 = vmatpush1.msra.mxu0 %v904
        %1013 = vmatprep.subr.mxu0 %v919
        %1014 = vmatpush1.msra.mxu0 %v918
        %1015 = vmatprep.subr.mxu0 %v921
        %1016 = vmatpush1.msra.mxu0 %v920
        %1017 = vmatprep.subr.mxu0 %v851
        %1018 = vmatpush1.msra.mxu0 %v850
        %1019 = vmatprep.subr.mxu0 %v853
        %1020 = vmatpush1.msra.mxu0 %v852
        %1021 = vmatprep.subr.mxu0 %v935
        %1022 = vmatpush1.msra.mxu0 %v934
        %1023 = vmatprep.subr.mxu0 %v937
        %1024 = vmatpush1.msra.mxu0 %v936
        %1025 = vmatprep.subr.mxu0 %v951
        %1026 = vmatpush1.msra.mxu0 %v950
        %1027 = vmatprep.subr.mxu0 %v953
        %1028 = vmatpush1.msra.mxu0 %v952
        %1029 = vmatprep.subr.mxu0 %v967
        %1030 = vmatpush1.msra.mxu0 %v966
        %1031 = vmatprep.subr.mxu0 %v969
        %1032 = vmatpush1.msra.mxu0 %v968
        %1033 = vmatprep.subr.mxu0 %v983
        %1034 = vmatpush1.msra.mxu0 %v982
        %1035 = vmatprep.subr.mxu0 %v985
        %1036 = vmatpush1.msra.mxu0 %v984
        %1037 = vmatprep.subr.mxu0 0.0
        %1038 = vmatpush1.msra.mxu0 0.0
        %1039 = vmatprep.subr.mxu0 0.0
        %1040 = vmatpush1.msra.mxu0 0.0
        %1041 = vmatprep.subr.mxu0 0.0
        %1042 = vmatpush1.msra.mxu0 0.0
        %1043 = vmatprep.subr.mxu0 0.0
        %1044 = vmatpush1.msra.mxu0 0.0
        %1045 = vmatprep.subr.mxu0 0.0
        %1046 = vmatpush1.msra.mxu0 0.0
        %1047 = vmatprep.subr.mxu0 0.0
        %1048 = vmatpush1.msra.mxu0 0.0
        %1049 = vmatprep.subr.mxu0 0.0
        %1050 = vmatpush1.msra.mxu0 0.0
        %1051 = vmatprep.subr.mxu0 0.0
        %1052 = vmatpush1.msra.mxu0 0.0
        %1053 = vmatprep.subr.mxu0 0.0
        %1054 = vmatpush1.msra.mxu0 0.0
        %1055 = vmatprep.subr.mxu0 0.0
        %1056 = vmatpush1.msra.mxu0 0.0
        %1057 = vmatprep.subr.mxu0 0.0
        %1058 = vmatpush1.msra.mxu0 0.0
        %1059 = vmatprep.subr.mxu0 0.0
        %1060 = vmatpush1.msra.mxu0 0.0
        %1061 = vmatprep.subr.mxu0 0.0
        %1062 = vmatpush1.msra.mxu0 0.0
        %1063 = vmatprep.subr.mxu0 0.0
        %1064 = vmatpush1.msra.mxu0 0.0
        %1065 = vmatprep.mubr.f32.mxu0 %v997
        %1066 = vmatmul.mubr.f32.gmra.mrb[0].mxu0 %v854
        %v1067 = vpop.f32.mrb[0].mxu0
        %v1068 = vadd.f32 %v989, %v1067
        %v1069 = vpop.f32.mrb[0].mxu0
        %v1070 = vadd.f32 %v989, %v1069
        %1071 = vmatprep.mubr.f32.mxu0 %v999
        %1072 = vmatmul.mubr.f32.gmra.mrb[0].mxu0 %v856
        %v1073 = vpop.f32.mrb[0].mxu0
        %v1074 = vadd.f32 %v994, %v1073
        %v1075 = vpop.f32.mrb[0].mxu0
        %v1076 = vadd.f32 %v994, %v1075
        %1077 = vdwg.mxu0
        %v1078 = vmax.f32 %v1068, 0.0
        %v1079 = vmax.f32 %v1070, 0.0
        %v1080 = vmax.f32 %v1074, 0.0
        %v1081 = vmax.f32 %v1076, 0.0
        %1082 = vrot.lane.b32.xlu0 %v1078, 126
        %v1083 = vpop.permute.xlu0 %1082
        %1084 = vrot.lane.b32.xlu0 %v1080, 126
        %v1085 = vpop.permute.xlu0 %1084
        %1086 = vrot.lane.b32.xlu0 %v1079, 126
        %v1087 = vpop.permute.xlu0 %1086
        %1088 = vrot.lane.b32.xlu0 %v1081, 126
        %v1089 = vpop.permute.xlu0 %1088
        %v1090 = vsel %vm695, %v1083, %v1087
        %v1091 = vsel %vm695, %v1085, %v1089
        %v1092 = vsel %vm695, %v1087, %v1083
        %v1093 = vsel %vm695, %v1089, %v1085
        %1094 = vrot.lane.b32.xlu0 %v1078, 96
        %v1095 = vpop.permute.xlu0 %1094
        %1096 = vrot.lane.b32.xlu0 %v1080, 96
        %v1097 = vpop.permute.xlu0 %1096
        %1098 = vrot.lane.b32.xlu0 %v1079, 96
        %v1099 = vpop.permute.xlu0 %1098
        %1100 = vrot.lane.b32.xlu0 %v1081, 96
        %v1101 = vpop.permute.xlu0 %1100
        %v1102 = vsel %vm729, %v1095, %v1099
        %v1103 = vsel %vm729, %v1097, %v1101
        %v1104 = vsel %vm729, %v1099, %v1095
        %v1105 = vsel %vm729, %v1101, %v1097
        %1106 = vrot.lane.b32.xlu0 %v1078, 94
        %v1107 = vpop.permute.xlu0 %1106
        %1108 = vrot.lane.b32.xlu0 %v1080, 94
        %v1109 = vpop.permute.xlu0 %1108
        %1110 = vrot.lane.b32.xlu0 %v1079, 94
        %v1111 = vpop.permute.xlu0 %1110
        %1112 = vrot.lane.b32.xlu0 %v1081, 94
        %v1113 = vpop.permute.xlu0 %1112
        %v1114 = vsel %vm746, %v1107, %v1111
        %v1115 = vsel %vm746, %v1109, %v1113
        %v1116 = vsel %vm746, %v1111, %v1107
        %v1117 = vsel %vm746, %v1113, %v1109
        %v1118 = vmax.f32 %v1078, %v1090
        %v1119 = vmax.f32 %v1079, %v1092
        %v1120 = vmax.f32 %v1080, %v1091
        %v1121 = vmax.f32 %v1081, %v1093
        %v1122 = vmax.f32 %v1102, %v1114
        %v1123 = vmax.f32 %v1104, %v1116
        %v1124 = vmax.f32 %v1103, %v1115
        %v1125 = vmax.f32 %v1105, %v1117
        %v1126 = vmax.f32 %v1118, %v1122
        %v1127 = vmax.f32 %v1119, %v1123
        %v1128 = vmax.f32 %v1120, %v1124
        %v1129 = vmax.f32 %v1121, %v1125
        %v1130 = vld [vmem:[#allocation2 + $0x28] sm:$0xff]
        %v1131 = vld [vmem:[#allocation2 + $0x30] sm:$0xff]
        %v1132 = vld [vmem:[#allocation2 + $0xc8] sm:$0xff]
        %v1133 = vld [vmem:[#allocation2 + $0xd0] sm:$0xff]
        %v1134 = vld [vmem:[#allocation2 + $0x168] sm:$0xff]
        %v1135 = vld [vmem:[#allocation2 + $0x170] sm:$0xff]
        %v1136 = vld [vmem:[#allocation2 + $0x208] sm:$0xff]
        %v1137 = vld [vmem:[#allocation2 + $0x210] sm:$0xff]
        %1138 = vrot.lane.b32.xlu0 %v1126, 68
        %v1139 = vpop.permute.xlu0 %1138
        %1140 = vrot.lane.b32.xlu0 %v1128, 68
        %v1141 = vpop.permute.xlu0 %1140
        %1142 = vrot.lane.b32.xlu0 %v1127, 68
        %v1143 = vpop.permute.xlu0 %1142
        %1144 = vrot.lane.b32.xlu0 %v1129, 68
        %v1145 = vpop.permute.xlu0 %1144
        %vm1146 = vcmp.lt.s32.totalorder %v238, 68
        %v1147 = vsel %vm1146, %v1139, %v1143
        %v1148 = vsel %vm1146, %v1141, %v1145
        %v1149 = vsel %vm1146, %v1143, %v1139
        %v1150 = vsel %vm1146, %v1145, %v1141
        %v1151 = vlaneseq
        %v1152 = vshrl.u32 %v1151, 7
        %v1153 = vsub.s32 0, %v1152
        %v1154 = vrot.slane %v225, %v1153
        %v1155 = vlaneseq
        %v1156 = vshrl.u32 %v1155, 7
        %v1157 = vsub.s32 0, %v1156
        %v1158 = vrot.slane %v226, %v1157
        %v1159 = vmul.f32 %v1149, %v1154
        %v1160 = vmul.f32 %v1147, %v1158
        %v1161 = vmul.f32 %v1150, %v1154
        %v1162 = vmul.f32 %v1148, %v1158
        %1163 = vrot.lane.b32.xlu0 %v1126, 64
        %v1164 = vpop.permute.xlu0 %1163
        %1165 = vrot.lane.b32.xlu0 %v1128, 64
        %v1166 = vpop.permute.xlu0 %1165
        %1167 = vrot.lane.b32.xlu0 %v1127, 64
        %v1168 = vpop.permute.xlu0 %1167
        %1169 = vrot.lane.b32.xlu0 %v1129, 64
        %v1170 = vpop.permute.xlu0 %1169
        %vm1171 = vcmp.lt.s32.totalorder %v238, 64
        %v1172 = vsel %vm1171, %v1164, %v1168
        %v1173 = vsel %vm1171, %v1166, %v1170
        %v1174 = vsel %vm1171, %v1168, %v1164
        %v1175 = vsel %vm1171, %v1170, %v1166
        %v1176 = vlaneseq
        %v1177 = vshrl.u32 %v1176, 7
        %v1178 = vsub.s32 1, %v1177
        %v1179 = vrot.slane %v225, %v1178
        %v1180 = vlaneseq
        %v1181 = vshrl.u32 %v1180, 7
        %v1182 = vsub.s32 1, %v1181
        %v1183 = vrot.slane %v226, %v1182
        %v1184 = vmul.f32 %v1174, %v1179
        %v1185 = vmul.f32 %v1172, %v1183
        %v1186 = vmul.f32 %v1175, %v1179
        %v1187 = vmul.f32 %v1173, %v1183
        %1188 = vrot.lane.b32.xlu0 %v1126, 60
        %v1189 = vpop.permute.xlu0 %1188
        %1190 = vrot.lane.b32.xlu0 %v1128, 60
        %v1191 = vpop.permute.xlu0 %1190
        %1192 = vrot.lane.b32.xlu0 %v1127, 60
        %v1193 = vpop.permute.xlu0 %1192
        %1194 = vrot.lane.b32.xlu0 %v1129, 60
        %v1195 = vpop.permute.xlu0 %1194
        %vm1196 = vcmp.lt.s32.totalorder %v238, 60
        %v1197 = vsel %vm1196, %v1189, %v1193
        %v1198 = vsel %vm1196, %v1191, %v1195
        %v1199 = vsel %vm1196, %v1193, %v1189
        %v1200 = vsel %vm1196, %v1195, %v1191
        %v1201 = vlaneseq
        %v1202 = vshrl.u32 %v1201, 7
        %v1203 = vsub.s32 2, %v1202
        %v1204 = vrot.slane %v225, %v1203
        %v1205 = vlaneseq
        %v1206 = vshrl.u32 %v1205, 7
        %v1207 = vsub.s32 2, %v1206
        %v1208 = vrot.slane %v226, %v1207
        %v1209 = vmul.f32 %v1199, %v1204
        %v1210 = vmul.f32 %v1197, %v1208
        %v1211 = vmul.f32 %v1200, %v1204
        %v1212 = vmul.f32 %v1198, %v1208
        %1213 = vrot.lane.b32.xlu0 %v1126, 4
        %v1214 = vpop.permute.xlu0 %1213
        %1215 = vrot.lane.b32.xlu0 %v1128, 4
        %v1216 = vpop.permute.xlu0 %1215
        %1217 = vrot.lane.b32.xlu0 %v1127, 4
        %v1218 = vpop.permute.xlu0 %1217
        %1219 = vrot.lane.b32.xlu0 %v1129, 4
        %v1220 = vpop.permute.xlu0 %1219
        %vm1221 = vcmp.lt.s32.totalorder %v238, 4
        %v1222 = vsel %vm1221, %v1214, %v1218
        %v1223 = vsel %vm1221, %v1216, %v1220
        %v1224 = vsel %vm1221, %v1218, %v1214
        %v1225 = vsel %vm1221, %v1220, %v1216
        %v1226 = vlaneseq
        %v1227 = vshrl.u32 %v1226, 7
        %v1228 = vsub.s32 3, %v1227
        %v1229 = vrot.slane %v225, %v1228
        %v1230 = vlaneseq
        %v1231 = vshrl.u32 %v1230, 7
        %v1232 = vsub.s32 3, %v1231
        %v1233 = vrot.slane %v226, %v1232
        %v1234 = vmul.f32 %v1224, %v1229
        %v1235 = vmul.f32 %v1222, %v1233
        %v1236 = vmul.f32 %v1225, %v1229
        %v1237 = vmul.f32 %v1223, %v1233
        %1238 = vrot.lane.b32.xlu0 %v1126, 124
        %v1239 = vpop.permute.xlu0 %1238
        %1240 = vrot.lane.b32.xlu0 %v1128, 124
        %v1241 = vpop.permute.xlu0 %1240
        %1242 = vrot.lane.b32.xlu0 %v1127, 124
        %v1243 = vpop.permute.xlu0 %1242
        %1244 = vrot.lane.b32.xlu0 %v1129, 124
        %v1245 = vpop.permute.xlu0 %1244
        %vm1246 = vcmp.lt.s32.totalorder %v238, 124
        %v1247 = vsel %vm1246, %v1239, %v1243
        %v1248 = vsel %vm1246, %v1241, %v1245
        %v1249 = vsel %vm1246, %v1243, %v1239
        %v1250 = vsel %vm1246, %v1245, %v1241
        %v1251 = vlaneseq
        %v1252 = vshrl.u32 %v1251, 7
        %v1253 = vsub.s32 5, %v1252
        %v1254 = vrot.slane %v225, %v1253
        %v1255 = vlaneseq
        %v1256 = vshrl.u32 %v1255, 7
        %v1257 = vsub.s32 5, %v1256
        %v1258 = vrot.slane %v226, %v1257
        %v1259 = vmul.f32 %v1247, %v1254
        %v1260 = vmul.f32 %v1249, %v1258
        %v1261 = vmul.f32 %v1248, %v1254
        %v1262 = vmul.f32 %v1250, %v1258
        %v1263 = vlaneseq
        %v1264 = vshrl.u32 %v1263, 7
        %v1265 = vsub.s32 6, %v1264
        %v1266 = vrot.slane %v225, %v1265
        %v1267 = vlaneseq
        %v1268 = vshrl.u32 %v1267, 7
        %v1269 = vsub.s32 6, %v1268
        %v1270 = vrot.slane %v226, %v1269
        %v1271 = vmul.f32 %v1147, %v1266
        %v1272 = vmul.f32 %v1149, %v1270
        %v1273 = vmul.f32 %v1148, %v1266
        %v1274 = vmul.f32 %v1150, %v1270
        %v1275 = vlaneseq
        %v1276 = vshrl.u32 %v1275, 7
        %v1277 = vsub.s32 7, %v1276
        %v1278 = vrot.slane %v225, %v1277
        %v1279 = vlaneseq
        %v1280 = vshrl.u32 %v1279, 7
        %v1281 = vsub.s32 7, %v1280
        %v1282 = vrot.slane %v226, %v1281
        %v1283 = vmul.f32 %v1172, %v1278
        %v1284 = vmul.f32 %v1174, %v1282
        %v1285 = vmul.f32 %v1173, %v1278
        %v1286 = vmul.f32 %v1175, %v1282
        %v1287 = vlaneseq
        %v1288 = vshrl.u32 %v1287, 7
        %v1289 = vsub.s32 0, %v1288
        %v1290 = vrot.slane %v227, %v1289
        %v1291 = vlaneseq
        %v1292 = vshrl.u32 %v1291, 7
        %v1293 = vsub.s32 0, %v1292
        %v1294 = vrot.slane %v228, %v1293
        %v1295 = vmul.f32 %v1197, %v1290
        %v1296 = vmul.f32 %v1199, %v1294
        %v1297 = vmul.f32 %v1198, %v1290
        %v1298 = vmul.f32 %v1200, %v1294
        %1300 = vset.pattern.permute.xlu0 16
        %1301 = vperm.xlu0 %1300, %v1131
        %v1302 = vpop.permute.xlu0 %1301
        %1305 = vset.pattern.permute.xlu0 16
        %1306 = vperm.xlu0 %1305, %v1133
        %v1307 = vpop.permute.xlu0 %1306
        %1310 = vset.pattern.permute.xlu0 16
        %1311 = vperm.xlu0 %1310, %v1135
        %v1312 = vpop.permute.xlu0 %1311
        %1315 = vset.pattern.permute.xlu0 16
        %1316 = vperm.xlu0 %1315, %v1137
        %v1317 = vpop.permute.xlu0 %1316
        %v1319 = vsel %vm996, %v1131, 0
        %v1321 = vsel %vm996, %v1133, 0
        %v1323 = vsel %vm996, %v1135, 0
        %v1325 = vsel %vm996, %v1137, 0
        %1327 = vmatprep.subr.mxu0 %v1160
        %1328 = vmatpush1.msra.mxu0 %v1159
        %1329 = vmatprep.subr.mxu0 %v1162
        %1330 = vmatpush1.msra.mxu0 %v1161
        %1331 = vmatprep.subr.mxu0 %v1185
        %1332 = vmatpush1.msra.mxu0 %v1184
        %1333 = vmatprep.subr.mxu0 %v1187
        %1334 = vmatpush1.msra.mxu0 %v1186
        %1335 = vmatprep.subr.mxu0 %v1210
        %1336 = vmatpush1.msra.mxu0 %v1209
        %1337 = vmatprep.subr.mxu0 %v1212
        %1338 = vmatpush1.msra.mxu0 %v1211
        %1339 = vmatprep.subr.mxu0 %v1235
        %1340 = vmatpush1.msra.mxu0 %v1234
        %1341 = vmatprep.subr.mxu0 %v1237
        %1342 = vmatpush1.msra.mxu0 %v1236
        %1343 = vmatprep.subr.mxu0 %v1127
        %1344 = vmatpush1.msra.mxu0 %v1126
        %1345 = vmatprep.subr.mxu0 %v1129
        %1346 = vmatpush1.msra.mxu0 %v1128
        %1347 = vmatprep.subr.mxu0 %v1260
        %1348 = vmatpush1.msra.mxu0 %v1259
        %1349 = vmatprep.subr.mxu0 %v1262
        %1350 = vmatpush1.msra.mxu0 %v1261
        %1351 = vmatprep.subr.mxu0 %v1272
        %1352 = vmatpush1.msra.mxu0 %v1271
        %1353 = vmatprep.subr.mxu0 %v1274
        %1354 = vmatpush1.msra.mxu0 %v1273
        %1355 = vmatprep.subr.mxu0 %v1284
        %1356 = vmatpush1.msra.mxu0 %v1283
        %1357 = vmatprep.subr.mxu0 %v1286
        %1358 = vmatpush1.msra.mxu0 %v1285
        %1359 = vmatprep.subr.mxu0 %v1296
        %1360 = vmatpush1.msra.mxu0 %v1295
        %1361 = vmatprep.subr.mxu0 %v1298
        %1362 = vmatpush1.msra.mxu0 %v1297
        %1363 = vmatprep.subr.mxu0 0.0
        %1364 = vmatpush1.msra.mxu0 0.0
        %1365 = vmatprep.subr.mxu0 0.0
        %1366 = vmatpush1.msra.mxu0 0.0
        %1367 = vmatprep.subr.mxu0 0.0
        %1368 = vmatpush1.msra.mxu0 0.0
        %1369 = vmatprep.subr.mxu0 0.0
        %1370 = vmatpush1.msra.mxu0 0.0
        %1371 = vmatprep.subr.mxu0 0.0
        %1372 = vmatpush1.msra.mxu0 0.0
        %1373 = vmatprep.subr.mxu0 0.0
        %1374 = vmatpush1.msra.mxu0 0.0
        %1375 = vmatprep.subr.mxu0 0.0
        %1376 = vmatpush1.msra.mxu0 0.0
        %1377 = vmatprep.subr.mxu0 0.0
        %1378 = vmatpush1.msra.mxu0 0.0
        %1379 = vmatprep.subr.mxu0 0.0
        %1380 = vmatpush1.msra.mxu0 0.0
        %1381 = vmatprep.subr.mxu0 0.0
        %1382 = vmatpush1.msra.mxu0 0.0
        %1383 = vmatprep.subr.mxu0 0.0
        %1384 = vmatpush1.msra.mxu0 0.0
        %1385 = vmatprep.subr.mxu0 0.0
        %1386 = vmatpush1.msra.mxu0 0.0
        %1387 = vmatprep.subr.mxu0 0.0
        %1388 = vmatpush1.msra.mxu0 0.0
        %1389 = vmatprep.subr.mxu0 0.0
        %1390 = vmatpush1.msra.mxu0 0.0
        %1391 = vmatprep.mubr.f32.mxu0 %v1319
        %1392 = vmatmul.mubr.f32.gmra.mrb[0].mxu0 %v1130
        %v1393 = vpop.f32.mrb[0].mxu0
        %v1394 = vadd.f32 %v1302, %v1393
        %v1395 = vpop.f32.mrb[0].mxu0
        %v1396 = vadd.f32 %v1302, %v1395
        %1397 = vmatprep.mubr.f32.mxu0 %v1321
        %1398 = vmatmul.mubr.f32.gmra.mrb[0].mxu0 %v1132
        %v1399 = vpop.f32.mrb[0].mxu0
        %v1400 = vadd.f32 %v1307, %v1399
        %v1401 = vpop.f32.mrb[0].mxu0
        %v1402 = vadd.f32 %v1307, %v1401
        %1403 = vmatprep.mubr.f32.mxu0 %v1323
        %1404 = vmatmul.mubr.f32.gmra.mrb[0].mxu0 %v1134
        %v1405 = vpop.f32.mrb[0].mxu0
        %v1406 = vadd.f32 %v1312, %v1405
        %v1407 = vpop.f32.mrb[0].mxu0
        %v1408 = vadd.f32 %v1312, %v1407
        %1409 = vmatprep.mubr.f32.mxu0 %v1325
        %1410 = vmatmul.mubr.f32.gmra.mrb[0].mxu0 %v1136
        %v1411 = vpop.f32.mrb[0].mxu0
        %v1412 = vadd.f32 %v1317, %v1411
        %v1413 = vpop.f32.mrb[0].mxu0
        %v1414 = vadd.f32 %v1317, %v1413
        %1415 = vdwg.mxu0
        %v1416 = vmax.f32 %v1394, 0.0
        %v1417 = vmax.f32 %v1396, 0.0
        %v1418 = vmax.f32 %v1400, 0.0
        %v1419 = vmax.f32 %v1402, 0.0
        %v1420 = vmax.f32 %v1406, 0.0
        %v1421 = vmax.f32 %v1408, 0.0
        %v1422 = vmax.f32 %v1412, 0.0
        %v1423 = vmax.f32 %v1414, 0.0
        %v1424 = vld [vmem:[#allocation2 + $0x38] sm:$0xff]
        %v1425 = vld [vmem:[#allocation2 + $0x40] sm:$0xff]
        %v1426 = vld [vmem:[#allocation2 + $0x48] sm:$0xff]
        %v1427 = vld [vmem:[#allocation2 + $0xd8] sm:$0xff]
        %v1428 = vld [vmem:[#allocation2 + $0xe0] sm:$0xff]
        %v1429 = vld [vmem:[#allocation2 + $0xe8] sm:$0xff]
        %v1430 = vld [vmem:[#allocation2 + $0x178] sm:$0xff]
        %v1431 = vld [vmem:[#allocation2 + $0x180] sm:$0xff]
        %v1432 = vld [vmem:[#allocation2 + $0x188] sm:$0xff]
        %v1433 = vld [vmem:[#allocation2 + $0x218] sm:$0xff]
        %v1434 = vld [vmem:[#allocation2 + $0x220] sm:$0xff]
        %v1435 = vld [vmem:[#allocation2 + $0x228] sm:$0xff]
        %1436 = vrot.lane.b32.xlu0 %v1416, 68
        %v1437 = vpop.permute.xlu0 %1436
        %1438 = vrot.lane.b32.xlu0 %v1418, 68
        %v1439 = vpop.permute.xlu0 %1438
        %1440 = vrot.lane.b32.xlu0 %v1420, 68
        %v1441 = vpop.permute.xlu0 %1440
        %1442 = vrot.lane.b32.xlu0 %v1422, 68
        %v1443 = vpop.permute.xlu0 %1442
        %1444 = vrot.lane.b32.xlu0 %v1417, 68
        %v1445 = vpop.permute.xlu0 %1444
        %1446 = vrot.lane.b32.xlu0 %v1419, 68
        %v1447 = vpop.permute.xlu0 %1446
        %1448 = vrot.lane.b32.xlu0 %v1421, 68
        %v1449 = vpop.permute.xlu0 %1448
        %1450 = vrot.lane.b32.xlu0 %v1423, 68
        %v1451 = vpop.permute.xlu0 %1450
        %v1452 = vsel %vm1146, %v1437, %v1445
        %v1453 = vsel %vm1146, %v1439, %v1447
        %v1454 = vsel %vm1146, %v1441, %v1449
        %v1455 = vsel %vm1146, %v1443, %v1451
        %v1456 = vsel %vm1146, %v1445, %v1437
        %v1457 = vsel %vm1146, %v1447, %v1439
        %v1458 = vsel %vm1146, %v1449, %v1441
        %v1459 = vsel %vm1146, %v1451, %v1443
        %v1460 = vmul.f32 %v1456, %v1154
        %v1461 = vmul.f32 %v1452, %v1158
        %v1462 = vmul.f32 %v1457, %v1154
        %v1463 = vmul.f32 %v1453, %v1158
        %v1464 = vmul.f32 %v1458, %v1154
        %v1465 = vmul.f32 %v1454, %v1158
        %v1466 = vmul.f32 %v1459, %v1154
        %v1467 = vmul.f32 %v1455, %v1158
        %1468 = vrot.lane.b32.xlu0 %v1416, 64
        %v1469 = vpop.permute.xlu0 %1468
        %1470 = vrot.lane.b32.xlu0 %v1418, 64
        %v1471 = vpop.permute.xlu0 %1470
        %1472 = vrot.lane.b32.xlu0 %v1420, 64
        %v1473 = vpop.permute.xlu0 %1472
        %1474 = vrot.lane.b32.xlu0 %v1422, 64
        %v1475 = vpop.permute.xlu0 %1474
        %1476 = vrot.lane.b32.xlu0 %v1417, 64
        %v1477 = vpop.permute.xlu0 %1476
        %1478 = vrot.lane.b32.xlu0 %v1419, 64
        %v1479 = vpop.permute.xlu0 %1478
        %1480 = vrot.lane.b32.xlu0 %v1421, 64
        %v1481 = vpop.permute.xlu0 %1480
        %1482 = vrot.lane.b32.xlu0 %v1423, 64
        %v1483 = vpop.permute.xlu0 %1482
        %v1484 = vsel %vm1171, %v1469, %v1477
        %v1485 = vsel %vm1171, %v1471, %v1479
        %v1486 = vsel %vm1171, %v1473, %v1481
        %v1487 = vsel %vm1171, %v1475, %v1483
        %v1488 = vsel %vm1171, %v1477, %v1469
        %v1489 = vsel %vm1171, %v1479, %v1471
        %v1490 = vsel %vm1171, %v1481, %v1473
        %v1491 = vsel %vm1171, %v1483, %v1475
        %v1492 = vmul.f32 %v1488, %v1179
        %v1493 = vmul.f32 %v1484, %v1183
        %v1494 = vmul.f32 %v1489, %v1179
        %v1495 = vmul.f32 %v1485, %v1183
        %v1496 = vmul.f32 %v1490, %v1179
        %v1497 = vmul.f32 %v1486, %v1183
        %v1498 = vmul.f32 %v1491, %v1179
        %v1499 = vmul.f32 %v1487, %v1183
        %1500 = vrot.lane.b32.xlu0 %v1416, 60
        %v1501 = vpop.permute.xlu0 %1500
        %1502 = vrot.lane.b32.xlu0 %v1418, 60
        %v1503 = vpop.permute.xlu0 %1502
        %1504 = vrot.lane.b32.xlu0 %v1420, 60
        %v1505 = vpop.permute.xlu0 %1504
        %1506 = vrot.lane.b32.xlu0 %v1422, 60
        %v1507 = vpop.permute.xlu0 %1506
        %1508 = vrot.lane.b32.xlu0 %v1417, 60
        %v1509 = vpop.permute.xlu0 %1508
        %1510 = vrot.lane.b32.xlu0 %v1419, 60
        %v1511 = vpop.permute.xlu0 %1510
        %1512 = vrot.lane.b32.xlu0 %v1421, 60
        %v1513 = vpop.permute.xlu0 %1512
        %1514 = vrot.lane.b32.xlu0 %v1423, 60
        %v1515 = vpop.permute.xlu0 %1514
        %v1516 = vsel %vm1196, %v1501, %v1509
        %v1517 = vsel %vm1196, %v1503, %v1511
        %v1518 = vsel %vm1196, %v1505, %v1513
        %v1519 = vsel %vm1196, %v1507, %v1515
        %v1520 = vsel %vm1196, %v1509, %v1501
        %v1521 = vsel %vm1196, %v1511, %v1503
        %v1522 = vsel %vm1196, %v1513, %v1505
        %v1523 = vsel %vm1196, %v1515, %v1507
        %v1524 = vmul.f32 %v1520, %v1204
        %v1525 = vmul.f32 %v1516, %v1208
        %v1526 = vmul.f32 %v1521, %v1204
        %v1527 = vmul.f32 %v1517, %v1208
        %v1528 = vmul.f32 %v1522, %v1204
        %v1529 = vmul.f32 %v1518, %v1208
        %v1530 = vmul.f32 %v1523, %v1204
        %v1531 = vmul.f32 %v1519, %v1208
        %1532 = vrot.lane.b32.xlu0 %v1416, 4
        %v1533 = vpop.permute.xlu0 %1532
        %1534 = vrot.lane.b32.xlu0 %v1418, 4
        %v1535 = vpop.permute.xlu0 %1534
        %1536 = vrot.lane.b32.xlu0 %v1420, 4
        %v1537 = vpop.permute.xlu0 %1536
        %1538 = vrot.lane.b32.xlu0 %v1422, 4
        %v1539 = vpop.permute.xlu0 %1538
        %1540 = vrot.lane.b32.xlu0 %v1417, 4
        %v1541 = vpop.permute.xlu0 %1540
        %1542 = vrot.lane.b32.xlu0 %v1419, 4
        %v1543 = vpop.permute.xlu0 %1542
        %1544 = vrot.lane.b32.xlu0 %v1421, 4
        %v1545 = vpop.permute.xlu0 %1544
        %1546 = vrot.lane.b32.xlu0 %v1423, 4
        %v1547 = vpop.permute.xlu0 %1546
        %v1548 = vsel %vm1221, %v1533, %v1541
        %v1549 = vsel %vm1221, %v1535, %v1543
        %v1550 = vsel %vm1221, %v1537, %v1545
        %v1551 = vsel %vm1221, %v1539, %v1547
        %v1552 = vsel %vm1221, %v1541, %v1533
        %v1553 = vsel %vm1221, %v1543, %v1535
        %v1554 = vsel %vm1221, %v1545, %v1537
        %v1555 = vsel %vm1221, %v1547, %v1539
        %v1556 = vmul.f32 %v1552, %v1229
        %v1557 = vmul.f32 %v1548, %v1233
        %v1558 = vmul.f32 %v1553, %v1229
        %v1559 = vmul.f32 %v1549, %v1233
        %v1560 = vmul.f32 %v1554, %v1229
        %v1561 = vmul.f32 %v1550, %v1233
        %v1562 = vmul.f32 %v1555, %v1229
        %v1563 = vmul.f32 %v1551, %v1233
        %1564 = vrot.lane.b32.xlu0 %v1416, 124
        %v1565 = vpop.permute.xlu0 %1564
        %1566 = vrot.lane.b32.xlu0 %v1418, 124
        %v1567 = vpop.permute.xlu0 %1566
        %1568 = vrot.lane.b32.xlu0 %v1420, 124
        %v1569 = vpop.permute.xlu0 %1568
        %1570 = vrot.lane.b32.xlu0 %v1422, 124
        %v1571 = vpop.permute.xlu0 %1570
        %1572 = vrot.lane.b32.xlu0 %v1417, 124
        %v1573 = vpop.permute.xlu0 %1572
        %1574 = vrot.lane.b32.xlu0 %v1419, 124
        %v1575 = vpop.permute.xlu0 %1574
        %1576 = vrot.lane.b32.xlu0 %v1421, 124
        %v1577 = vpop.permute.xlu0 %1576
        %1578 = vrot.lane.b32.xlu0 %v1423, 124
        %v1579 = vpop.permute.xlu0 %1578
        %v1580 = vsel %vm1246, %v1565, %v1573
        %v1581 = vsel %vm1246, %v1567, %v1575
        %v1582 = vsel %vm1246, %v1569, %v1577
        %v1583 = vsel %vm1246, %v1571, %v1579
        %v1584 = vsel %vm1246, %v1573, %v1565
        %v1585 = vsel %vm1246, %v1575, %v1567
        %v1586 = vsel %vm1246, %v1577, %v1569
        %v1587 = vsel %vm1246, %v1579, %v1571
        %v1588 = vmul.f32 %v1580, %v1254
        %v1589 = vmul.f32 %v1584, %v1258
        %v1590 = vmul.f32 %v1581, %v1254
        %v1591 = vmul.f32 %v1585, %v1258
        %v1592 = vmul.f32 %v1582, %v1254
        %v1593 = vmul.f32 %v1586, %v1258
        %v1594 = vmul.f32 %v1583, %v1254
        %v1595 = vmul.f32 %v1587, %v1258
        %v1596 = vmul.f32 %v1452, %v1266
        %v1597 = vmul.f32 %v1456, %v1270
        %v1598 = vmul.f32 %v1453, %v1266
        %v1599 = vmul.f32 %v1457, %v1270
        %v1600 = vmul.f32 %v1454, %v1266
        %v1601 = vmul.f32 %v1458, %v1270
        %v1602 = vmul.f32 %v1455, %v1266
        %v1603 = vmul.f32 %v1459, %v1270
        %v1604 = vmul.f32 %v1484, %v1278
        %v1605 = vmul.f32 %v1488, %v1282
        %v1606 = vmul.f32 %v1485, %v1278
        %v1607 = vmul.f32 %v1489, %v1282
        %v1608 = vmul.f32 %v1486, %v1278
        %v1609 = vmul.f32 %v1490, %v1282
        %v1610 = vmul.f32 %v1487, %v1278
        %v1611 = vmul.f32 %v1491, %v1282
        %v1612 = vmul.f32 %v1516, %v1290
        %v1613 = vmul.f32 %v1520, %v1294
        %v1614 = vmul.f32 %v1517, %v1290
        %v1615 = vmul.f32 %v1521, %v1294
        %v1616 = vmul.f32 %v1518, %v1290
        %v1617 = vmul.f32 %v1522, %v1294
        %v1618 = vmul.f32 %v1519, %v1290
        %v1619 = vmul.f32 %v1523, %v1294
        %1621 = vset.pattern.permute.xlu0 32
        %1622 = vperm.xlu0 %1621, %v1426
        %v1623 = vpop.permute.xlu0 %1622
        %1626 = vset.pattern.permute.xlu0 32
        %1627 = vperm.xlu0 %1626, %v1429
        %v1628 = vpop.permute.xlu0 %1627
        %1631 = vset.pattern.permute.xlu0 32
        %1632 = vperm.xlu0 %1631, %v1432
        %v1633 = vpop.permute.xlu0 %1632
        %1636 = vset.pattern.permute.xlu0 32
        %1637 = vperm.xlu0 %1636, %v1435
        %v1638 = vpop.permute.xlu0 %1637
        %vm1640 = vcmask 261120
        %v1641 = vsel %vm1640, %v1426, 0
        %v1643 = vsel %vm1640, %v1429, 0
        %v1645 = vsel %vm1640, %v1432, 0
        %v1647 = vsel %vm1640, %v1435, 0
        %1649 = vmatprep.subr.mxu0 %v1461
        %1650 = vmatpush1.msra.mxu0 %v1460
        %1651 = vmatprep.subr.mxu0 %v1463
        %1652 = vmatpush1.msra.mxu0 %v1462
        %1653 = vmatprep.subr.mxu0 %v1465
        %1654 = vmatpush1.msra.mxu0 %v1464
        %1655 = vmatprep.subr.mxu0 %v1467
        %1656 = vmatpush1.msra.mxu0 %v1466
        %1657 = vmatprep.subr.mxu0 %v1493
        %1658 = vmatpush1.msra.mxu0 %v1492
        %1659 = vmatprep.subr.mxu0 %v1495
        %1660 = vmatpush1.msra.mxu0 %v1494
        %1661 = vmatprep.subr.mxu0 %v1497
        %1662 = vmatpush1.msra.mxu0 %v1496
        %1663 = vmatprep.subr.mxu0 %v1499
        %1664 = vmatpush1.msra.mxu0 %v1498
        %1665 = vmatprep.subr.mxu0 %v1525
        %1666 = vmatpush1.msra.mxu0 %v1524
        %1667 = vmatprep.subr.mxu0 %v1527
        %1668 = vmatpush1.msra.mxu0 %v1526
        %1669 = vmatprep.subr.mxu0 %v1529
        %1670 = vmatpush1.msra.mxu0 %v1528
        %1671 = vmatprep.subr.mxu0 %v1531
        %1672 = vmatpush1.msra.mxu0 %v1530
        %1673 = vmatprep.subr.mxu0 %v1557
        %1674 = vmatpush1.msra.mxu0 %v1556
        %1675 = vmatprep.subr.mxu0 %v1559
        %1676 = vmatpush1.msra.mxu0 %v1558
        %1677 = vmatprep.subr.mxu0 %v1561
        %1678 = vmatpush1.msra.mxu0 %v1560
        %1679 = vmatprep.subr.mxu0 %v1563
        %1680 = vmatpush1.msra.mxu0 %v1562
        %1681 = vmatprep.subr.mxu0 %v1417
        %1682 = vmatpush1.msra.mxu0 %v1416
        %1683 = vmatprep.subr.mxu0 %v1419
        %1684 = vmatpush1.msra.mxu0 %v1418
        %1685 = vmatprep.subr.mxu0 %v1421
        %1686 = vmatpush1.msra.mxu0 %v1420
        %1687 = vmatprep.subr.mxu0 %v1423
        %1688 = vmatpush1.msra.mxu0 %v1422
        %1689 = vmatprep.subr.mxu0 %v1589
        %1690 = vmatpush1.msra.mxu0 %v1588
        %1691 = vmatprep.subr.mxu0 %v1591
        %1692 = vmatpush1.msra.mxu0 %v1590
        %1693 = vmatprep.subr.mxu0 %v1593
        %1694 = vmatpush1.msra.mxu0 %v1592
        %1695 = vmatprep.subr.mxu0 %v1595
        %1696 = vmatpush1.msra.mxu0 %v1594
        %1697 = vmatprep.subr.mxu0 %v1597
        %1698 = vmatpush1.msra.mxu0 %v1596
        %1699 = vmatprep.subr.mxu0 %v1599
        %1700 = vmatpush1.msra.mxu0 %v1598
        %1701 = vmatprep.subr.mxu0 %v1601
        %1702 = vmatpush1.msra.mxu0 %v1600
        %1703 = vmatprep.subr.mxu0 %v1603
        %1704 = vmatpush1.msra.mxu0 %v1602
        %1705 = vmatprep.subr.mxu0 %v1605
        %1706 = vmatpush1.msra.mxu0 %v1604
        %1707 = vmatprep.subr.mxu0 %v1607
        %1708 = vmatpush1.msra.mxu0 %v1606
        %1709 = vmatprep.subr.mxu0 %v1609
        %1710 = vmatpush1.msra.mxu0 %v1608
        %1711 = vmatprep.subr.mxu0 %v1611
        %1712 = vmatpush1.msra.mxu0 %v1610
        %1713 = vmatprep.mubr.f32.mxu0 %v1425
        %1714 = vmatmul.mubr.f32.gmra.mrb[0].mxu0 %v1424
        %v1715 = vpop.f32.mrb[0].mxu0
        %v1716 = vadd.f32 %v1623, %v1715
        %v1717 = vpop.f32.mrb[0].mxu0
        %v1718 = vadd.f32 %v1623, %v1717
        %1719 = vmatprep.mubr.f32.mxu0 %v1428
        %1720 = vmatmul.mubr.f32.gmra.mrb[0].mxu0 %v1427
        %v1721 = vpop.f32.mrb[0].mxu0
        %v1722 = vadd.f32 %v1628, %v1721
        %v1723 = vpop.f32.mrb[0].mxu0
        %v1724 = vadd.f32 %v1628, %v1723
        %1725 = vmatprep.mubr.f32.mxu0 %v1431
        %1726 = vmatmul.mubr.f32.gmra.mrb[0].mxu0 %v1430
        %v1727 = vpop.f32.mrb[0].mxu0
        %v1728 = vadd.f32 %v1633, %v1727
        %v1729 = vpop.f32.mrb[0].mxu0
        %v1730 = vadd.f32 %v1633, %v1729
        %1731 = vmatprep.mubr.f32.mxu0 %v1434
        %1732 = vmatmul.mubr.f32.gmra.mrb[0].mxu0 %v1433
        %v1733 = vpop.f32.mrb[0].mxu0
        %v1734 = vadd.f32 %v1638, %v1733
        %v1735 = vpop.f32.mrb[0].mxu0
        %v1736 = vadd.f32 %v1638, %v1735
        %1737 = vdwg.mxu0
        %1738 = vmatprep.subr.mxu0 %v1613
        %1739 = vmatpush1.msra.mxu0 %v1612
        %1740 = vmatprep.subr.mxu0 %v1615
        %1741 = vmatpush1.msra.mxu0 %v1614
        %1742 = vmatprep.subr.mxu0 %v1617
        %1743 = vmatpush1.msra.mxu0 %v1616
        %1744 = vmatprep.subr.mxu0 %v1619
        %1745 = vmatpush1.msra.mxu0 %v1618
        %1746 = vmatprep.subr.mxu0 0.0
        %1747 = vmatpush1.msra.mxu0 0.0
        %1748 = vmatprep.subr.mxu0 0.0
        %1749 = vmatpush1.msra.mxu0 0.0
        %1750 = vmatprep.subr.mxu0 0.0
        %1751 = vmatpush1.msra.mxu0 0.0
        %1752 = vmatprep.subr.mxu0 0.0
        %1753 = vmatpush1.msra.mxu0 0.0
        %1754 = vmatprep.subr.mxu0 0.0
        %1755 = vmatpush1.msra.mxu0 0.0
        %1756 = vmatprep.subr.mxu0 0.0
        %1757 = vmatpush1.msra.mxu0 0.0
        %1758 = vmatprep.subr.mxu0 0.0
        %1759 = vmatpush1.msra.mxu0 0.0
        %1760 = vmatprep.subr.mxu0 0.0
        %1761 = vmatpush1.msra.mxu0 0.0
        %1762 = vmatprep.subr.mxu0 0.0
        %1763 = vmatpush1.msra.mxu0 0.0
        %1764 = vmatprep.subr.mxu0 0.0
        %1765 = vmatpush1.msra.mxu0 0.0
        %1766 = vmatprep.subr.mxu0 0.0
        %1767 = vmatpush1.msra.mxu0 0.0
        %1768 = vmatprep.subr.mxu0 0.0
        %1769 = vmatpush1.msra.mxu0 0.0
        %1770 = vmatprep.subr.mxu0 0.0
        %1771 = vmatpush1.msra.mxu0 0.0
        %1772 = vmatprep.subr.mxu0 0.0
        %1773 = vmatpush1.msra.mxu0 0.0
        %1774 = vmatprep.subr.mxu0 0.0
        %1775 = vmatpush1.msra.mxu0 0.0
        %1776 = vmatprep.subr.mxu0 0.0
        %1777 = vmatpush1.msra.mxu0 0.0
        %1778 = vmatprep.subr.mxu0 0.0
        %1779 = vmatpush1.msra.mxu0 0.0
        %1780 = vmatprep.subr.mxu0 0.0
        %1781 = vmatpush1.msra.mxu0 0.0
        %1782 = vmatprep.subr.mxu0 0.0
        %1783 = vmatpush1.msra.mxu0 0.0
        %1784 = vmatprep.subr.mxu0 0.0
        %1785 = vmatpush1.msra.mxu0 0.0
        %1786 = vmatprep.subr.mxu0 0.0
        %1787 = vmatpush1.msra.mxu0 0.0
        %1788 = vmatprep.subr.mxu0 0.0
        %1789 = vmatpush1.msra.mxu0 0.0
        %1790 = vmatprep.subr.mxu0 0.0
        %1791 = vmatpush1.msra.mxu0 0.0
        %1792 = vmatprep.subr.mxu0 0.0
        %1793 = vmatpush1.msra.mxu0 0.0
        %1794 = vmatprep.subr.mxu0 0.0
        %1795 = vmatpush1.msra.mxu0 0.0
        %1796 = vmatprep.subr.mxu0 0.0
        %1797 = vmatpush1.msra.mxu0 0.0
        %1798 = vmatprep.subr.mxu0 0.0
        %1799 = vmatpush1.msra.mxu0 0.0
        %1800 = vmatprep.subr.mxu0 0.0
        %1801 = vmatpush1.msra.mxu0 0.0
        %1802 = vmatprep.mubr.f32.mxu0 0.0
        %1803 = vmatmul.mubr.f32.gmra.mrb[0].mxu0 %v1641
        %v1804 = vpop.f32.mrb[0].mxu0
        %v1805 = vadd.f32 %v1716, %v1804
        %v1806 = vpop.f32.mrb[0].mxu0
        %v1807 = vadd.f32 %v1718, %v1806
        %1808 = vmatprep.mubr.f32.mxu0 0.0
        %1809 = vmatmul.mubr.f32.gmra.mrb[0].mxu0 %v1643
        %v1810 = vpop.f32.mrb[0].mxu0
        %v1811 = vadd.f32 %v1722, %v1810
        %v1812 = vpop.f32.mrb[0].mxu0
        %v1813 = vadd.f32 %v1724, %v1812
        %1814 = vmatprep.mubr.f32.mxu0 0.0
        %1815 = vmatmul.mubr.f32.gmra.mrb[0].mxu0 %v1645
        %v1816 = vpop.f32.mrb[0].mxu0
        %v1817 = vadd.f32 %v1728, %v1816
        %v1818 = vpop.f32.mrb[0].mxu0
        %v1819 = vadd.f32 %v1730, %v1818
        %1820 = vmatprep.mubr.f32.mxu0 0.0
        %1821 = vmatmul.mubr.f32.gmra.mrb[0].mxu0 %v1647
        %v1822 = vpop.f32.mrb[0].mxu0
        %v1823 = vadd.f32 %v1734, %v1822
        %v1824 = vpop.f32.mrb[0].mxu0
        %v1825 = vadd.f32 %v1736, %v1824
        %1826 = vdwg.mxu0
        %v1827 = vmax.f32 %v1805, 0.0
        %v1828 = vmax.f32 %v1807, 0.0
        %v1829 = vmax.f32 %v1811, 0.0
        %v1830 = vmax.f32 %v1813, 0.0
        %v1831 = vmax.f32 %v1817, 0.0
        %v1832 = vmax.f32 %v1819, 0.0
        %v1833 = vmax.f32 %v1823, 0.0
        %v1834 = vmax.f32 %v1825, 0.0
        %1835 = vrot.lane.b32.xlu0 %v1827, 32
        %v1836 = vpop.permute.xlu0 %1835
        %1837 = vrot.lane.b32.xlu0 %v1829, 32
        %v1838 = vpop.permute.xlu0 %1837
        %1839 = vrot.lane.b32.xlu0 %v1831, 32
        %v1840 = vpop.permute.xlu0 %1839
        %1841 = vrot.lane.b32.xlu0 %v1833, 32
        %v1842 = vpop.permute.xlu0 %1841
        %1843 = vrot.lane.b32.xlu0 %v1828, 32
        %v1844 = vpop.permute.xlu0 %1843
        %1845 = vrot.lane.b32.xlu0 %v1830, 32
        %v1846 = vpop.permute.xlu0 %1845
        %1847 = vrot.lane.b32.xlu0 %v1832, 32
        %v1848 = vpop.permute.xlu0 %1847
        %1849 = vrot.lane.b32.xlu0 %v1834, 32
        %v1850 = vpop.permute.xlu0 %1849
        %v1851 = vsel %vm644, %v1836, %v1844
        %v1852 = vsel %vm644, %v1838, %v1846
        %v1853 = vsel %vm644, %v1840, %v1848
        %v1854 = vsel %vm644, %v1842, %v1850
        %v1855 = vsel %vm644, %v1844, %v1836
        %v1856 = vsel %vm644, %v1846, %v1838
        %v1857 = vsel %vm644, %v1848, %v1840
        %v1858 = vsel %vm644, %v1850, %v1842
        %1859 = vrot.lane.b32.xlu0 %v1827, 2
        %v1860 = vpop.permute.xlu0 %1859
        %1861 = vrot.lane.b32.xlu0 %v1829, 2
        %v1862 = vpop.permute.xlu0 %1861
        %1863 = vrot.lane.b32.xlu0 %v1831, 2
        %v1864 = vpop.permute.xlu0 %1863
        %1865 = vrot.lane.b32.xlu0 %v1833, 2
        %v1866 = vpop.permute.xlu0 %1865
        %1867 = vrot.lane.b32.xlu0 %v1828, 2
        %v1868 = vpop.permute.xlu0 %1867
        %1869 = vrot.lane.b32.xlu0 %v1830, 2
        %v1870 = vpop.permute.xlu0 %1869
        %1871 = vrot.lane.b32.xlu0 %v1832, 2
        %v1872 = vpop.permute.xlu0 %1871
        %1873 = vrot.lane.b32.xlu0 %v1834, 2
        %v1874 = vpop.permute.xlu0 %1873
        %v1875 = vsel %vm678, %v1860, %v1868
        %v1876 = vsel %vm678, %v1862, %v1870
        %v1877 = vsel %vm678, %v1864, %v1872
        %v1878 = vsel %vm678, %v1866, %v1874
        %v1879 = vsel %vm678, %v1868, %v1860
        %v1880 = vsel %vm678, %v1870, %v1862
        %v1881 = vsel %vm678, %v1872, %v1864
        %v1882 = vsel %vm678, %v1874, %v1866
        %1883 = vrot.lane.b32.xlu0 %v1827, 34
        %v1884 = vpop.permute.xlu0 %1883
        %1885 = vrot.lane.b32.xlu0 %v1829, 34
        %v1886 = vpop.permute.xlu0 %1885
        %1887 = vrot.lane.b32.xlu0 %v1831, 34
        %v1888 = vpop.permute.xlu0 %1887
        %1889 = vrot.lane.b32.xlu0 %v1833, 34
        %v1890 = vpop.permute.xlu0 %1889
        %1891 = vrot.lane.b32.xlu0 %v1828, 34
        %v1892 = vpop.permute.xlu0 %1891
        %1893 = vrot.lane.b32.xlu0 %v1830, 34
        %v1894 = vpop.permute.xlu0 %1893
        %1895 = vrot.lane.b32.xlu0 %v1832, 34
        %v1896 = vpop.permute.xlu0 %1895
        %1897 = vrot.lane.b32.xlu0 %v1834, 34
        %v1898 = vpop.permute.xlu0 %1897
        %v1899 = vsel %vm627, %v1884, %v1892
        %v1900 = vsel %vm627, %v1886, %v1894
        %v1901 = vsel %vm627, %v1888, %v1896
        %v1902 = vsel %vm627, %v1890, %v1898
        %v1903 = vsel %vm627, %v1892, %v1884
        %v1904 = vsel %vm627, %v1894, %v1886
        %v1905 = vsel %vm627, %v1896, %v1888
        %v1906 = vsel %vm627, %v1898, %v1890
        %v1908 = vlaneseq
        %v1909 = vshrl.u32 %v1908, 7
        %v1910 = vsub.s32 0, %v1909
        %v1911 = vrot.slane %v231, %v1910
        %v1912 = vlaneseq
        %v1913 = vshrl.u32 %v1912, 7
        %v1914 = vsub.s32 4, %v1913
        %v1915 = vrot.slane %v231, %v1914
        %v1918 = vlaneseq
        %v1919 = vshrl.u32 %v1918, 7
        %v1920 = vsub.s32 0, %v1919
        %v1921 = vrot.slane %v1911, %v1920
        %v1922 = vlaneseq
        %v1923 = vshrl.u32 %v1922, 7
        %v1924 = vsub.s32 0, %v1923
        %v1925 = vrot.slane %v1915, %v1924
        %v1926 = vmul.f32 %v1827, %v1921
        %v1927 = vmul.f32 %v1828, %v1925
        %v1928 = vmul.f32 %v1829, %v1921
        %v1929 = vmul.f32 %v1830, %v1925
        %v1930 = vmul.f32 %v1831, %v1921
        %v1931 = vmul.f32 %v1832, %v1925
        %v1932 = vmul.f32 %v1833, %v1921
        %v1933 = vmul.f32 %v1834, %v1925
        %v1934 = vlaneseq
        %v1935 = vshrl.u32 %v1934, 7
        %v1936 = vsub.s32 1, %v1935
        %v1937 = vrot.slane %v231, %v1936
        %v1938 = vlaneseq
        %v1939 = vshrl.u32 %v1938, 7
        %v1940 = vsub.s32 5, %v1939
        %v1941 = vrot.slane %v231, %v1940
        %v1944 = vlaneseq
        %v1945 = vshrl.u32 %v1944, 7
        %v1946 = vsub.s32 1, %v1945
        %v1947 = vrot.slane %v1937, %v1946
        %v1948 = vlaneseq
        %v1949 = vshrl.u32 %v1948, 7
        %v1950 = vsub.s32 1, %v1949
        %v1951 = vrot.slane %v1941, %v1950
        %v1952 = vmul.f32 %v1855, %v1947
        %v1953 = vmul.f32 %v1851, %v1951
        %v1954 = vmul.f32 %v1856, %v1947
        %v1955 = vmul.f32 %v1852, %v1951
        %v1956 = vmul.f32 %v1857, %v1947
        %v1957 = vmul.f32 %v1853, %v1951
        %v1958 = vmul.f32 %v1858, %v1947
        %v1959 = vmul.f32 %v1854, %v1951
        %v1960 = vadd.f32 %v1926, %v1952
        %v1961 = vadd.f32 %v1927, %v1953
        %v1962 = vadd.f32 %v1928, %v1954
        %v1963 = vadd.f32 %v1929, %v1955
        %v1964 = vadd.f32 %v1930, %v1956
        %v1965 = vadd.f32 %v1931, %v1957
        %v1966 = vadd.f32 %v1932, %v1958
        %v1967 = vadd.f32 %v1933, %v1959
        %v1968 = vlaneseq
        %v1969 = vshrl.u32 %v1968, 7
        %v1970 = vsub.s32 2, %v1969
        %v1971 = vrot.slane %v231, %v1970
        %v1972 = vlaneseq
        %v1973 = vshrl.u32 %v1972, 7
        %v1974 = vsub.s32 6, %v1973
        %v1975 = vrot.slane %v231, %v1974
        %v1978 = vlaneseq
        %v1979 = vshrl.u32 %v1978, 7
        %v1980 = vsub.s32 2, %v1979
        %v1981 = vrot.slane %v1971, %v1980
        %v1982 = vlaneseq
        %v1983 = vshrl.u32 %v1982, 7
        %v1984 = vsub.s32 2, %v1983
        %v1985 = vrot.slane %v1975, %v1984
        %v1986 = vmul.f32 %v1879, %v1981
        %v1987 = vmul.f32 %v1875, %v1985
        %v1988 = vmul.f32 %v1880, %v1981
        %v1989 = vmul.f32 %v1876, %v1985
        %v1990 = vmul.f32 %v1881, %v1981
        %v1991 = vmul.f32 %v1877, %v1985
        %v1992 = vmul.f32 %v1882, %v1981
        %v1993 = vmul.f32 %v1878, %v1985
        %v1994 = vadd.f32 %v1960, %v1986
        %v1995 = vadd.f32 %v1961, %v1987
        %v1996 = vadd.f32 %v1962, %v1988
        %v1997 = vadd.f32 %v1963, %v1989
        %v1998 = vadd.f32 %v1964, %v1990
        %v1999 = vadd.f32 %v1965, %v1991
        %v2000 = vadd.f32 %v1966, %v1992
        %v2001 = vadd.f32 %v1967, %v1993
        %v2002 = vlaneseq
        %v2003 = vshrl.u32 %v2002, 7
        %v2004 = vsub.s32 3, %v2003
        %v2005 = vrot.slane %v231, %v2004
        %v2006 = vlaneseq
        %v2007 = vshrl.u32 %v2006, 7
        %v2008 = vsub.s32 7, %v2007
        %v2009 = vrot.slane %v231, %v2008
        %v2012 = vlaneseq
        %v2013 = vshrl.u32 %v2012, 7
        %v2014 = vsub.s32 3, %v2013
        %v2015 = vrot.slane %v2005, %v2014
        %v2016 = vlaneseq
        %v2017 = vshrl.u32 %v2016, 7
        %v2018 = vsub.s32 3, %v2017
        %v2019 = vrot.slane %v2009, %v2018
        %v2020 = vmul.f32 %v1903, %v2015
        %v2021 = vmul.f32 %v1899, %v2019
        %v2022 = vmul.f32 %v1904, %v2015
        %v2023 = vmul.f32 %v1900, %v2019
        %v2024 = vmul.f32 %v1905, %v2015
        %v2025 = vmul.f32 %v1901, %v2019
        %v2026 = vmul.f32 %v1906, %v2015
        %v2027 = vmul.f32 %v1902, %v2019
        %v2028 = vadd.f32 %v1994, %v2020
        %v2029 = vadd.f32 %v1995, %v2021
        %v2030 = vadd.f32 %v1996, %v2022
        %v2031 = vadd.f32 %v1997, %v2023
        %v2032 = vadd.f32 %v1998, %v2024
        %v2033 = vadd.f32 %v1999, %v2025
        %v2034 = vadd.f32 %v2000, %v2026
        %v2035 = vadd.f32 %v2001, %v2027
        %v2036 = vld [vmem:[#allocation2 + $0x50] sm:$0xff]
        %v2037 = vld [vmem:[#allocation2 + $0x58] sm:$0xff]
        %v2038 = vld [vmem:[#allocation2 + $0x60] sm:$0xff]
        %v2039 = vld [vmem:[#allocation2 + $0x68] sm:$0xff]
        %v2040 = vld [vmem:[#allocation2 + $0xf0] sm:$0xff]
        %v2041 = vld [vmem:[#allocation2 + $0xf8] sm:$0xff]
        %v2042 = vld [vmem:[#allocation2 + $0x100] sm:$0xff]
        %v2043 = vld [vmem:[#allocation2 + $0x108] sm:$0xff]
        %2044 = vrot.lane.b32.xlu0 %v2028, 34
        %v2045 = vpop.permute.xlu0 %2044
        %2046 = vrot.lane.b32.xlu0 %v2030, 34
        %v2047 = vpop.permute.xlu0 %2046
        %2048 = vrot.lane.b32.xlu0 %v2032, 34
        %v2049 = vpop.permute.xlu0 %2048
        %2050 = vrot.lane.b32.xlu0 %v2034, 34
        %v2051 = vpop.permute.xlu0 %2050
        %2052 = vrot.lane.b32.xlu0 %v1078, 34
        %v2053 = vpop.permute.xlu0 %2052
        %2054 = vrot.lane.b32.xlu0 %v1080, 34
        %v2055 = vpop.permute.xlu0 %2054
        %2056 = vrot.lane.b32.xlu0 %v2029, 34
        %v2057 = vpop.permute.xlu0 %2056
        %2058 = vrot.lane.b32.xlu0 %v2031, 34
        %v2059 = vpop.permute.xlu0 %2058
        %2060 = vrot.lane.b32.xlu0 %v2033, 34
        %v2061 = vpop.permute.xlu0 %2060
        %2062 = vrot.lane.b32.xlu0 %v2035, 34
        %v2063 = vpop.permute.xlu0 %2062
        %2064 = vrot.lane.b32.xlu0 %v1079, 34
        %v2065 = vpop.permute.xlu0 %2064
        %2066 = vrot.lane.b32.xlu0 %v1081, 34
        %v2067 = vpop.permute.xlu0 %2066
        %v2068 = vsel %vm627, %v2045, %v2057
        %v2069 = vsel %vm627, %v2047, %v2059
        %v2070 = vsel %vm627, %v2049, %v2061
        %v2071 = vsel %vm627, %v2051, %v2063
        %v2072 = vsel %vm627, %v2053, %v2065
        %v2073 = vsel %vm627, %v2055, %v2067
        %v2074 = vsel %vm627, %v2057, %v2045
        %v2075 = vsel %vm627, %v2059, %v2047
        %v2076 = vsel %vm627, %v2061, %v2049
        %v2077 = vsel %vm627, %v2063, %v2051
        %v2078 = vsel %vm627, %v2065, %v2053
        %v2079 = vsel %vm627, %v2067, %v2055
        %v2080 = vmul.f32 %v2074, %v633
        %v2081 = vmul.f32 %v2068, %v637
        %v2082 = vmul.f32 %v2075, %v633
        %v2083 = vmul.f32 %v2069, %v637
        %v2084 = vmul.f32 %v2076, %v633
        %v2085 = vmul.f32 %v2070, %v637
        %v2086 = vmul.f32 %v2077, %v633
        %v2087 = vmul.f32 %v2071, %v637
        %v2088 = vmul.f32 %v2078, %v633
        %v2089 = vmul.f32 %v2072, %v637
        %v2090 = vmul.f32 %v2079, %v633
        %v2091 = vmul.f32 %v2073, %v637
        %2092 = vrot.lane.b32.xlu0 %v2028, 32
        %v2093 = vpop.permute.xlu0 %2092
        %2094 = vrot.lane.b32.xlu0 %v2030, 32
        %v2095 = vpop.permute.xlu0 %2094
        %2096 = vrot.lane.b32.xlu0 %v2032, 32
        %v2097 = vpop.permute.xlu0 %2096
        %2098 = vrot.lane.b32.xlu0 %v2034, 32
        %v2099 = vpop.permute.xlu0 %2098
        %2100 = vrot.lane.b32.xlu0 %v1078, 32
        %v2101 = vpop.permute.xlu0 %2100
        %2102 = vrot.lane.b32.xlu0 %v1080, 32
        %v2103 = vpop.permute.xlu0 %2102
        %2104 = vrot.lane.b32.xlu0 %v2029, 32
        %v2105 = vpop.permute.xlu0 %2104
        %2106 = vrot.lane.b32.xlu0 %v2031, 32
        %v2107 = vpop.permute.xlu0 %2106
        %2108 = vrot.lane.b32.xlu0 %v2033, 32
        %v2109 = vpop.permute.xlu0 %2108
        %2110 = vrot.lane.b32.xlu0 %v2035, 32
        %v2111 = vpop.permute.xlu0 %2110
        %2112 = vrot.lane.b32.xlu0 %v1079, 32
        %v2113 = vpop.permute.xlu0 %2112
        %2114 = vrot.lane.b32.xlu0 %v1081, 32
        %v2115 = vpop.permute.xlu0 %2114
        %v2116 = vsel %vm644, %v2093, %v2105
        %v2117 = vsel %vm644, %v2095, %v2107
        %v2118 = vsel %vm644, %v2097, %v2109
        %v2119 = vsel %vm644, %v2099, %v2111
        %v2120 = vsel %vm644, %v2101, %v2113
        %v2121 = vsel %vm644, %v2103, %v2115
        %v2122 = vsel %vm644, %v2105, %v2093
        %v2123 = vsel %vm644, %v2107, %v2095
        %v2124 = vsel %vm644, %v2109, %v2097
        %v2125 = vsel %vm644, %v2111, %v2099
        %v2126 = vsel %vm644, %v2113, %v2101
        %v2127 = vsel %vm644, %v2115, %v2103
        %v2128 = vmul.f32 %v2122, %v650
        %v2129 = vmul.f32 %v2116, %v654
        %v2130 = vmul.f32 %v2123, %v650
        %v2131 = vmul.f32 %v2117, %v654
        %v2132 = vmul.f32 %v2124, %v650
        %v2133 = vmul.f32 %v2118, %v654
        %v2134 = vmul.f32 %v2125, %v650
        %v2135 = vmul.f32 %v2119, %v654
        %v2136 = vmul.f32 %v2126, %v650
        %v2137 = vmul.f32 %v2120, %v654
        %v2138 = vmul.f32 %v2127, %v650
        %v2139 = vmul.f32 %v2121, %v654
        %2140 = vrot.lane.b32.xlu0 %v2028, 30
        %v2141 = vpop.permute.xlu0 %2140
        %2142 = vrot.lane.b32.xlu0 %v2030, 30
        %v2143 = vpop.permute.xlu0 %2142
        %2144 = vrot.lane.b32.xlu0 %v2032, 30
        %v2145 = vpop.permute.xlu0 %2144
        %2146 = vrot.lane.b32.xlu0 %v2034, 30
        %v2147 = vpop.permute.xlu0 %2146
        %2148 = vrot.lane.b32.xlu0 %v1078, 30
        %v2149 = vpop.permute.xlu0 %2148
        %2150 = vrot.lane.b32.xlu0 %v1080, 30
        %v2151 = vpop.permute.xlu0 %2150
        %2152 = vrot.lane.b32.xlu0 %v2029, 30
        %v2153 = vpop.permute.xlu0 %2152
        %2154 = vrot.lane.b32.xlu0 %v2031, 30
        %v2155 = vpop.permute.xlu0 %2154
        %2156 = vrot.lane.b32.xlu0 %v2033, 30
        %v2157 = vpop.permute.xlu0 %2156
        %2158 = vrot.lane.b32.xlu0 %v2035, 30
        %v2159 = vpop.permute.xlu0 %2158
        %2160 = vrot.lane.b32.xlu0 %v1079, 30
        %v2161 = vpop.permute.xlu0 %2160
        %2162 = vrot.lane.b32.xlu0 %v1081, 30
        %v2163 = vpop.permute.xlu0 %2162
        %v2164 = vsel %vm661, %v2141, %v2153
        %v2165 = vsel %vm661, %v2143, %v2155
        %v2166 = vsel %vm661, %v2145, %v2157
        %v2167 = vsel %vm661, %v2147, %v2159
        %v2168 = vsel %vm661, %v2149, %v2161
        %v2169 = vsel %vm661, %v2151, %v2163
        %v2170 = vsel %vm661, %v2153, %v2141
        %v2171 = vsel %vm661, %v2155, %v2143
        %v2172 = vsel %vm661, %v2157, %v2145
        %v2173 = vsel %vm661, %v2159, %v2147
        %v2174 = vsel %vm661, %v2161, %v2149
        %v2175 = vsel %vm661, %v2163, %v2151
        %v2176 = vmul.f32 %v2170, %v667
        %v2177 = vmul.f32 %v2164, %v671
        %v2178 = vmul.f32 %v2171, %v667
        %v2179 = vmul.f32 %v2165, %v671
        %v2180 = vmul.f32 %v2172, %v667
        %v2181 = vmul.f32 %v2166, %v671
        %v2182 = vmul.f32 %v2173, %v667
        %v2183 = vmul.f32 %v2167, %v671
        %v2184 = vmul.f32 %v2174, %v667
        %v2185 = vmul.f32 %v2168, %v671
        %v2186 = vmul.f32 %v2175, %v667
        %v2187 = vmul.f32 %v2169, %v671
        %2188 = vrot.lane.b32.xlu0 %v2028, 2
        %v2189 = vpop.permute.xlu0 %2188
        %2190 = vrot.lane.b32.xlu0 %v2030, 2
        %v2191 = vpop.permute.xlu0 %2190
        %2192 = vrot.lane.b32.xlu0 %v2032, 2
        %v2193 = vpop.permute.xlu0 %2192
        %2194 = vrot.lane.b32.xlu0 %v2034, 2
        %v2195 = vpop.permute.xlu0 %2194
        %2196 = vrot.lane.b32.xlu0 %v1078, 2
        %v2197 = vpop.permute.xlu0 %2196
        %2198 = vrot.lane.b32.xlu0 %v1080, 2
        %v2199 = vpop.permute.xlu0 %2198
        %2200 = vrot.lane.b32.xlu0 %v2029, 2
        %v2201 = vpop.permute.xlu0 %2200
        %2202 = vrot.lane.b32.xlu0 %v2031, 2
        %v2203 = vpop.permute.xlu0 %2202
        %2204 = vrot.lane.b32.xlu0 %v2033, 2
        %v2205 = vpop.permute.xlu0 %2204
        %2206 = vrot.lane.b32.xlu0 %v2035, 2
        %v2207 = vpop.permute.xlu0 %2206
        %2208 = vrot.lane.b32.xlu0 %v1079, 2
        %v2209 = vpop.permute.xlu0 %2208
        %2210 = vrot.lane.b32.xlu0 %v1081, 2
        %v2211 = vpop.permute.xlu0 %2210
        %v2212 = vsel %vm678, %v2189, %v2201
        %v2213 = vsel %vm678, %v2191, %v2203
        %v2214 = vsel %vm678, %v2193, %v2205
        %v2215 = vsel %vm678, %v2195, %v2207
        %v2216 = vsel %vm678, %v2197, %v2209
        %v2217 = vsel %vm678, %v2199, %v2211
        %v2218 = vsel %vm678, %v2201, %v2189
        %v2219 = vsel %vm678, %v2203, %v2191
        %v2220 = vsel %vm678, %v2205, %v2193
        %v2221 = vsel %vm678, %v2207, %v2195
        %v2222 = vsel %vm678, %v2209, %v2197
        %v2223 = vsel %vm678, %v2211, %v2199
        %v2224 = vmul.f32 %v2218, %v684
        %v2225 = vmul.f32 %v2212, %v688
        %v2226 = vmul.f32 %v2219, %v684
        %v2227 = vmul.f32 %v2213, %v688
        %v2228 = vmul.f32 %v2220, %v684
        %v2229 = vmul.f32 %v2214, %v688
        %v2230 = vmul.f32 %v2221, %v684
        %v2231 = vmul.f32 %v2215, %v688
        %v2232 = vmul.f32 %v2222, %v684
        %v2233 = vmul.f32 %v2216, %v688
        %v2234 = vmul.f32 %v2223, %v684
        %v2235 = vmul.f32 %v2217, %v688
        %2236 = vrot.lane.b32.xlu0 %v2028, 126
        %v2237 = vpop.permute.xlu0 %2236
        %2238 = vrot.lane.b32.xlu0 %v2030, 126
        %v2239 = vpop.permute.xlu0 %2238
        %2240 = vrot.lane.b32.xlu0 %v2032, 126
        %v2241 = vpop.permute.xlu0 %2240
        %2242 = vrot.lane.b32.xlu0 %v2034, 126
        %v2243 = vpop.permute.xlu0 %2242
        %2244 = vrot.lane.b32.xlu0 %v2029, 126
        %v2245 = vpop.permute.xlu0 %2244
        %2246 = vrot.lane.b32.xlu0 %v2031, 126
        %v2247 = vpop.permute.xlu0 %2246
        %2248 = vrot.lane.b32.xlu0 %v2033, 126
        %v2249 = vpop.permute.xlu0 %2248
        %2250 = vrot.lane.b32.xlu0 %v2035, 126
        %v2251 = vpop.permute.xlu0 %2250
        %v2252 = vsel %vm695, %v2237, %v2245
        %v2253 = vsel %vm695, %v2239, %v2247
        %v2254 = vsel %vm695, %v2241, %v2249
        %v2255 = vsel %vm695, %v2243, %v2251
        %v2256 = vsel %vm695, %v2245, %v2237
        %v2257 = vsel %vm695, %v2247, %v2239
        %v2258 = vsel %vm695, %v2249, %v2241
        %v2259 = vsel %vm695, %v2251, %v2243
        %v2260 = vmul.f32 %v2252, %v701
        %v2261 = vmul.f32 %v2256, %v705
        %v2262 = vmul.f32 %v2253, %v701
        %v2263 = vmul.f32 %v2257, %v705
        %v2264 = vmul.f32 %v2254, %v701
        %v2265 = vmul.f32 %v2258, %v705
        %v2266 = vmul.f32 %v2255, %v701
        %v2267 = vmul.f32 %v2259, %v705
        %v2268 = vmul.f32 %v1090, %v701
        %v2269 = vmul.f32 %v1092, %v705
        %v2270 = vmul.f32 %v1091, %v701
        %v2271 = vmul.f32 %v1093, %v705
        %2272 = vrot.lane.b32.xlu0 %v2028, 98
        %v2273 = vpop.permute.xlu0 %2272
        %2274 = vrot.lane.b32.xlu0 %v2030, 98
        %v2275 = vpop.permute.xlu0 %2274
        %2276 = vrot.lane.b32.xlu0 %v2032, 98
        %v2277 = vpop.permute.xlu0 %2276
        %2278 = vrot.lane.b32.xlu0 %v2034, 98
        %v2279 = vpop.permute.xlu0 %2278
        %2280 = vrot.lane.b32.xlu0 %v1078, 98
        %v2281 = vpop.permute.xlu0 %2280
        %2282 = vrot.lane.b32.xlu0 %v1080, 98
        %v2283 = vpop.permute.xlu0 %2282
        %2284 = vrot.lane.b32.xlu0 %v2029, 98
        %v2285 = vpop.permute.xlu0 %2284
        %2286 = vrot.lane.b32.xlu0 %v2031, 98
        %v2287 = vpop.permute.xlu0 %2286
        %2288 = vrot.lane.b32.xlu0 %v2033, 98
        %v2289 = vpop.permute.xlu0 %2288
        %2290 = vrot.lane.b32.xlu0 %v2035, 98
        %v2291 = vpop.permute.xlu0 %2290
        %2292 = vrot.lane.b32.xlu0 %v1079, 98
        %v2293 = vpop.permute.xlu0 %2292
        %2294 = vrot.lane.b32.xlu0 %v1081, 98
        %v2295 = vpop.permute.xlu0 %2294
        %v2296 = vsel %vm712, %v2273, %v2285
        %v2297 = vsel %vm712, %v2275, %v2287
        %v2298 = vsel %vm712, %v2277, %v2289
        %v2299 = vsel %vm712, %v2279, %v2291
        %v2300 = vsel %vm712, %v2281, %v2293
        %v2301 = vsel %vm712, %v2283, %v2295
        %v2302 = vsel %vm712, %v2285, %v2273
        %v2303 = vsel %vm712, %v2287, %v2275
        %v2304 = vsel %vm712, %v2289, %v2277
        %v2305 = vsel %vm712, %v2291, %v2279
        %v2306 = vsel %vm712, %v2293, %v2281
        %v2307 = vsel %vm712, %v2295, %v2283
        %v2308 = vmul.f32 %v2296, %v718
        %v2309 = vmul.f32 %v2302, %v722
        %v2310 = vmul.f32 %v2297, %v718
        %v2311 = vmul.f32 %v2303, %v722
        %v2312 = vmul.f32 %v2298, %v718
        %v2313 = vmul.f32 %v2304, %v722
        %v2314 = vmul.f32 %v2299, %v718
        %v2315 = vmul.f32 %v2305, %v722
        %v2316 = vmul.f32 %v2300, %v718
        %v2317 = vmul.f32 %v2306, %v722
        %v2318 = vmul.f32 %v2301, %v718
        %v2319 = vmul.f32 %v2307, %v722
        %2320 = vrot.lane.b32.xlu0 %v2028, 96
        %v2321 = vpop.permute.xlu0 %2320
        %2322 = vrot.lane.b32.xlu0 %v2030, 96
        %v2323 = vpop.permute.xlu0 %2322
        %2324 = vrot.lane.b32.xlu0 %v2032, 96
        %v2325 = vpop.permute.xlu0 %2324
        %2326 = vrot.lane.b32.xlu0 %v2034, 96
        %v2327 = vpop.permute.xlu0 %2326
        %2328 = vrot.lane.b32.xlu0 %v2029, 96
        %v2329 = vpop.permute.xlu0 %2328
        %2330 = vrot.lane.b32.xlu0 %v2031, 96
        %v2331 = vpop.permute.xlu0 %2330
        %2332 = vrot.lane.b32.xlu0 %v2033, 96
        %v2333 = vpop.permute.xlu0 %2332
        %2334 = vrot.lane.b32.xlu0 %v2035, 96
        %v2335 = vpop.permute.xlu0 %2334
        %v2336 = vsel %vm729, %v2321, %v2329
        %v2337 = vsel %vm729, %v2323, %v2331
        %v2338 = vsel %vm729, %v2325, %v2333
        %v2339 = vsel %vm729, %v2327, %v2335
        %v2340 = vsel %vm729, %v2329, %v2321
        %v2341 = vsel %vm729, %v2331, %v2323
        %v2342 = vsel %vm729, %v2333, %v2325
        %v2343 = vsel %vm729, %v2335, %v2327
        %v2344 = vmul.f32 %v2336, %v735
        %v2345 = vmul.f32 %v2340, %v739
        %v2346 = vmul.f32 %v2337, %v735
        %v2347 = vmul.f32 %v2341, %v739
        %v2348 = vmul.f32 %v2338, %v735
        %v2349 = vmul.f32 %v2342, %v739
        %v2350 = vmul.f32 %v2339, %v735
        %v2351 = vmul.f32 %v2343, %v739
        %v2352 = vmul.f32 %v1102, %v735
        %v2353 = vmul.f32 %v1104, %v739
        %v2354 = vmul.f32 %v1103, %v735
        %v2355 = vmul.f32 %v1105, %v739
        %2356 = vrot.lane.b32.xlu0 %v2028, 94
        %v2357 = vpop.permute.xlu0 %2356
        %2358 = vrot.lane.b32.xlu0 %v2030, 94
        %v2359 = vpop.permute.xlu0 %2358
        %2360 = vrot.lane.b32.xlu0 %v2032, 94
        %v2361 = vpop.permute.xlu0 %2360
        %2362 = vrot.lane.b32.xlu0 %v2034, 94
        %v2363 = vpop.permute.xlu0 %2362
        %2364 = vrot.lane.b32.xlu0 %v2029, 94
        %v2365 = vpop.permute.xlu0 %2364
        %2366 = vrot.lane.b32.xlu0 %v2031, 94
        %v2367 = vpop.permute.xlu0 %2366
        %2368 = vrot.lane.b32.xlu0 %v2033, 94
        %v2369 = vpop.permute.xlu0 %2368
        %2370 = vrot.lane.b32.xlu0 %v2035, 94
        %v2371 = vpop.permute.xlu0 %2370
        %v2372 = vsel %vm746, %v2357, %v2365
        %v2373 = vsel %vm746, %v2359, %v2367
        %v2374 = vsel %vm746, %v2361, %v2369
        %v2375 = vsel %vm746, %v2363, %v2371
        %v2376 = vsel %vm746, %v2365, %v2357
        %v2377 = vsel %vm746, %v2367, %v2359
        %v2378 = vsel %vm746, %v2369, %v2361
        %v2379 = vsel %vm746, %v2371, %v2363
        %v2380 = vmul.f32 %v2372, %v752
        %v2381 = vmul.f32 %v2376, %v756
        %v2382 = vmul.f32 %v2373, %v752
        %v2383 = vmul.f32 %v2377, %v756
        %v2384 = vmul.f32 %v2374, %v752
        %v2385 = vmul.f32 %v2378, %v756
        %v2386 = vmul.f32 %v2375, %v752
        %v2387 = vmul.f32 %v2379, %v756
        %v2388 = vmul.f32 %v1114, %v752
        %v2389 = vmul.f32 %v1116, %v756
        %v2390 = vmul.f32 %v1115, %v752
        %v2391 = vmul.f32 %v1117, %v756
        %2393 = vset.pattern.permute.xlu0 48
        %2394 = vperm.xlu0 %2393, %v2039
        %v2395 = vpop.permute.xlu0 %2394
        %2398 = vset.pattern.permute.xlu0 48
        %2399 = vperm.xlu0 %2398, %v2043
        %v2400 = vpop.permute.xlu0 %2399
        %vm2402 = vcmask 392192
        %v2403 = vsel %vm2402, %v2039, 0
        %v2405 = vsel %vm2402, %v2043, 0
        %2407 = vmatprep.subr.mxu0 %v2081
        %2408 = vmatpush1.msra.mxu0 %v2080
        %2409 = vmatprep.subr.mxu0 %v2083
        %2410 = vmatpush1.msra.mxu0 %v2082
        %2411 = vmatprep.subr.mxu0 %v2085
        %2412 = vmatpush1.msra.mxu0 %v2084
        %2413 = vmatprep.subr.mxu0 %v2087
        %2414 = vmatpush1.msra.mxu0 %v2086
        %2415 = vmatprep.subr.mxu0 %v2089
        %2416 = vmatpush1.msra.mxu0 %v2088
        %2417 = vmatprep.subr.mxu0 %v2091
        %2418 = vmatpush1.msra.mxu0 %v2090
        %2419 = vmatprep.subr.mxu0 %v2129
        %2420 = vmatpush1.msra.mxu0 %v2128
        %2421 = vmatprep.subr.mxu0 %v2131
        %2422 = vmatpush1.msra.mxu0 %v2130
        %2423 = vmatprep.subr.mxu0 %v2133
        %2424 = vmatpush1.msra.mxu0 %v2132
        %2425 = vmatprep.subr.mxu0 %v2135
        %2426 = vmatpush1.msra.mxu0 %v2134
        %2427 = vmatprep.subr.mxu0 %v2137
        %2428 = vmatpush1.msra.mxu0 %v2136
        %2429 = vmatprep.subr.mxu0 %v2139
        %2430 = vmatpush1.msra.mxu0 %v2138
        %2431 = vmatprep.subr.mxu0 %v2177
        %2432 = vmatpush1.msra.mxu0 %v2176
        %2433 = vmatprep.subr.mxu0 %v2179
        %2434 = vmatpush1.msra.mxu0 %v2178
        %2435 = vmatprep.subr.mxu0 %v2181
        %2436 = vmatpush1.msra.mxu0 %v2180
        %2437 = vmatprep.subr.mxu0 %v2183
        %2438 = vmatpush1.msra.mxu0 %v2182
        %2439 = vmatprep.subr.mxu0 %v2185
        %2440 = vmatpush1.msra.mxu0 %v2184
        %2441 = vmatprep.subr.mxu0 %v2187
        %2442 = vmatpush1.msra.mxu0 %v2186
        %2443 = vmatprep.subr.mxu0 %v2225
        %2444 = vmatpush1.msra.mxu0 %v2224
        %2445 = vmatprep.subr.mxu0 %v2227
        %2446 = vmatpush1.msra.mxu0 %v2226
        %2447 = vmatprep.subr.mxu0 %v2229
        %2448 = vmatpush1.msra.mxu0 %v2228
        %2449 = vmatprep.subr.mxu0 %v2231
        %2450 = vmatpush1.msra.mxu0 %v2230
        %2451 = vmatprep.subr.mxu0 %v2233
        %2452 = vmatpush1.msra.mxu0 %v2232
        %2453 = vmatprep.subr.mxu0 %v2235
        %2454 = vmatpush1.msra.mxu0 %v2234
        %2455 = vmatprep.subr.mxu0 %v2029
        %2456 = vmatpush1.msra.mxu0 %v2028
        %2457 = vmatprep.subr.mxu0 %v2031
        %2458 = vmatpush1.msra.mxu0 %v2030
        %2459 = vmatprep.subr.mxu0 %v2033
        %2460 = vmatpush1.msra.mxu0 %v2032
        %2461 = vmatprep.subr.mxu0 %v2035
        %2462 = vmatpush1.msra.mxu0 %v2034
        %2463 = vmatprep.subr.mxu0 %v1079
        %2464 = vmatpush1.msra.mxu0 %v1078
        %2465 = vmatprep.subr.mxu0 %v1081
        %2466 = vmatpush1.msra.mxu0 %v1080
        %2467 = vmatprep.subr.mxu0 %v2261
        %2468 = vmatpush1.msra.mxu0 %v2260
        %2469 = vmatprep.subr.mxu0 %v2263
        %2470 = vmatpush1.msra.mxu0 %v2262
        %2471 = vmatprep.mubr.f32.mxu0 %v2037
        %2472 = vmatmul.mubr.f32.gmra.mrb[0].mxu0 %v2036
        %v2473 = vpop.f32.mrb[0].mxu0
        %v2474 = vadd.f32 %v2395, %v2473
        %v2475 = vpop.f32.mrb[0].mxu0
        %v2476 = vadd.f32 %v2395, %v2475
        %2477 = vmatprep.mubr.f32.mxu0 %v2041
        %2478 = vmatmul.mubr.f32.gmra.mrb[0].mxu0 %v2040
        %v2479 = vpop.f32.mrb[0].mxu0
        %v2480 = vadd.f32 %v2400, %v2479
        %v2481 = vpop.f32.mrb[0].mxu0
        %v2482 = vadd.f32 %v2400, %v2481
        %2483 = vdwg.mxu0
        %2484 = vmatprep.subr.mxu0 %v2265
        %2485 = vmatpush1.msra.mxu0 %v2264
        %2486 = vmatprep.subr.mxu0 %v2267
        %2487 = vmatpush1.msra.mxu0 %v2266
        %2488 = vmatprep.subr.mxu0 %v2269
        %2489 = vmatpush1.msra.mxu0 %v2268
        %2490 = vmatprep.subr.mxu0 %v2271
        %2491 = vmatpush1.msra.mxu0 %v2270
        %2492 = vmatprep.subr.mxu0 %v2309
        %2493 = vmatpush1.msra.mxu0 %v2308
        %2494 = vmatprep.subr.mxu0 %v2311
        %2495 = vmatpush1.msra.mxu0 %v2310
        %2496 = vmatprep.subr.mxu0 %v2313
        %2497 = vmatpush1.msra.mxu0 %v2312
        %2498 = vmatprep.subr.mxu0 %v2315
        %2499 = vmatpush1.msra.mxu0 %v2314
        %2500 = vmatprep.subr.mxu0 %v2317
        %2501 = vmatpush1.msra.mxu0 %v2316
        %2502 = vmatprep.subr.mxu0 %v2319
        %2503 = vmatpush1.msra.mxu0 %v2318
        %2504 = vmatprep.subr.mxu0 %v2345
        %2505 = vmatpush1.msra.mxu0 %v2344
        %2506 = vmatprep.subr.mxu0 %v2347
        %2507 = vmatpush1.msra.mxu0 %v2346
        %2508 = vmatprep.subr.mxu0 %v2349
        %2509 = vmatpush1.msra.mxu0 %v2348
        %2510 = vmatprep.subr.mxu0 %v2351
        %2511 = vmatpush1.msra.mxu0 %v2350
        %2512 = vmatprep.subr.mxu0 %v2353
        %2513 = vmatpush1.msra.mxu0 %v2352
        %2514 = vmatprep.subr.mxu0 %v2355
        %2515 = vmatpush1.msra.mxu0 %v2354
        %2516 = vmatprep.subr.mxu0 %v2381
        %2517 = vmatpush1.msra.mxu0 %v2380
        %2518 = vmatprep.subr.mxu0 %v2383
        %2519 = vmatpush1.msra.mxu0 %v2382
        %2520 = vmatprep.subr.mxu0 %v2385
        %2521 = vmatpush1.msra.mxu0 %v2384
        %2522 = vmatprep.subr.mxu0 %v2387
        %2523 = vmatpush1.msra.mxu0 %v2386
        %2524 = vmatprep.subr.mxu0 %v2389
        %2525 = vmatpush1.msra.mxu0 %v2388
        %2526 = vmatprep.subr.mxu0 %v2391
        %2527 = vmatpush1.msra.mxu0 %v2390
        %2528 = vmatprep.subr.mxu0 0.0
        %2529 = vmatpush1.msra.mxu0 0.0
        %2530 = vmatprep.subr.mxu0 0.0
        %2531 = vmatpush1.msra.mxu0 0.0
        %2532 = vmatprep.subr.mxu0 0.0
        %2533 = vmatpush1.msra.mxu0 0.0
        %2534 = vmatprep.subr.mxu0 0.0
        %2535 = vmatpush1.msra.mxu0 0.0
        %2536 = vmatprep.subr.mxu0 0.0
        %2537 = vmatpush1.msra.mxu0 0.0
        %2538 = vmatprep.subr.mxu0 0.0
        %2539 = vmatpush1.msra.mxu0 0.0
        %2540 = vmatprep.subr.mxu0 0.0
        %2541 = vmatpush1.msra.mxu0 0.0
        %2542 = vmatprep.subr.mxu0 0.0
        %2543 = vmatpush1.msra.mxu0 0.0
        %2544 = vmatprep.subr.mxu0 0.0
        %2545 = vmatpush1.msra.mxu0 0.0
        %2546 = vmatprep.subr.mxu0 0.0
        %2547 = vmatpush1.msra.mxu0 0.0
        %2548 = vmatprep.mubr.f32.mxu0 %v2403
        %2549 = vmatmul.mubr.f32.gmra.mrb[0].mxu0 %v2038
        %v2550 = vpop.f32.mrb[0].mxu0
        %v2551 = vadd.f32 %v2474, %v2550
        %v2552 = vpop.f32.mrb[0].mxu0
        %v2553 = vadd.f32 %v2476, %v2552
        %2554 = vmatprep.mubr.f32.mxu0 %v2405
        %2555 = vmatmul.mubr.f32.gmra.mrb[0].mxu0 %v2042
        %v2556 = vpop.f32.mrb[0].mxu0
        %v2557 = vadd.f32 %v2480, %v2556
        %v2558 = vpop.f32.mrb[0].mxu0
        %v2559 = vadd.f32 %v2482, %v2558
        %2560 = vdwg.mxu0
        %v2561 = vmax.f32 %v2551, 0.0
        %v2562 = vmax.f32 %v2553, 0.0
        %v2563 = vmax.f32 %v2557, 0.0
        %v2564 = vmax.f32 %v2559, 0.0
        %v2565 = vld [vmem:[#allocation2 + $0x70] sm:$0xff]
        %v2566 = vld [vmem:[#allocation2 + $0x78] sm:$0xff]
        %v2567 = vld [vmem:[#allocation2 + $0x110] sm:$0xff]
        %v2568 = vld [vmem:[#allocation2 + $0x118] sm:$0xff]
        %2569 = vrot.lane.b32.xlu0 %v2561, 34
        %v2570 = vpop.permute.xlu0 %2569
        %2571 = vrot.lane.b32.xlu0 %v2563, 34
        %v2572 = vpop.permute.xlu0 %2571
        %2573 = vrot.lane.b32.xlu0 %v2562, 34
        %v2574 = vpop.permute.xlu0 %2573
        %2575 = vrot.lane.b32.xlu0 %v2564, 34
        %v2576 = vpop.permute.xlu0 %2575
        %v2577 = vsel %vm627, %v2570, %v2574
        %v2578 = vsel %vm627, %v2572, %v2576
        %v2579 = vsel %vm627, %v2574, %v2570
        %v2580 = vsel %vm627, %v2576, %v2572
        %v2581 = vmul.f32 %v2579, %v633
        %v2582 = vmul.f32 %v2577, %v637
        %v2583 = vmul.f32 %v2580, %v633
        %v2584 = vmul.f32 %v2578, %v637
        %2585 = vrot.lane.b32.xlu0 %v2561, 32
        %v2586 = vpop.permute.xlu0 %2585
        %2587 = vrot.lane.b32.xlu0 %v2563, 32
        %v2588 = vpop.permute.xlu0 %2587
        %2589 = vrot.lane.b32.xlu0 %v2562, 32
        %v2590 = vpop.permute.xlu0 %2589
        %2591 = vrot.lane.b32.xlu0 %v2564, 32
        %v2592 = vpop.permute.xlu0 %2591
        %v2593 = vsel %vm644, %v2586, %v2590
        %v2594 = vsel %vm644, %v2588, %v2592
        %v2595 = vsel %vm644, %v2590, %v2586
        %v2596 = vsel %vm644, %v2592, %v2588
        %v2597 = vmul.f32 %v2595, %v650
        %v2598 = vmul.f32 %v2593, %v654
        %v2599 = vmul.f32 %v2596, %v650
        %v2600 = vmul.f32 %v2594, %v654
        %2601 = vrot.lane.b32.xlu0 %v2561, 30
        %v2602 = vpop.permute.xlu0 %2601
        %2603 = vrot.lane.b32.xlu0 %v2563, 30
        %v2604 = vpop.permute.xlu0 %2603
        %2605 = vrot.lane.b32.xlu0 %v2562, 30
        %v2606 = vpop.permute.xlu0 %2605
        %2607 = vrot.lane.b32.xlu0 %v2564, 30
        %v2608 = vpop.permute.xlu0 %2607
        %v2609 = vsel %vm661, %v2602, %v2606
        %v2610 = vsel %vm661, %v2604, %v2608
        %v2611 = vsel %vm661, %v2606, %v2602
        %v2612 = vsel %vm661, %v2608, %v2604
        %v2613 = vmul.f32 %v2611, %v667
        %v2614 = vmul.f32 %v2609, %v671
        %v2615 = vmul.f32 %v2612, %v667
        %v2616 = vmul.f32 %v2610, %v671
        %2617 = vrot.lane.b32.xlu0 %v2561, 2
        %v2618 = vpop.permute.xlu0 %2617
        %2619 = vrot.lane.b32.xlu0 %v2563, 2
        %v2620 = vpop.permute.xlu0 %2619
        %2621 = vrot.lane.b32.xlu0 %v2562, 2
        %v2622 = vpop.permute.xlu0 %2621
        %2623 = vrot.lane.b32.xlu0 %v2564, 2
        %v2624 = vpop.permute.xlu0 %2623
        %v2625 = vsel %vm678, %v2618, %v2622
        %v2626 = vsel %vm678, %v2620, %v2624
        %v2627 = vsel %vm678, %v2622, %v2618
        %v2628 = vsel %vm678, %v2624, %v2620
        %v2629 = vmul.f32 %v2627, %v684
        %v2630 = vmul.f32 %v2625, %v688
        %v2631 = vmul.f32 %v2628, %v684
        %v2632 = vmul.f32 %v2626, %v688
        %2633 = vrot.lane.b32.xlu0 %v2561, 126
        %v2634 = vpop.permute.xlu0 %2633
        %2635 = vrot.lane.b32.xlu0 %v2563, 126
        %v2636 = vpop.permute.xlu0 %2635
        %2637 = vrot.lane.b32.xlu0 %v2562, 126
        %v2638 = vpop.permute.xlu0 %2637
        %2639 = vrot.lane.b32.xlu0 %v2564, 126
        %v2640 = vpop.permute.xlu0 %2639
        %v2641 = vsel %vm695, %v2634, %v2638
        %v2642 = vsel %vm695, %v2636, %v2640
        %v2643 = vsel %vm695, %v2638, %v2634
        %v2644 = vsel %vm695, %v2640, %v2636
        %v2645 = vmul.f32 %v2641, %v701
        %v2646 = vmul.f32 %v2643, %v705
        %v2647 = vmul.f32 %v2642, %v701
        %v2648 = vmul.f32 %v2644, %v705
        %2649 = vrot.lane.b32.xlu0 %v2561, 98
        %v2650 = vpop.permute.xlu0 %2649
        %2651 = vrot.lane.b32.xlu0 %v2563, 98
        %v2652 = vpop.permute.xlu0 %2651
        %2653 = vrot.lane.b32.xlu0 %v2562, 98
        %v2654 = vpop.permute.xlu0 %2653
        %2655 = vrot.lane.b32.xlu0 %v2564, 98
        %v2656 = vpop.permute.xlu0 %2655
        %v2657 = vsel %vm712, %v2650, %v2654
        %v2658 = vsel %vm712, %v2652, %v2656
        %v2659 = vsel %vm712, %v2654, %v2650
        %v2660 = vsel %vm712, %v2656, %v2652
        %v2661 = vmul.f32 %v2657, %v718
        %v2662 = vmul.f32 %v2659, %v722
        %v2663 = vmul.f32 %v2658, %v718
        %v2664 = vmul.f32 %v2660, %v722
        %2665 = vrot.lane.b32.xlu0 %v2561, 96
        %v2666 = vpop.permute.xlu0 %2665
        %2667 = vrot.lane.b32.xlu0 %v2563, 96
        %v2668 = vpop.permute.xlu0 %2667
        %2669 = vrot.lane.b32.xlu0 %v2562, 96
        %v2670 = vpop.permute.xlu0 %2669
        %2671 = vrot.lane.b32.xlu0 %v2564, 96
        %v2672 = vpop.permute.xlu0 %2671
        %v2673 = vsel %vm729, %v2666, %v2670
        %v2674 = vsel %vm729, %v2668, %v2672
        %v2675 = vsel %vm729, %v2670, %v2666
        %v2676 = vsel %vm729, %v2672, %v2668
        %v2677 = vmul.f32 %v2673, %v735
        %v2678 = vmul.f32 %v2675, %v739
        %v2679 = vmul.f32 %v2674, %v735
        %v2680 = vmul.f32 %v2676, %v739
        %2681 = vrot.lane.b32.xlu0 %v2561, 94
        %v2682 = vpop.permute.xlu0 %2681
        %2683 = vrot.lane.b32.xlu0 %v2563, 94
        %v2684 = vpop.permute.xlu0 %2683
        %2685 = vrot.lane.b32.xlu0 %v2562, 94
        %v2686 = vpop.permute.xlu0 %2685
        %2687 = vrot.lane.b32.xlu0 %v2564, 94
        %v2688 = vpop.permute.xlu0 %2687
        %v2689 = vsel %vm746, %v2682, %v2686
        %v2690 = vsel %vm746, %v2684, %v2688
        %v2691 = vsel %vm746, %v2686, %v2682
        %v2692 = vsel %vm746, %v2688, %v2684
        %v2693 = vmul.f32 %v2689, %v752
        %v2694 = vmul.f32 %v2691, %v756
        %v2695 = vmul.f32 %v2690, %v752
        %v2696 = vmul.f32 %v2692, %v756
        %2698 = vset.pattern.permute.xlu0 16
        %2699 = vperm.xlu0 %2698, %v2566
        %v2700 = vpop.permute.xlu0 %2699
        %2703 = vset.pattern.permute.xlu0 16
        %2704 = vperm.xlu0 %2703, %v2568
        %v2705 = vpop.permute.xlu0 %2704
        %v2707 = vsel %vm996, %v2566, 0
        %v2709 = vsel %vm996, %v2568, 0
        %2711 = vmatprep.subr.mxu0 %v2582
        %2712 = vmatpush1.msra.mxu0 %v2581
        %2713 = vmatprep.subr.mxu0 %v2584
        %2714 = vmatpush1.msra.mxu0 %v2583
        %2715 = vmatprep.subr.mxu0 %v2598
        %2716 = vmatpush1.msra.mxu0 %v2597
        %2717 = vmatprep.subr.mxu0 %v2600
        %2718 = vmatpush1.msra.mxu0 %v2599
        %2719 = vmatprep.subr.mxu0 %v2614
        %2720 = vmatpush1.msra.mxu0 %v2613
        %2721 = vmatprep.subr.mxu0 %v2616
        %2722 = vmatpush1.msra.mxu0 %v2615
        %2723 = vmatprep.subr.mxu0 %v2630
        %2724 = vmatpush1.msra.mxu0 %v2629
        %2725 = vmatprep.subr.mxu0 %v2632
        %2726 = vmatpush1.msra.mxu0 %v2631
        %2727 = vmatprep.subr.mxu0 %v2562
        %2728 = vmatpush1.msra.mxu0 %v2561
        %2729 = vmatprep.subr.mxu0 %v2564
        %2730 = vmatpush1.msra.mxu0 %v2563
        %2731 = vmatprep.subr.mxu0 %v2646
        %2732 = vmatpush1.msra.mxu0 %v2645
        %2733 = vmatprep.subr.mxu0 %v2648
        %2734 = vmatpush1.msra.mxu0 %v2647
        %2735 = vmatprep.subr.mxu0 %v2662
        %2736 = vmatpush1.msra.mxu0 %v2661
        %2737 = vmatprep.subr.mxu0 %v2664
        %2738 = vmatpush1.msra.mxu0 %v2663
        %2739 = vmatprep.subr.mxu0 %v2678
        %2740 = vmatpush1.msra.mxu0 %v2677
        %2741 = vmatprep.subr.mxu0 %v2680
        %2742 = vmatpush1.msra.mxu0 %v2679
        %2743 = vmatprep.subr.mxu0 %v2694
        %2744 = vmatpush1.msra.mxu0 %v2693
        %2745 = vmatprep.subr.mxu0 %v2696
        %2746 = vmatpush1.msra.mxu0 %v2695
        %2747 = vmatprep.subr.mxu0 0.0
        %2748 = vmatpush1.msra.mxu0 0.0
        %2749 = vmatprep.subr.mxu0 0.0
        %2750 = vmatpush1.msra.mxu0 0.0
        %2751 = vmatprep.subr.mxu0 0.0
        %2752 = vmatpush1.msra.mxu0 0.0
        %2753 = vmatprep.subr.mxu0 0.0
        %2754 = vmatpush1.msra.mxu0 0.0
        %2755 = vmatprep.subr.mxu0 0.0
        %2756 = vmatpush1.msra.mxu0 0.0
        %2757 = vmatprep.subr.mxu0 0.0
        %2758 = vmatpush1.msra.mxu0 0.0
        %2759 = vmatprep.subr.mxu0 0.0
        %2760 = vmatpush1.msra.mxu0 0.0
        %2761 = vmatprep.subr.mxu0 0.0
        %2762 = vmatpush1.msra.mxu0 0.0
        %2763 = vmatprep.subr.mxu0 0.0
        %2764 = vmatpush1.msra.mxu0 0.0
        %2765 = vmatprep.subr.mxu0 0.0
        %2766 = vmatpush1.msra.mxu0 0.0
        %2767 = vmatprep.subr.mxu0 0.0
        %2768 = vmatpush1.msra.mxu0 0.0
        %2769 = vmatprep.subr.mxu0 0.0
        %2770 = vmatpush1.msra.mxu0 0.0
        %2771 = vmatprep.subr.mxu0 0.0
        %2772 = vmatpush1.msra.mxu0 0.0
        %2773 = vmatprep.subr.mxu0 0.0
        %2774 = vmatpush1.msra.mxu0 0.0
        %2775 = vmatprep.mubr.f32.mxu0 %v2707
        %2776 = vmatmul.mubr.f32.gmra.mrb[0].mxu0 %v2565
        %v2777 = vpop.f32.mrb[0].mxu0
        %v2778 = vadd.f32 %v2700, %v2777
        %v2779 = vpop.f32.mrb[0].mxu0
        %v2780 = vadd.f32 %v2700, %v2779
        %2781 = vmatprep.mubr.f32.mxu0 %v2709
        %2782 = vmatmul.mubr.f32.gmra.mrb[0].mxu0 %v2567
        %v2783 = vpop.f32.mrb[0].mxu0
        %v2784 = vadd.f32 %v2705, %v2783
        %v2785 = vpop.f32.mrb[0].mxu0
        %v2786 = vadd.f32 %v2705, %v2785
        %2787 = vdwg.mxu0
        %v2788 = vmax.f32 %v2778, 0.0
        %v2789 = vmax.f32 %v2780, 0.0
        %v2790 = vmax.f32 %v2784, 0.0
        %v2791 = vmax.f32 %v2786, 0.0
        %2792 = vrot.lane.b32.xlu0 %v2788, 16
        %v2793 = vpop.permute.xlu0 %2792
        %2794 = vrot.lane.b32.xlu0 %v2790, 16
        %v2795 = vpop.permute.xlu0 %2794
        %2796 = vrot.lane.b32.xlu0 %v2789, 16
        %v2797 = vpop.permute.xlu0 %2796
        %2798 = vrot.lane.b32.xlu0 %v2791, 16
        %v2799 = vpop.permute.xlu0 %2798
        %v2800 = vsel %vm256, %v2793, %v2797
        %v2801 = vsel %vm256, %v2795, %v2799
        %v2802 = vsel %vm256, %v2797, %v2793
        %v2803 = vsel %vm256, %v2799, %v2795
        %2804 = vrot.lane.b32.xlu0 %v2788, 1
        %v2805 = vpop.permute.xlu0 %2804
        %2806 = vrot.lane.b32.xlu0 %v2790, 1
        %v2807 = vpop.permute.xlu0 %2806
        %2808 = vrot.lane.b32.xlu0 %v2789, 1
        %v2809 = vpop.permute.xlu0 %2808
        %2810 = vrot.lane.b32.xlu0 %v2791, 1
        %v2811 = vpop.permute.xlu0 %2810
        %v2812 = vsel %vm290, %v2805, %v2809
        %v2813 = vsel %vm290, %v2807, %v2811
        %v2814 = vsel %vm290, %v2809, %v2805
        %v2815 = vsel %vm290, %v2811, %v2807
        %2816 = vrot.lane.b32.xlu0 %v2788, 17
        %v2817 = vpop.permute.xlu0 %2816
        %2818 = vrot.lane.b32.xlu0 %v2790, 17
        %v2819 = vpop.permute.xlu0 %2818
        %2820 = vrot.lane.b32.xlu0 %v2789, 17
        %v2821 = vpop.permute.xlu0 %2820
        %2822 = vrot.lane.b32.xlu0 %v2791, 17
        %v2823 = vpop.permute.xlu0 %2822
        %v2824 = vsel %vm239, %v2817, %v2821
        %v2825 = vsel %vm239, %v2819, %v2823
        %v2826 = vsel %vm239, %v2821, %v2817
        %v2827 = vsel %vm239, %v2823, %v2819
        %v2829 = vlaneseq
        %v2830 = vshrl.u32 %v2829, 7
        %v2831 = vsub.s32 0, %v2830
        %v2832 = vrot.slane %v229, %v2831
        %v2833 = vlaneseq
        %v2834 = vshrl.u32 %v2833, 7
        %v2835 = vsub.s32 4, %v2834
        %v2836 = vrot.slane %v229, %v2835
        %v2839 = vlaneseq
        %v2840 = vshrl.u32 %v2839, 7
        %v2841 = vsub.s32 0, %v2840
        %v2842 = vrot.slane %v2832, %v2841
        %v2843 = vlaneseq
        %v2844 = vshrl.u32 %v2843, 7
        %v2845 = vsub.s32 0, %v2844
        %v2846 = vrot.slane %v2836, %v2845
        %v2847 = vmul.f32 %v2788, %v2842
        %v2848 = vmul.f32 %v2789, %v2846
        %v2849 = vmul.f32 %v2790, %v2842
        %v2850 = vmul.f32 %v2791, %v2846
        %v2851 = vlaneseq
        %v2852 = vshrl.u32 %v2851, 7
        %v2853 = vsub.s32 1, %v2852
        %v2854 = vrot.slane %v229, %v2853
        %v2855 = vlaneseq
        %v2856 = vshrl.u32 %v2855, 7
        %v2857 = vsub.s32 5, %v2856
        %v2858 = vrot.slane %v229, %v2857
        %v2861 = vlaneseq
        %v2862 = vshrl.u32 %v2861, 7
        %v2863 = vsub.s32 1, %v2862
        %v2864 = vrot.slane %v2854, %v2863
        %v2865 = vlaneseq
        %v2866 = vshrl.u32 %v2865, 7
        %v2867 = vsub.s32 1, %v2866
        %v2868 = vrot.slane %v2858, %v2867
        %v2869 = vmul.f32 %v2802, %v2864
        %v2870 = vmul.f32 %v2800, %v2868
        %v2871 = vmul.f32 %v2803, %v2864
        %v2872 = vmul.f32 %v2801, %v2868
        %v2873 = vadd.f32 %v2847, %v2869
        %v2874 = vadd.f32 %v2848, %v2870
        %v2875 = vadd.f32 %v2849, %v2871
        %v2876 = vadd.f32 %v2850, %v2872
        %v2877 = vlaneseq
        %v2878 = vshrl.u32 %v2877, 7
        %v2879 = vsub.s32 2, %v2878
        %v2880 = vrot.slane %v229, %v2879
        %v2881 = vlaneseq
        %v2882 = vshrl.u32 %v2881, 7
        %v2883 = vsub.s32 6, %v2882
        %v2884 = vrot.slane %v229, %v2883
        %v2887 = vlaneseq
        %v2888 = vshrl.u32 %v2887, 7
        %v2889 = vsub.s32 2, %v2888
        %v2890 = vrot.slane %v2880, %v2889
        %v2891 = vlaneseq
        %v2892 = vshrl.u32 %v2891, 7
        %v2893 = vsub.s32 2, %v2892
        %v2894 = vrot.slane %v2884, %v2893
        %v2895 = vmul.f32 %v2814, %v2890
        %v2896 = vmul.f32 %v2812, %v2894
        %v2897 = vmul.f32 %v2815, %v2890
        %v2898 = vmul.f32 %v2813, %v2894
        %v2899 = vadd.f32 %v2873, %v2895
        %v2900 = vadd.f32 %v2874, %v2896
        %v2901 = vadd.f32 %v2875, %v2897
        %v2902 = vadd.f32 %v2876, %v2898
        %v2903 = vlaneseq
        %v2904 = vshrl.u32 %v2903, 7
        %v2905 = vsub.s32 3, %v2904
        %v2906 = vrot.slane %v229, %v2905
        %v2907 = vlaneseq
        %v2908 = vshrl.u32 %v2907, 7
        %v2909 = vsub.s32 7, %v2908
        %v2910 = vrot.slane %v229, %v2909
        %v2913 = vlaneseq
        %v2914 = vshrl.u32 %v2913, 7
        %v2915 = vsub.s32 3, %v2914
        %v2916 = vrot.slane %v2906, %v2915
        %v2917 = vlaneseq
        %v2918 = vshrl.u32 %v2917, 7
        %v2919 = vsub.s32 3, %v2918
        %v2920 = vrot.slane %v2910, %v2919
        %v2921 = vmul.f32 %v2826, %v2916
        %v2922 = vmul.f32 %v2824, %v2920
        %v2923 = vmul.f32 %v2827, %v2916
        %v2924 = vmul.f32 %v2825, %v2920
        %v2925 = vadd.f32 %v2899, %v2921
        %v2926 = vadd.f32 %v2900, %v2922
        %v2927 = vadd.f32 %v2901, %v2923
        %v2928 = vadd.f32 %v2902, %v2924
        %v2929 = vld [vmem:[#allocation2 + $0x80] sm:$0xff]
        %v2930 = vld [vmem:[#allocation2 + $0x88] sm:$0xff]
        %2931 = vrot.lane.b32.xlu0 %v2925, 17
        %v2932 = vpop.permute.xlu0 %2931
        %2933 = vrot.lane.b32.xlu0 %v2927, 17
        %v2934 = vpop.permute.xlu0 %2933
        %2935 = vrot.lane.b32.xlu0 %v595, 17
        %v2936 = vpop.permute.xlu0 %2935
        %2937 = vrot.lane.b32.xlu0 %v2926, 17
        %v2938 = vpop.permute.xlu0 %2937
        %2939 = vrot.lane.b32.xlu0 %v2928, 17
        %v2940 = vpop.permute.xlu0 %2939
        %2941 = vrot.lane.b32.xlu0 %v596, 17
        %v2942 = vpop.permute.xlu0 %2941
        %v2943 = vsel %vm239, %v2932, %v2938
        %v2944 = vsel %vm239, %v2934, %v2940
        %v2945 = vsel %vm239, %v2936, %v2942
        %v2946 = vsel %vm239, %v2938, %v2932
        %v2947 = vsel %vm239, %v2940, %v2934
        %v2948 = vsel %vm239, %v2942, %v2936
        %v2949 = vmul.f32 %v2946, %v245
        %v2950 = vmul.f32 %v2943, %v249
        %v2951 = vmul.f32 %v2947, %v245
        %v2952 = vmul.f32 %v2944, %v249
        %v2953 = vmul.f32 %v2948, %v245
        %v2954 = vmul.f32 %v2945, %v249
        %2955 = vrot.lane.b32.xlu0 %v2925, 16
        %v2956 = vpop.permute.xlu0 %2955
        %2957 = vrot.lane.b32.xlu0 %v2927, 16
        %v2958 = vpop.permute.xlu0 %2957
        %2959 = vrot.lane.b32.xlu0 %v595, 16
        %v2960 = vpop.permute.xlu0 %2959
        %2961 = vrot.lane.b32.xlu0 %v2926, 16
        %v2962 = vpop.permute.xlu0 %2961
        %2963 = vrot.lane.b32.xlu0 %v2928, 16
        %v2964 = vpop.permute.xlu0 %2963
        %2965 = vrot.lane.b32.xlu0 %v596, 16
        %v2966 = vpop.permute.xlu0 %2965
        %v2967 = vsel %vm256, %v2956, %v2962
        %v2968 = vsel %vm256, %v2958, %v2964
        %v2969 = vsel %vm256, %v2960, %v2966
        %v2970 = vsel %vm256, %v2962, %v2956
        %v2971 = vsel %vm256, %v2964, %v2958
        %v2972 = vsel %vm256, %v2966, %v2960
        %v2973 = vmul.f32 %v2970, %v262
        %v2974 = vmul.f32 %v2967, %v266
        %v2975 = vmul.f32 %v2971, %v262
        %v2976 = vmul.f32 %v2968, %v266
        %v2977 = vmul.f32 %v2972, %v262
        %v2978 = vmul.f32 %v2969, %v266
        %2979 = vrot.lane.b32.xlu0 %v2925, 15
        %v2980 = vpop.permute.xlu0 %2979
        %2981 = vrot.lane.b32.xlu0 %v2927, 15
        %v2982 = vpop.permute.xlu0 %2981
        %2983 = vrot.lane.b32.xlu0 %v595, 15
        %v2984 = vpop.permute.xlu0 %2983
        %2985 = vrot.lane.b32.xlu0 %v2926, 15
        %v2986 = vpop.permute.xlu0 %2985
        %2987 = vrot.lane.b32.xlu0 %v2928, 15
        %v2988 = vpop.permute.xlu0 %2987
        %2989 = vrot.lane.b32.xlu0 %v596, 15
        %v2990 = vpop.permute.xlu0 %2989
        %v2991 = vsel %vm273, %v2980, %v2986
        %v2992 = vsel %vm273, %v2982, %v2988
        %v2993 = vsel %vm273, %v2984, %v2990
        %v2994 = vsel %vm273, %v2986, %v2980
        %v2995 = vsel %vm273, %v2988, %v2982
        %v2996 = vsel %vm273, %v2990, %v2984
        %v2997 = vmul.f32 %v2994, %v279
        %v2998 = vmul.f32 %v2991, %v283
        %v2999 = vmul.f32 %v2995, %v279
        %v3000 = vmul.f32 %v2992, %v283
        %v3001 = vmul.f32 %v2996, %v279
        %v3002 = vmul.f32 %v2993, %v283
        %3003 = vrot.lane.b32.xlu0 %v2925, 1
        %v3004 = vpop.permute.xlu0 %3003
        %3005 = vrot.lane.b32.xlu0 %v2927, 1
        %v3006 = vpop.permute.xlu0 %3005
        %3007 = vrot.lane.b32.xlu0 %v595, 1
        %v3008 = vpop.permute.xlu0 %3007
        %3009 = vrot.lane.b32.xlu0 %v2926, 1
        %v3010 = vpop.permute.xlu0 %3009
        %3011 = vrot.lane.b32.xlu0 %v2928, 1
        %v3012 = vpop.permute.xlu0 %3011
        %3013 = vrot.lane.b32.xlu0 %v596, 1
        %v3014 = vpop.permute.xlu0 %3013
        %v3015 = vsel %vm290, %v3004, %v3010
        %v3016 = vsel %vm290, %v3006, %v3012
        %v3017 = vsel %vm290, %v3008, %v3014
        %v3018 = vsel %vm290, %v3010, %v3004
        %v3019 = vsel %vm290, %v3012, %v3006
        %v3020 = vsel %vm290, %v3014, %v3008
        %v3021 = vmul.f32 %v3018, %v296
        %v3022 = vmul.f32 %v3015, %v300
        %v3023 = vmul.f32 %v3019, %v296
        %v3024 = vmul.f32 %v3016, %v300
        %v3025 = vmul.f32 %v3020, %v296
        %v3026 = vmul.f32 %v3017, %v300
        %3027 = vrot.lane.b32.xlu0 %v2925, 127
        %v3028 = vpop.permute.xlu0 %3027
        %3029 = vrot.lane.b32.xlu0 %v2927, 127
        %v3030 = vpop.permute.xlu0 %3029
        %3031 = vrot.lane.b32.xlu0 %v2926, 127
        %v3032 = vpop.permute.xlu0 %3031
        %3033 = vrot.lane.b32.xlu0 %v2928, 127
        %v3034 = vpop.permute.xlu0 %3033
        %v3035 = vsel %vm307, %v3028, %v3032
        %v3036 = vsel %vm307, %v3030, %v3034
        %v3037 = vsel %vm307, %v3032, %v3028
        %v3038 = vsel %vm307, %v3034, %v3030
        %v3039 = vmul.f32 %v3035, %v313
        %v3040 = vmul.f32 %v3037, %v317
        %v3041 = vmul.f32 %v3036, %v313
        %v3042 = vmul.f32 %v3038, %v317
        %v3043 = vmul.f32 %v601, %v313
        %v3044 = vmul.f32 %v602, %v317
        %3045 = vrot.lane.b32.xlu0 %v2925, 113
        %v3046 = vpop.permute.xlu0 %3045
        %3047 = vrot.lane.b32.xlu0 %v2927, 113
        %v3048 = vpop.permute.xlu0 %3047
        %3049 = vrot.lane.b32.xlu0 %v595, 113
        %v3050 = vpop.permute.xlu0 %3049
        %3051 = vrot.lane.b32.xlu0 %v2926, 113
        %v3052 = vpop.permute.xlu0 %3051
        %3053 = vrot.lane.b32.xlu0 %v2928, 113
        %v3054 = vpop.permute.xlu0 %3053
        %3055 = vrot.lane.b32.xlu0 %v596, 113
        %v3056 = vpop.permute.xlu0 %3055
        %v3057 = vsel %vm324, %v3046, %v3052
        %v3058 = vsel %vm324, %v3048, %v3054
        %v3059 = vsel %vm324, %v3050, %v3056
        %v3060 = vsel %vm324, %v3052, %v3046
        %v3061 = vsel %vm324, %v3054, %v3048
        %v3062 = vsel %vm324, %v3056, %v3050
        %v3063 = vmul.f32 %v3057, %v330
        %v3064 = vmul.f32 %v3060, %v334
        %v3065 = vmul.f32 %v3058, %v330
        %v3066 = vmul.f32 %v3061, %v334
        %v3067 = vmul.f32 %v3059, %v330
        %v3068 = vmul.f32 %v3062, %v334
        %3069 = vrot.lane.b32.xlu0 %v2925, 112
        %v3070 = vpop.permute.xlu0 %3069
        %3071 = vrot.lane.b32.xlu0 %v2927, 112
        %v3072 = vpop.permute.xlu0 %3071
        %3073 = vrot.lane.b32.xlu0 %v2926, 112
        %v3074 = vpop.permute.xlu0 %3073
        %3075 = vrot.lane.b32.xlu0 %v2928, 112
        %v3076 = vpop.permute.xlu0 %3075
        %v3077 = vsel %vm341, %v3070, %v3074
        %v3078 = vsel %vm341, %v3072, %v3076
        %v3079 = vsel %vm341, %v3074, %v3070
        %v3080 = vsel %vm341, %v3076, %v3072
        %v3081 = vmul.f32 %v3077, %v347
        %v3082 = vmul.f32 %v3079, %v351
        %v3083 = vmul.f32 %v3078, %v347
        %v3084 = vmul.f32 %v3080, %v351
        %v3085 = vmul.f32 %v607, %v347
        %v3086 = vmul.f32 %v608, %v351
        %3087 = vrot.lane.b32.xlu0 %v2925, 111
        %v3088 = vpop.permute.xlu0 %3087
        %3089 = vrot.lane.b32.xlu0 %v2927, 111
        %v3090 = vpop.permute.xlu0 %3089
        %3091 = vrot.lane.b32.xlu0 %v2926, 111
        %v3092 = vpop.permute.xlu0 %3091
        %3093 = vrot.lane.b32.xlu0 %v2928, 111
        %v3094 = vpop.permute.xlu0 %3093
        %v3095 = vsel %vm358, %v3088, %v3092
        %v3096 = vsel %vm358, %v3090, %v3094
        %v3097 = vsel %vm358, %v3092, %v3088
        %v3098 = vsel %vm358, %v3094, %v3090
        %v3099 = vmul.f32 %v3095, %v364
        %v3100 = vmul.f32 %v3097, %v368
        %v3101 = vmul.f32 %v3096, %v364
        %v3102 = vmul.f32 %v3098, %v368
        %v3103 = vmul.f32 %v613, %v364
        %v3104 = vmul.f32 %v614, %v368
        %3106 = vset.pattern.permute.xlu0 88
        %3107 = vperm.xlu0 %3106, %v2930
        %v3108 = vpop.permute.xlu0 %3107
        %vm3110 = vcmask 719872
        %v3111 = vsel %vm3110, %v2930, 0
        %3113 = vmatprep.subr.mxu0 %v2950
        %3114 = vmatpush1.msra.mxu0 %v2949
        %3115 = vmatprep.subr.mxu0 %v2952
        %3116 = vmatpush1.msra.mxu0 %v2951
        %3117 = vmatprep.subr.mxu0 %v2954
        %3118 = vmatpush1.msra.mxu0 %v2953
        %3119 = vmatprep.subr.mxu0 %v2974
        %3120 = vmatpush1.msra.mxu0 %v2973
        %3121 = vmatprep.subr.mxu0 %v2976
        %3122 = vmatpush1.msra.mxu0 %v2975
        %3123 = vmatprep.subr.mxu0 %v2978
        %3124 = vmatpush1.msra.mxu0 %v2977
        %3125 = vmatprep.subr.mxu0 %v2998
        %3126 = vmatpush1.msra.mxu0 %v2997
        %3127 = vmatprep.subr.mxu0 %v3000
        %3128 = vmatpush1.msra.mxu0 %v2999
        %3129 = vmatprep.subr.mxu0 %v3002
        %3130 = vmatpush1.msra.mxu0 %v3001
        %3131 = vmatprep.subr.mxu0 %v3022
        %3132 = vmatpush1.msra.mxu0 %v3021
        %3133 = vmatprep.subr.mxu0 %v3024
        %3134 = vmatpush1.msra.mxu0 %v3023
        %3135 = vmatprep.subr.mxu0 %v3026
        %3136 = vmatpush1.msra.mxu0 %v3025
        %3137 = vmatprep.subr.mxu0 %v2926
        %3138 = vmatpush1.msra.mxu0 %v2925
        %3139 = vmatprep.subr.mxu0 %v2928
        %3140 = vmatpush1.msra.mxu0 %v2927
        %3141 = vmatprep.subr.mxu0 %v596
        %3142 = vmatpush1.msra.mxu0 %v595
        %3143 = vmatprep.subr.mxu0 %v3040
        %3144 = vmatpush1.msra.mxu0 %v3039
        %3145 = vmatprep.subr.mxu0 %v3042
        %3146 = vmatpush1.msra.mxu0 %v3041
        %3147 = vmatprep.subr.mxu0 %v3044
        %3148 = vmatpush1.msra.mxu0 %v3043
        %3149 = vmatprep.subr.mxu0 %v3064
        %3150 = vmatpush1.msra.mxu0 %v3063
        %3151 = vmatprep.subr.mxu0 %v3066
        %3152 = vmatpush1.msra.mxu0 %v3065
        %3153 = vmatprep.subr.mxu0 %v3068
        %3154 = vmatpush1.msra.mxu0 %v3067
        %3155 = vmatprep.subr.mxu0 %v3082
        %3156 = vmatpush1.msra.mxu0 %v3081
        %3157 = vmatprep.subr.mxu0 %v3084
        %3158 = vmatpush1.msra.mxu0 %v3083
        %3159 = vmatprep.subr.mxu0 %v3086
        %3160 = vmatpush1.msra.mxu0 %v3085
        %3161 = vmatprep.subr.mxu0 %v3100
        %3162 = vmatpush1.msra.mxu0 %v3099
        %3163 = vmatprep.subr.mxu0 %v3102
        %3164 = vmatpush1.msra.mxu0 %v3101
        %3165 = vmatprep.subr.mxu0 %v3104
        %3166 = vmatpush1.msra.mxu0 %v3103
        %3167 = vmatprep.subr.mxu0 0.0
        %3168 = vmatpush1.msra.mxu0 0.0
        %3169 = vmatprep.subr.mxu0 0.0
        %3170 = vmatpush1.msra.mxu0 0.0
        %3171 = vmatprep.subr.mxu0 0.0
        %3172 = vmatpush1.msra.mxu0 0.0
        %3173 = vmatprep.subr.mxu0 0.0
        %3174 = vmatpush1.msra.mxu0 0.0
        %3175 = vmatprep.subr.mxu0 0.0
        %3176 = vmatpush1.msra.mxu0 0.0
        %3177 = vmatprep.mubr.f32.mxu0 %v3111
        %3178 = vmatmul.mubr.f32.gmra.mrb[0].mxu0 %v2929
        %v3179 = vpop.f32.mrb[0].mxu0
        %v3180 = vadd.f32 %v3108, %v3179
        %v3181 = vpop.f32.mrb[0].mxu0
        %v3182 = vadd.f32 %v3108, %v3181
        %3183 = vdwg.mxu0
        %v3184 = vmax.f32 %v3180, 0.0
        %v3185 = vmax.f32 %v3182, 0.0
        %v3186 = vld [vmem:[#allocation2 + $0x90] sm:$0xff]
        %3187 = vrot.lane.b32.xlu0 %v3184, 17
        %v3188 = vpop.permute.xlu0 %3187
        %3189 = vrot.lane.b32.xlu0 %v3185, 17
        %v3190 = vpop.permute.xlu0 %3189
        %v3191 = vsel %vm239, %v3188, %v3190
        %v3192 = vsel %vm239, %v3190, %v3188
        %v3193 = vmul.f32 %v3192, %v245
        %v3194 = vmul.f32 %v3191, %v249
        %3195 = vrot.lane.b32.xlu0 %v3184, 16
        %v3196 = vpop.permute.xlu0 %3195
        %3197 = vrot.lane.b32.xlu0 %v3185, 16
        %v3198 = vpop.permute.xlu0 %3197
        %v3199 = vsel %vm256, %v3196, %v3198
        %v3200 = vsel %vm256, %v3198, %v3196
        %v3201 = vmul.f32 %v3200, %v262
        %v3202 = vmul.f32 %v3199, %v266
        %3203 = vrot.lane.b32.xlu0 %v3184, 15
        %v3204 = vpop.permute.xlu0 %3203
        %3205 = vrot.lane.b32.xlu0 %v3185, 15
        %v3206 = vpop.permute.xlu0 %3205
        %v3207 = vsel %vm273, %v3204, %v3206
        %v3208 = vsel %vm273, %v3206, %v3204
        %v3209 = vmul.f32 %v3208, %v279
        %v3210 = vmul.f32 %v3207, %v283
        %3211 = vrot.lane.b32.xlu0 %v3184, 1
        %v3212 = vpop.permute.xlu0 %3211
        %3213 = vrot.lane.b32.xlu0 %v3185, 1
        %v3214 = vpop.permute.xlu0 %3213
        %v3215 = vsel %vm290, %v3212, %v3214
        %v3216 = vsel %vm290, %v3214, %v3212
        %v3217 = vmul.f32 %v3216, %v296
        %v3218 = vmul.f32 %v3215, %v300
        %3219 = vrot.lane.b32.xlu0 %v3184, 127
        %v3220 = vpop.permute.xlu0 %3219
        %3221 = vrot.lane.b32.xlu0 %v3185, 127
        %v3222 = vpop.permute.xlu0 %3221
        %v3223 = vsel %vm307, %v3220, %v3222
        %v3224 = vsel %vm307, %v3222, %v3220
        %v3225 = vmul.f32 %v3223, %v313
        %v3226 = vmul.f32 %v3224, %v317
        %3227 = vrot.lane.b32.xlu0 %v3184, 113
        %v3228 = vpop.permute.xlu0 %3227
        %3229 = vrot.lane.b32.xlu0 %v3185, 113
        %v3230 = vpop.permute.xlu0 %3229
        %v3231 = vsel %vm324, %v3228, %v3230
        %v3232 = vsel %vm324, %v3230, %v3228
        %v3233 = vmul.f32 %v3231, %v330
        %v3234 = vmul.f32 %v3232, %v334
        %3235 = vrot.lane.b32.xlu0 %v3184, 112
        %v3236 = vpop.permute.xlu0 %3235
        %3237 = vrot.lane.b32.xlu0 %v3185, 112
        %v3238 = vpop.permute.xlu0 %3237
        %v3239 = vsel %vm341, %v3236, %v3238
        %v3240 = vsel %vm341, %v3238, %v3236
        %v3241 = vmul.f32 %v3239, %v347
        %v3242 = vmul.f32 %v3240, %v351
        %3243 = vrot.lane.b32.xlu0 %v3184, 111
        %v3244 = vpop.permute.xlu0 %3243
        %3245 = vrot.lane.b32.xlu0 %v3185, 111
        %v3246 = vpop.permute.xlu0 %3245
        %v3247 = vsel %vm358, %v3244, %v3246
        %v3248 = vsel %vm358, %v3246, %v3244
        %v3249 = vmul.f32 %v3247, %v364
        %v3250 = vmul.f32 %v3248, %v368
        %3252 = vset.pattern.permute.xlu0 72
        %3253 = vperm.xlu0 %3252, %v3186
        %v3254 = vpop.permute.xlu0 %3253
        %v3256 = vsel %vm376, %v3186, 0
        %3258 = vmatprep.subr.mxu0 %v3194
        %3259 = vmatpush1.msra.mxu0 %v3193
        %3260 = vmatprep.subr.mxu0 %v3202
        %3261 = vmatpush1.msra.mxu0 %v3201
        %3262 = vmatprep.subr.mxu0 %v3210
        %3263 = vmatpush1.msra.mxu0 %v3209
        %3264 = vmatprep.subr.mxu0 %v3218
        %3265 = vmatpush1.msra.mxu0 %v3217
        %3266 = vmatprep.subr.mxu0 %v3185
        %3267 = vmatpush1.msra.mxu0 %v3184
        %3268 = vmatprep.subr.mxu0 %v3226
        %3269 = vmatpush1.msra.mxu0 %v3225
        %3270 = vmatprep.subr.mxu0 %v3234
        %3271 = vmatpush1.msra.mxu0 %v3233
        %3272 = vmatprep.subr.mxu0 %v3242
        %3273 = vmatpush1.msra.mxu0 %v3241
        %3274 = vmatprep.subr.mxu0 %v3250
        %3275 = vmatpush1.msra.mxu0 %v3249
        %3276 = vmatprep.subr.mxu0 0.0
        %3277 = vmatpush1.msra.mxu0 0.0
        %3278 = vmatprep.subr.mxu0 0.0
        %3279 = vmatpush1.msra.mxu0 0.0
        %3280 = vmatprep.subr.mxu0 0.0
        %3281 = vmatpush1.msra.mxu0 0.0
        %3282 = vmatprep.subr.mxu0 0.0
        %3283 = vmatpush1.msra.mxu0 0.0
        %3284 = vmatprep.subr.mxu0 0.0
        %3285 = vmatpush1.msra.mxu0 0.0
        %3286 = vmatprep.subr.mxu0 0.0
        %3287 = vmatpush1.msra.mxu0 0.0
        %3288 = vmatprep.subr.mxu0 0.0
        %3289 = vmatpush1.msra.mxu0 0.0
        %3290 = vmatprep.subr.mxu0 0.0
        %3291 = vmatpush1.msra.mxu0 0.0
        %3292 = vmatprep.subr.mxu0 0.0
        %3293 = vmatpush1.msra.mxu0 0.0
        %3294 = vmatprep.subr.mxu0 0.0
        %3295 = vmatpush1.msra.mxu0 0.0
        %3296 = vmatprep.subr.mxu0 0.0
        %3297 = vmatpush1.msra.mxu0 0.0
        %3298 = vmatprep.subr.mxu0 0.0
        %3299 = vmatpush1.msra.mxu0 0.0
        %3300 = vmatprep.subr.mxu0 0.0
        %3301 = vmatpush1.msra.mxu0 0.0
        %3302 = vmatprep.subr.mxu0 0.0
        %3303 = vmatpush1.msra.mxu0 0.0
        %3304 = vmatprep.subr.mxu0 0.0
        %3305 = vmatpush1.msra.mxu0 0.0
        %3306 = vmatprep.subr.mxu0 0.0
        %3307 = vmatpush1.msra.mxu0 0.0
        %3308 = vmatprep.subr.mxu0 0.0
        %3309 = vmatpush1.msra.mxu0 0.0
        %3310 = vmatprep.subr.mxu0 0.0
        %3311 = vmatpush1.msra.mxu0 0.0
        %3312 = vmatprep.subr.mxu0 0.0
        %3313 = vmatpush1.msra.mxu0 0.0
        %3314 = vmatprep.subr.mxu0 0.0
        %3315 = vmatpush1.msra.mxu0 0.0
        %3316 = vmatprep.subr.mxu0 0.0
        %3317 = vmatpush1.msra.mxu0 0.0
        %3318 = vmatprep.subr.mxu0 0.0
        %3319 = vmatpush1.msra.mxu0 0.0
        %3320 = vmatprep.subr.mxu0 0.0
        %3321 = vmatpush1.msra.mxu0 0.0
        %3322 = vmatprep.mubr.f32.mxu0 0.0
        %3323 = vmatmul.mubr.f32.gmra.mrb[0].mxu0 %v3256
        %v3324 = vpop.f32.mrb[0].mxu0
        %v3325 = vadd.f32 %v3254, %v3324
        %v3326 = vpop.f32.mrb[0].mxu0
        %v3327 = vadd.f32 %v3254, %v3326
        %3328 = vdwg.mxu0
        %v3329 = vmax.f32 %v3325, 0.0
        %v3330 = vmax.f32 %v3327, 0.0
        %v3331 = vld [vmem:[#allocation2 + $0x98] sm:$0x7]
        %3333 = vset.pattern.permute.xlu0 8
        %3334 = vperm.xlu0 %3333, %v3331
        %v3335 = vpop.permute.xlu0 %3334
        %vm3337 = vcmask 64512
        %v3338 = vsel %vm3337, %v3331, 0
        %3340 = vmatprep.subr.mxu0 %v3330
        %3341 = vmatpush1.msra.mxu0 %v3329
        %3342 = vmatprep.subr.mxu0 0.0
        %3343 = vmatpush1.msra.mxu0 0.0
        %3344 = vmatprep.subr.mxu0 0.0
        %3345 = vmatpush1.msra.mxu0 0.0
        %3346 = vmatprep.subr.mxu0 0.0
        %3347 = vmatpush1.msra.mxu0 0.0
        %3348 = vmatprep.subr.mxu0 0.0
        %3349 = vmatpush1.msra.mxu0 0.0
        %3350 = vmatprep.subr.mxu0 0.0
        %3351 = vmatpush1.msra.mxu0 0.0
        %3352 = vmatprep.subr.mxu0 0.0
        %3353 = vmatpush1.msra.mxu0 0.0
        %3354 = vmatprep.subr.mxu0 0.0
        %3355 = vmatpush1.msra.mxu0 0.0
        %3356 = vmatprep.subr.mxu0 0.0
        %3357 = vmatpush1.msra.mxu0 0.0
        %3358 = vmatprep.subr.mxu0 0.0
        %3359 = vmatpush1.msra.mxu0 0.0
        %3360 = vmatprep.subr.mxu0 0.0
        %3361 = vmatpush1.msra.mxu0 0.0
        %3362 = vmatprep.subr.mxu0 0.0
        %3363 = vmatpush1.msra.mxu0 0.0
        %3364 = vmatprep.subr.mxu0 0.0
        %3365 = vmatpush1.msra.mxu0 0.0
        %3366 = vmatprep.subr.mxu0 0.0
        %3367 = vmatpush1.msra.mxu0 0.0
        %3368 = vmatprep.subr.mxu0 0.0
        %3369 = vmatpush1.msra.mxu0 0.0
        %3370 = vmatprep.subr.mxu0 0.0
        %3371 = vmatpush1.msra.mxu0 0.0
        %3372 = vmatprep.subr.mxu0 0.0
        %3373 = vmatpush1.msra.mxu0 0.0
        %3374 = vmatprep.subr.mxu0 0.0
        %3375 = vmatpush1.msra.mxu0 0.0
        %3376 = vmatprep.subr.mxu0 0.0
        %3377 = vmatpush1.msra.mxu0 0.0
        %3378 = vmatprep.subr.mxu0 0.0
        %3379 = vmatpush1.msra.mxu0 0.0
        %3380 = vmatprep.subr.mxu0 0.0
        %3381 = vmatpush1.msra.mxu0 0.0
        %3382 = vmatprep.subr.mxu0 0.0
        %3383 = vmatpush1.msra.mxu0 0.0
        %3384 = vmatprep.subr.mxu0 0.0
        %3385 = vmatpush1.msra.mxu0 0.0
        %3386 = vmatprep.subr.mxu0 0.0
        %3387 = vmatpush1.msra.mxu0 0.0
        %3388 = vmatprep.subr.mxu0 0.0
        %3389 = vmatpush1.msra.mxu0 0.0
        %3390 = vmatprep.subr.mxu0 0.0
        %3391 = vmatpush1.msra.mxu0 0.0
        %3392 = vmatprep.subr.mxu0 0.0
        %3393 = vmatpush1.msra.mxu0 0.0
        %3394 = vmatprep.subr.mxu0 0.0
        %3395 = vmatpush1.msra.mxu0 0.0
        %3396 = vmatprep.subr.mxu0 0.0
        %3397 = vmatpush1.msra.mxu0 0.0
        %3398 = vmatprep.subr.mxu0 0.0
        %3399 = vmatpush1.msra.mxu0 0.0
        %3400 = vmatprep.subr.mxu0 0.0
        %3401 = vmatpush1.msra.mxu0 0.0
        %3402 = vmatprep.subr.mxu0 0.0
        %3403 = vmatpush1.msra.mxu0 0.0
        %3404 = vmatprep.mubr.f32.mxu0 0.0
        %3405 = vmatmul.mubr.f32.gmra.mrb[0].mxu0 %v3338
        %v3406 = vpop.f32.mrb[0].mxu0
        %v3407 = vadd.f32 %v3335, %v3406
        %v3408 = vpop.f32.mrb[0].mxu0
        %v3409 = vadd.f32 %v3335, %v3408
        %3410 = vdwg.mxu0
        %v3411 = vlaneseq
        %v3412 = vshrl.u32 %v3411, 7
        %vm3413 = vcmp.eq.s32.totalorder %v3412, 2
        %v3414 = vmax.f32 %v3407, 0.0
        %v3415 = vmax.f32 %v3409, 0.0
        %v3416 = vsel %vm3413, %v3414, %v3407
        %v3417 = vsel %vm3413, %v3415, %v3409
        %v3420 = vcombine.low %v3416, %v3417
        %3422 = vst [vmem:[%s212] sm:$0x77] %v3420
        %p3423 = scmp.lt.s32.totalorder %s16, 1
        %s3424 = scalar_select %p3423, %s16, 1
        %s3425 = smul.addr %s3424, 2
        %s3426 = smul.addr %s3425, 4
        %s3427 = scalar_lea.vmem %s4, %s3426
        // Predicated region
        $region41: #{_lambda_.1} parent=35 // pred_check
          %p3428 = pneg %p123
        $region42: #{_lambda_.1} parent=35 // pred_check_branch
          %3430 = sbr.rel (%p3428) target = $region44
        $region43: #{_lambda_.1} parent=35 // pred_region
          _
        $region44: #{_lambda_.1} parent=35 // pred_fallthru
          _
      $region36: #{_lambda_.1} parent=5 // pred_fallthru
        _
      %p3431 = scmp.le.s32.totalorder 2, %s11
      // Predicated region
      $region45: #{_lambda_.1} parent=5 // pred_check
        %p3432 = pneg %p3431
      $region46: #{_lambda_.1} parent=5 // pred_check_branch
        %3434 = sbr.rel (%p3432) target = $region48
      $region47: #{_lambda_.1} parent=5 // pred_region
        %s3435 = ssub.s32 %s11, 2
        // Predicated region
        $region49: #{_lambda_.1} parent=47 // pred_check
          %p3436 = pneg %p129
        $region50: #{_lambda_.1} parent=47 // pred_check_branch
          %3438 = sbr.rel (%p3436) target = $region52
        $region51: #{_lambda_.1} parent=47 // pred_region
          %p3439 = scmp.lt.s32.totalorder %s17, 1
          %s3440 = scalar_select %p3439, %s17, 1
          %s3441 = smul.addr %s3440, 2
          %s3442 = smul.addr %s3441, 4
          %s3443 = scalar_lea.vmem %s4, %s3442
        $region52: #{_lambda_.1} parent=47 // pred_fallthru
          _
      $region48: #{_lambda_.1} parent=5 // pred_fallthru
        _
    $region6: #{_lambda_.1} parent=1 // loop_footer
      %s15 = sadd.s32 1, %s11
    $region7: #{_lambda_.1} parent=1 // loop_footer_branch
      %10 = sbr.rel target = $region3
    $region8: #{_lambda_.1} parent=1 // loop_exit
      _
    %3444 = vsyncpa [#allocation3], 1
    %s3445 = scalar_lea.sflag [#allocation3], 1
    %3446 = vsyncpa %s3445, 1

</llo_original>
